<compile_context>
chip_gen: v6e
topology: v6e:2x2x1
jax: 0.10.0
libtpu: 0.0.40
codegen_flags: <defaults>
</compile_context>

<pallas_src>
import jax
import jax.numpy as jnp
from jax import lax
from jax.experimental import pallas as pl
from jax.experimental.pallas import tpu as pltpu

EPS = 1e-8  # GlobalLayerNorm eps (Conv-TasNet / SpEx+ convention)


def make_tcn_kernel(Cin, Cc, K, DIL, PAD, T, B):
    BT = B * T
    inv_n = 1.0 / float(Cc * T)

    def kernel(x_ref, w1_ref, wd_ref, w3_ref, pvec_ref, sel_ref, selt_ref, o_ref):
        x = x_ref[...]                                   # (Cin, BT), lane-dense

        # --- packed per-channel params / PReLU scalars (one VMEM tile) ---
        b1  = pvec_ref[0:Cc, 0:1]
        g1  = pvec_ref[0:Cc, 1:2]
        be1 = pvec_ref[0:Cc, 2:3]
        bd  = pvec_ref[0:Cc, 3:4]
        g2  = pvec_ref[0:Cc, 4:5]
        be2 = pvec_ref[0:Cc, 5:6]
        b3  = pvec_ref[0:Cin, 6:7]
        a1  = pvec_ref[0:1, 7:8]                         # shared PReLU slopes
        a2  = pvec_ref[1:2, 7:8]

        sel  = sel_ref[...]                              # (BT, B): lane -> sample
        selt = selt_ref[...]                             # (B, BT)

        def gln(y, gamma, beta):
            # One-pass GlobalLayerNorm over (Cc, T) per sample, stats via MXU.
            u = jnp.dot(y, sel, preferred_element_type=jnp.float32)      # (Cc, B) sums
            v = jnp.dot(y * y, sel, preferred_element_type=jnp.float32)  # (Cc, B) sumsq
            mean = jnp.sum(u, axis=0, keepdims=True) * inv_n             # (1, B)
            ex2  = jnp.sum(v, axis=0, keepdims=True) * inv_n             # (1, B)
            var = jnp.maximum(ex2 - mean * mean, 0.0)
            rs = lax.rsqrt(var + EPS)                                    # (1, B)
            stat = jnp.concatenate([mean, rs], axis=0)                   # (2, B)
            stat_bt = jnp.dot(stat, selt, preferred_element_type=jnp.float32)  # (2, BT)
            mean_bt = stat_bt[0:1, :]
            rs_bt = stat_bt[1:2, :]
            return (y - mean_bt) * rs_bt * gamma + beta

        # --- pointwise Conv1d (k=1): single lane-dense MXU matmul over B samples ---
        y = jnp.dot(w1_ref[...], x, preferred_element_type=jnp.float32) + b1
        y = jnp.where(y > 0, y, a1 * y)                  # PReLU (shared slope)
        y = gln(y, g1, be1)

        # --- depthwise dilated Conv1d ('same'): in-register rolls + masks ---
        # out[c, t] = bd[c] + sum_k wd[c, k] * y[c, t + k*DIL - PAD]
        # Rolling the merged (B*T) lane axis is safe: any element pulled across a
        # sample boundary corresponds to a zero-padding position and is masked.
        t_loc = jnp.concatenate(
            [lax.broadcasted_iota(jnp.int32, (1, T), 1)] * B, axis=1)    # (1, BT) local t
        acc = jnp.zeros_like(y)
        for k in range(K):                                               # static unroll
            s_k = PAD - k * DIL
            tap = y if s_k == 0 else pltpu.roll(y, shift=s_k % BT, axis=1)
            if s_k > 0:
                tap = jnp.where(t_loc >= s_k, tap, 0.0)
            elif s_k < 0:
                tap = jnp.where(t_loc < T + s_k, tap, 0.0)
            acc = acc + wd_ref[:, k:k + 1] * tap
        y = acc + bd

        y = jnp.where(y > 0, y, a2 * y)                  # PReLU 2
        y = gln(y, g2, be2)

        # --- pointwise Conv1d back to Cin + residual connection ---
        o = jnp.dot(w3_ref[...], y, preferred_element_type=jnp.float32) + b3
        o_ref[...] = (x_ref[...] + o).astype(o_ref.dtype)

    return kernel


def tcn_block(x, params, dilation, *, samples_per_step=8):
    N, Cin, T = x.shape
    Cc, K = params["wd"].shape
    assert K % 2 == 1, "'same' padding d*(K-1)//2 preserves length only for odd K"
    PAD = dilation * (K - 1) // 2

    B = min(samples_per_step, N)
    while N % B:
        B -= 1
    BT = B * T
    assert BT % 128 == 0, "B*T must be a multiple of 128 lanes"

    f32 = jnp.float32
    P = max(Cin, Cc)

    # Pack the 12 tiny parameter tensors into one (P, 8) VMEM tile.
    pvec = jnp.zeros((P, 8), f32)
    pvec = pvec.at[:Cc, 0].set(params["b1"][:, 0])
    pvec = pvec.at[:Cc, 1].set(params["g1"][:, 0])
    pvec = pvec.at[:Cc, 2].set(params["be1"][:, 0])
    pvec = pvec.at[:Cc, 3].set(params["bd"][:, 0])
    pvec = pvec.at[:Cc, 4].set(params["g2"][:, 0])
    pvec = pvec.at[:Cc, 5].set(params["be2"][:, 0])
    pvec = pvec.at[:Cin, 6].set(params["b3"][:, 0])
    pvec = pvec.at[0, 7].set(params["a1"].reshape(()))
    pvec = pvec.at[1, 7].set(params["a2"].reshape(()))

    # Per-sample selector: sel[p, b] = 1 iff lane p belongs to sample b.
    samp = jnp.arange(BT, dtype=jnp.int32) // T
    sel = (samp[:, None] == jnp.arange(B, dtype=jnp.int32)[None, :]).astype(f32)
    selt = sel.T

    # Lane-dense activation layout: (Cin, N*T), batch folded next to time.
    x2 = jnp.transpose(x, (1, 0, 2)).reshape(Cin, N * T)

    kernel = make_tcn_kernel(Cin, Cc, K, dilation, PAD, T, B)

    def const_spec(arr):
        return pl.BlockSpec(arr.shape, lambda i: (0, 0))

    out2 = pl.pallas_call(
        kernel,
        out_shape=jax.ShapeDtypeStruct((Cin, N * T), x.dtype),
        grid_spec=pltpu.PrefetchScalarGridSpec(
            num_scalar_prefetch=0,
            grid=(N // B,),
            in_specs=[
                pl.BlockSpec((Cin, BT), lambda i: (0, i)),
                const_spec(params["w1"]),
                const_spec(params["wd"]),
                const_spec(params["w3"]),
                const_spec(pvec),
                const_spec(sel),
                const_spec(selt),
            ],
            out_specs=pl.BlockSpec((Cin, BT), lambda i: (0, i)),
        ),
        compiler_params=pltpu.CompilerParams(
            dimension_semantics=("parallel",),
        ),
    )(x2, params["w1"], params["wd"], params["w3"], pvec, sel, selt)

    # TODO(synk): for production SpEx+ sizes (Cc~512, T in the thousands) add a
    # time grid axis with carried sum/sumsq GLN stats, set vmem_limit_bytes for
    # v7x's 64 MiB VMEM, and use bf16 activations/weights on v6e/v7x to halve
    # DMA bytes (stats/PReLU stay f32).

    return jnp.transpose(out2.reshape(Cin, N, T), (1, 0, 2))


def tcn_ref(x, p, dilation):
    """Pure-JAX reference mirroring the PyTorch forward."""
    K = p["wd"].shape[1]
    PAD = dilation * (K - 1) // 2
    T = x.shape[2]

    def gln(y, g, b):
        m = jnp.mean(y, axis=(1, 2), keepdims=True)
        v = jnp.mean((y - m) ** 2, axis=(1, 2), keepdims=True)
        return g[None] * (y - m) / jnp.sqrt(v + EPS) + b[None]

    y = jnp.einsum("oi,nit->not", p["w1"], x) + p["b1"][None]
    y = jnp.where(y > 0, y, p["a1"][0, 0] * y)
    y = gln(y, p["g1"], p["be1"])
    yp = jnp.pad(y, ((0, 0), (0, 0), (PAD, PAD)))
    acc = jnp.broadcast_to(p["bd"][None], y.shape)
    for k in range(K):
        acc = acc + p["wd"][None, :, k:k + 1] * yp[:, :, k * dilation:k * dilation + T]
    y = acc
    y = jnp.where(y > 0, y, p["a2"][0, 0] * y)
    y = gln(y, p["g2"], p["be2"])
    y = jnp.einsum("oi,nit->not", p["w3"], y) + p["b3"][None]
    return x + y


if __name__ == "__main__":
    N, Cin, Cc, K, DIL, T = 16, 16, 32, 3, 2, 128
    key = jax.random.PRNGKey(0)
    ks = jax.random.split(key, 12)

    params = {
        "w1": 0.1 * jax.random.normal(ks[0], (Cc, Cin), jnp.float32),
        "b1": 0.1 * jax.random.normal(ks[1], (Cc, 1), jnp.float32),
        "a1": jnp.full((1, 1), 0.25, jnp.float32),        # PReLU slopes
        "g1": 1.0 + 0.1 * jax.random.normal(ks[2], (Cc, 1), jnp.float32),
        "be1": 0.1 * jax.random.normal(ks[3], (Cc, 1), jnp.float32),
        "wd": 0.1 * jax.random.normal(ks[4], (Cc, K), jnp.float32),
        "bd": 0.1 * jax.random.normal(ks[5], (Cc, 1), jnp.float32),
        "a2": jnp.full((1, 1), 0.2, jnp.float32),
        "g2": 1.0 + 0.1 * jax.random.normal(ks[6], (Cc, 1), jnp.float32),
        "be2": 0.1 * jax.random.normal(ks[7], (Cc, 1), jnp.float32),
        "w3": 0.1 * jax.random.normal(ks[8], (Cin, Cc), jnp.float32),
        "b3": 0.1 * jax.random.normal(ks[9], (Cin, 1), jnp.float32),
    }

    x = jax.random.normal(ks[10], (N, Cin, T), jnp.float32)

    out = tcn_block(x, params, DIL)
    out = jax.block_until_ready(out)

    ref = tcn_ref(x, params, DIL)
    assert out.shape == (N, Cin, T)
    assert jnp.allclose(out, ref, atol=1e-4, rtol=1e-4), "mismatch vs reference"

    print("KERNEL_OK")
</pallas_src>

<mosaic_0001>
module attributes {stable_mosaic.version = 11 : i64} {
  func.func @kernel(%arg0: i32, %arg1: memref<16x1024xf32, #tpu.memory_space<vmem>>, %arg2: memref<32x16xf32, #tpu.memory_space<vmem>>, %arg3: memref<32x3xf32, #tpu.memory_space<vmem>>, %arg4: memref<16x32xf32, #tpu.memory_space<vmem>>, %arg5: memref<32x8xf32, #tpu.memory_space<vmem>>, %arg6: memref<1024x8xf32, #tpu.memory_space<vmem>>, %arg7: memref<8x1024xf32, #tpu.memory_space<vmem>>, %arg8: memref<16x1024xf32, #tpu.memory_space<vmem>>) attributes {dimension_semantics = [#tpu.dimension_semantics<parallel>], iteration_bounds = array<i64: 2>, scalar_prefetch = 0 : i64, scratch_operands = 0 : i64, tpu.core_type = #tpu.core_type<tc>, window_params = [{transform_indices = @transform_0, window_bounds = array<i64: 16, 1024>}, {pipeline_mode = #tpu.pipeline_mode<synchronous>, transform_indices = @transform_1, window_bounds = array<i64: 32, 16>}, {pipeline_mode = #tpu.pipeline_mode<synchronous>, transform_indices = @transform_2, window_bounds = array<i64: 32, 3>}, {pipeline_mode = #tpu.pipeline_mode<synchronous>, transform_indices = @transform_3, window_bounds = array<i64: 16, 32>}, {pipeline_mode = #tpu.pipeline_mode<synchronous>, transform_indices = @transform_4, window_bounds = array<i64: 32, 8>}, {pipeline_mode = #tpu.pipeline_mode<synchronous>, transform_indices = @transform_5, window_bounds = array<i64: 1024, 8>}, {pipeline_mode = #tpu.pipeline_mode<synchronous>, transform_indices = @transform_6, window_bounds = array<i64: 8, 1024>}, {transform_indices = @transform_7, window_bounds = array<i64: 16, 1024>}]} {
    %c0 = arith.constant 0 : index
    %c0_0 = arith.constant 0 : index
    %0 = vector.load %arg1[%c0, %c0_0] : memref<16x1024xf32, #tpu.memory_space<vmem>>, vector<16x1024xf32>
    %c0_1 = arith.constant 0 : index
    %c0_2 = arith.constant 0 : index
    %1 = vector.load %arg5[%c0_1, %c0_2] : memref<32x8xf32, #tpu.memory_space<vmem>>, vector<32x1xf32>
    %c0_3 = arith.constant 0 : index
    %c1 = arith.constant 1 : index
    %2 = vector.load %arg5[%c0_3, %c1] : memref<32x8xf32, #tpu.memory_space<vmem>>, vector<32x1xf32>
    %c0_4 = arith.constant 0 : index
    %c2 = arith.constant 2 : index
    %3 = vector.load %arg5[%c0_4, %c2] : memref<32x8xf32, #tpu.memory_space<vmem>>, vector<32x1xf32>
    %c0_5 = arith.constant 0 : index
    %c3 = arith.constant 3 : index
    %4 = vector.load %arg5[%c0_5, %c3] : memref<32x8xf32, #tpu.memory_space<vmem>>, vector<32x1xf32>
    %c0_6 = arith.constant 0 : index
    %c4 = arith.constant 4 : index
    %5 = vector.load %arg5[%c0_6, %c4] : memref<32x8xf32, #tpu.memory_space<vmem>>, vector<32x1xf32>
    %c0_7 = arith.constant 0 : index
    %c5 = arith.constant 5 : index
    %6 = vector.load %arg5[%c0_7, %c5] : memref<32x8xf32, #tpu.memory_space<vmem>>, vector<32x1xf32>
    %c0_8 = arith.constant 0 : index
    %c6 = arith.constant 6 : index
    %7 = vector.load %arg5[%c0_8, %c6] : memref<32x8xf32, #tpu.memory_space<vmem>>, vector<16x1xf32>
    %c0_9 = arith.constant 0 : index
    %c7 = arith.constant 7 : index
    %8 = vector.load %arg5[%c0_9, %c7] : memref<32x8xf32, #tpu.memory_space<vmem>>, vector<1x1xf32>
    %c1_10 = arith.constant 1 : index
    %c7_11 = arith.constant 7 : index
    %9 = vector.load %arg5[%c1_10, %c7_11] : memref<32x8xf32, #tpu.memory_space<vmem>>, vector<1x1xf32>
    %c0_12 = arith.constant 0 : index
    %c0_13 = arith.constant 0 : index
    %10 = vector.load %arg6[%c0_12, %c0_13] : memref<1024x8xf32, #tpu.memory_space<vmem>>, vector<1024x8xf32>
    %c0_14 = arith.constant 0 : index
    %c0_15 = arith.constant 0 : index
    %11 = vector.load %arg7[%c0_14, %c0_15] : memref<8x1024xf32, #tpu.memory_space<vmem>>, vector<8x1024xf32>
    %c0_16 = arith.constant 0 : index
    %c0_17 = arith.constant 0 : index
    %12 = vector.load %arg2[%c0_16, %c0_17] : memref<32x16xf32, #tpu.memory_space<vmem>>, vector<32x16xf32>
    %cst = arith.constant dense<0.000000e+00> : vector<32x1024xf32>
    %13 = tpu.matmul %12, %0, %cst {dimension_numbers = #tpu.dot_dimension_numbers<[1], [0], [0], [1], [0, 0, 1, 1], [], []>} : vector<32x16xf32>, vector<16x1024xf32>, vector<32x1024xf32> -> vector<32x1024xf32>
    %14 = vector.broadcast %1 : vector<32x1xf32> to vector<32x1024xf32>
    %15 = arith.addf %13, %14 : vector<32x1024xf32>
    %cst_18 = arith.constant 0.000000e+00 : f32
    %16 = vector.broadcast %cst_18 : f32 to vector<32x1024xf32>
    %17 = arith.cmpf ogt, %15, %16 : vector<32x1024xf32>
    %18 = vector.broadcast %8 : vector<1x1xf32> to vector<32x1024xf32>
    %19 = arith.mulf %18, %15 : vector<32x1024xf32>
    %20 = arith.select %17, %15, %19 : vector<32x1024xi1>, vector<32x1024xf32>
    %cst_19 = arith.constant dense<0.000000e+00> : vector<32x8xf32>
    %21 = tpu.matmul %20, %10, %cst_19 {dimension_numbers = #tpu.dot_dimension_numbers<[1], [0], [0], [1], [0, 0, 1, 1], [], []>} : vector<32x1024xf32>, vector<1024x8xf32>, vector<32x8xf32> -> vector<32x8xf32>
    %22 = arith.mulf %20, %20 : vector<32x1024xf32>
    %cst_20 = arith.constant dense<0.000000e+00> : vector<32x8xf32>
    %23 = tpu.matmul %22, %10, %cst_20 {dimension_numbers = #tpu.dot_dimension_numbers<[1], [0], [0], [1], [0, 0, 1, 1], [], []>} : vector<32x1024xf32>, vector<1024x8xf32>, vector<32x8xf32> -> vector<32x8xf32>
    %cst_21 = arith.constant dense<0.000000e+00> : vector<8xf32>
    %24 = vector.multi_reduction <add>, %21, %cst_21 [0] : vector<32x8xf32> to vector<8xf32>
    %25 = vector.shape_cast %24 : vector<8xf32> to vector<1x8xf32>
    %cst_22 = arith.constant 2.44140625E-4 : f32
    %26 = vector.broadcast %cst_22 : f32 to vector<1x8xf32>
    %27 = arith.mulf %25, %26 : vector<1x8xf32>
    %cst_23 = arith.constant dense<0.000000e+00> : vector<8xf32>
    %28 = vector.multi_reduction <add>, %23, %cst_23 [0] : vector<32x8xf32> to vector<8xf32>
    %29 = vector.shape_cast %28 : vector<8xf32> to vector<1x8xf32>
    %cst_24 = arith.constant 2.44140625E-4 : f32
    %30 = vector.broadcast %cst_24 : f32 to vector<1x8xf32>
    %31 = arith.mulf %29, %30 : vector<1x8xf32>
    %32 = arith.mulf %27, %27 : vector<1x8xf32>
    %33 = arith.subf %31, %32 : vector<1x8xf32>
    %cst_25 = arith.constant 0.000000e+00 : f32
    %34 = vector.broadcast %cst_25 : f32 to vector<1x8xf32>
    %35 = arith.maximumf %33, %34 : vector<1x8xf32>
    %cst_26 = arith.constant 9.99999993E-9 : f32
    %36 = vector.broadcast %cst_26 : f32 to vector<1x8xf32>
    %37 = arith.addf %35, %36 : vector<1x8xf32>
    %38 = math.rsqrt %37 : vector<1x8xf32>
    %39 = tpu.concatenate %27, %38 in 0 : vector<1x8xf32>, vector<1x8xf32> -> vector<2x8xf32>
    %cst_27 = arith.constant dense<0.000000e+00> : vector<2x1024xf32>
    %40 = tpu.matmul %39, %11, %cst_27 {dimension_numbers = #tpu.dot_dimension_numbers<[1], [0], [0], [1], [0, 0, 1, 1], [], []>} : vector<2x8xf32>, vector<8x1024xf32>, vector<2x1024xf32> -> vector<2x1024xf32>
    %41 = vector.extract_strided_slice %40 {offsets = [0, 0], sizes = [1, 1024], strides = [1, 1]} : vector<2x1024xf32> to vector<1x1024xf32>
    %42 = vector.extract_strided_slice %40 {offsets = [1, 0], sizes = [1, 1024], strides = [1, 1]} : vector<2x1024xf32> to vector<1x1024xf32>
    %43 = vector.broadcast %41 : vector<1x1024xf32> to vector<32x1024xf32>
    %44 = arith.subf %20, %43 : vector<32x1024xf32>
    %45 = vector.broadcast %42 : vector<1x1024xf32> to vector<32x1024xf32>
    %46 = arith.mulf %44, %45 : vector<32x1024xf32>
    %47 = vector.broadcast %2 : vector<32x1xf32> to vector<32x1024xf32>
    %48 = arith.mulf %46, %47 : vector<32x1024xf32>
    %49 = vector.broadcast %3 : vector<32x1xf32> to vector<32x1024xf32>
    %50 = arith.addf %48, %49 : vector<32x1024xf32>
    %51 = tpu.iota {dimensions = array<i32: 1>} : vector<1x128xi32>
    %52 = tpu.concatenate %51, %51, %51, %51, %51, %51, %51, %51 in 1 : vector<1x128xi32>, vector<1x128xi32>, vector<1x128xi32>, vector<1x128xi32>, vector<1x128xi32>, vector<1x128xi32>, vector<1x128xi32>, vector<1x128xi32> -> vector<1x1024xi32>
    %cst_28 = arith.constant 0.000000e+00 : f32
    %53 = vector.broadcast %cst_28 : f32 to vector<32x1024xf32>
    %c2_i32 = arith.constant 2 : i32
    %54 = tpu.dynamic_rotate %50 by %c2_i32 dim 1 : vector<32x1024xf32>, i32 -> vector<32x1024xf32>
    %c2_i32_29 = arith.constant 2 : i32
    %55 = vector.broadcast %c2_i32_29 : i32 to vector<1x1024xi32>
    %56 = arith.cmpi sge, %52, %55 : vector<1x1024xi32>
    %cst_30 = arith.constant 0.000000e+00 : f32
    %57 = vector.shape_cast %56 : vector<1x1024xi1> to vector<1x1024xi1>
    %58 = vector.broadcast %57 : vector<1x1024xi1> to vector<32x1024xi1>
    %59 = vector.broadcast %cst_30 : f32 to vector<32x1024xf32>
    %60 = arith.select %58, %54, %59 : vector<32x1024xi1>, vector<32x1024xf32>
    %c0_31 = arith.constant 0 : index
    %c0_32 = arith.constant 0 : index
    %61 = vector.load %arg3[%c0_31, %c0_32] : memref<32x3xf32, #tpu.memory_space<vmem>>, vector<32x1xf32>
    %62 = vector.broadcast %61 : vector<32x1xf32> to vector<32x1024xf32>
    %63 = arith.mulf %62, %60 : vector<32x1024xf32>
    %64 = arith.addf %53, %63 : vector<32x1024xf32>
    %c0_33 = arith.constant 0 : index
    %c1_34 = arith.constant 1 : index
    %65 = vector.load %arg3[%c0_33, %c1_34] : memref<32x3xf32, #tpu.memory_space<vmem>>, vector<32x1xf32>
    %66 = vector.broadcast %65 : vector<32x1xf32> to vector<32x1024xf32>
    %67 = arith.mulf %66, %50 : vector<32x1024xf32>
    %68 = arith.addf %64, %67 : vector<32x1024xf32>
    %c1022_i32 = arith.constant 1022 : i32
    %69 = tpu.dynamic_rotate %50 by %c1022_i32 dim 1 : vector<32x1024xf32>, i32 -> vector<32x1024xf32>
    %c126_i32 = arith.constant 126 : i32
    %70 = vector.broadcast %c126_i32 : i32 to vector<1x1024xi32>
    %71 = arith.cmpi slt, %52, %70 : vector<1x1024xi32>
    %cst_35 = arith.constant 0.000000e+00 : f32
    %72 = vector.shape_cast %71 : vector<1x1024xi1> to vector<1x1024xi1>
    %73 = vector.broadcast %72 : vector<1x1024xi1> to vector<32x1024xi1>
    %74 = vector.broadcast %cst_35 : f32 to vector<32x1024xf32>
    %75 = arith.select %73, %69, %74 : vector<32x1024xi1>, vector<32x1024xf32>
    %c0_36 = arith.constant 0 : index
    %c2_37 = arith.constant 2 : index
    %76 = vector.load %arg3[%c0_36, %c2_37] : memref<32x3xf32, #tpu.memory_space<vmem>>, vector<32x1xf32>
    %77 = vector.broadcast %76 : vector<32x1xf32> to vector<32x1024xf32>
    %78 = arith.mulf %77, %75 : vector<32x1024xf32>
    %79 = arith.addf %68, %78 : vector<32x1024xf32>
    %80 = vector.broadcast %4 : vector<32x1xf32> to vector<32x1024xf32>
    %81 = arith.addf %79, %80 : vector<32x1024xf32>
    %cst_38 = arith.constant 0.000000e+00 : f32
    %82 = vector.broadcast %cst_38 : f32 to vector<32x1024xf32>
    %83 = arith.cmpf ogt, %81, %82 : vector<32x1024xf32>
    %84 = vector.broadcast %9 : vector<1x1xf32> to vector<32x1024xf32>
    %85 = arith.mulf %84, %81 : vector<32x1024xf32>
    %86 = arith.select %83, %81, %85 : vector<32x1024xi1>, vector<32x1024xf32>
    %cst_39 = arith.constant dense<0.000000e+00> : vector<32x8xf32>
    %87 = tpu.matmul %86, %10, %cst_39 {dimension_numbers = #tpu.dot_dimension_numbers<[1], [0], [0], [1], [0, 0, 1, 1], [], []>} : vector<32x1024xf32>, vector<1024x8xf32>, vector<32x8xf32> -> vector<32x8xf32>
    %88 = arith.mulf %86, %86 : vector<32x1024xf32>
    %cst_40 = arith.constant dense<0.000000e+00> : vector<32x8xf32>
    %89 = tpu.matmul %88, %10, %cst_40 {dimension_numbers = #tpu.dot_dimension_numbers<[1], [0], [0], [1], [0, 0, 1, 1], [], []>} : vector<32x1024xf32>, vector<1024x8xf32>, vector<32x8xf32> -> vector<32x8xf32>
    %cst_41 = arith.constant dense<0.000000e+00> : vector<8xf32>
    %90 = vector.multi_reduction <add>, %87, %cst_41 [0] : vector<32x8xf32> to vector<8xf32>
    %91 = vector.shape_cast %90 : vector<8xf32> to vector<1x8xf32>
    %cst_42 = arith.constant 2.44140625E-4 : f32
    %92 = vector.broadcast %cst_42 : f32 to vector<1x8xf32>
    %93 = arith.mulf %91, %92 : vector<1x8xf32>
    %cst_43 = arith.constant dense<0.000000e+00> : vector<8xf32>
    %94 = vector.multi_reduction <add>, %89, %cst_43 [0] : vector<32x8xf32> to vector<8xf32>
    %95 = vector.shape_cast %94 : vector<8xf32> to vector<1x8xf32>
    %cst_44 = arith.constant 2.44140625E-4 : f32
    %96 = vector.broadcast %cst_44 : f32 to vector<1x8xf32>
    %97 = arith.mulf %95, %96 : vector<1x8xf32>
    %98 = arith.mulf %93, %93 : vector<1x8xf32>
    %99 = arith.subf %97, %98 : vector<1x8xf32>
    %cst_45 = arith.constant 0.000000e+00 : f32
    %100 = vector.broadcast %cst_45 : f32 to vector<1x8xf32>
    %101 = arith.maximumf %99, %100 : vector<1x8xf32>
    %cst_46 = arith.constant 9.99999993E-9 : f32
    %102 = vector.broadcast %cst_46 : f32 to vector<1x8xf32>
    %103 = arith.addf %101, %102 : vector<1x8xf32>
    %104 = math.rsqrt %103 : vector<1x8xf32>
    %105 = tpu.concatenate %93, %104 in 0 : vector<1x8xf32>, vector<1x8xf32> -> vector<2x8xf32>
    %cst_47 = arith.constant dense<0.000000e+00> : vector<2x1024xf32>
    %106 = tpu.matmul %105, %11, %cst_47 {dimension_numbers = #tpu.dot_dimension_numbers<[1], [0], [0], [1], [0, 0, 1, 1], [], []>} : vector<2x8xf32>, vector<8x1024xf32>, vector<2x1024xf32> -> vector<2x1024xf32>
    %107 = vector.extract_strided_slice %106 {offsets = [0, 0], sizes = [1, 1024], strides = [1, 1]} : vector<2x1024xf32> to vector<1x1024xf32>
    %108 = vector.extract_strided_slice %106 {offsets = [1, 0], sizes = [1, 1024], strides = [1, 1]} : vector<2x1024xf32> to vector<1x1024xf32>
    %109 = vector.broadcast %107 : vector<1x1024xf32> to vector<32x1024xf32>
    %110 = arith.subf %86, %109 : vector<32x1024xf32>
    %111 = vector.broadcast %108 : vector<1x1024xf32> to vector<32x1024xf32>
    %112 = arith.mulf %110, %111 : vector<32x1024xf32>
    %113 = vector.broadcast %5 : vector<32x1xf32> to vector<32x1024xf32>
    %114 = arith.mulf %112, %113 : vector<32x1024xf32>
    %115 = vector.broadcast %6 : vector<32x1xf32> to vector<32x1024xf32>
    %116 = arith.addf %114, %115 : vector<32x1024xf32>
    %c0_48 = arith.constant 0 : index
    %c0_49 = arith.constant 0 : index
    %117 = vector.load %arg4[%c0_48, %c0_49] : memref<16x32xf32, #tpu.memory_space<vmem>>, vector<16x32xf32>
    %cst_50 = arith.constant dense<0.000000e+00> : vector<16x1024xf32>
    %118 = tpu.matmul %117, %116, %cst_50 {dimension_numbers = #tpu.dot_dimension_numbers<[1], [0], [0], [1], [0, 0, 1, 1], [], []>} : vector<16x32xf32>, vector<32x1024xf32>, vector<16x1024xf32> -> vector<16x1024xf32>
    %119 = vector.broadcast %7 : vector<16x1xf32> to vector<16x1024xf32>
    %120 = arith.addf %118, %119 : vector<16x1024xf32>
    %c0_51 = arith.constant 0 : index
    %c0_52 = arith.constant 0 : index
    %121 = vector.load %arg1[%c0_51, %c0_52] : memref<16x1024xf32, #tpu.memory_space<vmem>>, vector<16x1024xf32>
    %122 = arith.addf %121, %120 : vector<16x1024xf32>
    %c0_53 = arith.constant 0 : index
    %c0_54 = arith.constant 0 : index
    %123 = vector.load %arg8[%c0_53, %c0_54] : memref<16x1024xf32, #tpu.memory_space<vmem>>, vector<16x1024xf32>
    tpu.vector_store %arg8[%c0_53, %c0_54], %122 {strides = array<i32>} : memref<16x1024xf32, #tpu.memory_space<vmem>>, vector<16x1024xf32>,
    return
  }
  func.func @transform_0(%arg0: i32) -> (i32, i32) {
    %c0_i32 = arith.constant 0 : i32
    %c0_i32_0 = arith.constant 0 : i32
    return %c0_i32, %arg0 : i32, i32
  }
  func.func @transform_1(%arg0: i32) -> (i32, i32) {
    %c0_i32 = arith.constant 0 : i32
    %c0_i32_0 = arith.constant 0 : i32
    %c0_i32_1 = arith.constant 0 : i32
    return %c0_i32, %c0_i32_0 : i32, i32
  }
  func.func @transform_2(%arg0: i32) -> (i32, i32) {
    %c0_i32 = arith.constant 0 : i32
    %c0_i32_0 = arith.constant 0 : i32
    %c0_i32_1 = arith.constant 0 : i32
    return %c0_i32, %c0_i32_0 : i32, i32
  }
  func.func @transform_3(%arg0: i32) -> (i32, i32) {
    %c0_i32 = arith.constant 0 : i32
    %c0_i32_0 = arith.constant 0 : i32
    %c0_i32_1 = arith.constant 0 : i32
    return %c0_i32, %c0_i32_0 : i32, i32
  }
  func.func @transform_4(%arg0: i32) -> (i32, i32) {
    %c0_i32 = arith.constant 0 : i32
    %c0_i32_0 = arith.constant 0 : i32
    %c0_i32_1 = arith.constant 0 : i32
    return %c0_i32, %c0_i32_0 : i32, i32
  }
  func.func @transform_5(%arg0: i32) -> (i32, i32) {
    %c0_i32 = arith.constant 0 : i32
    %c0_i32_0 = arith.constant 0 : i32
    %c0_i32_1 = arith.constant 0 : i32
    return %c0_i32, %c0_i32_0 : i32, i32
  }
  func.func @transform_6(%arg0: i32) -> (i32, i32) {
    %c0_i32 = arith.constant 0 : i32
    %c0_i32_0 = arith.constant 0 : i32
    %c0_i32_1 = arith.constant 0 : i32
    return %c0_i32, %c0_i32_0 : i32, i32
  }
  func.func @transform_7(%arg0: i32) -> (i32, i32) {
    %c0_i32 = arith.constant 0 : i32
    %c0_i32_0 = arith.constant 0 : i32
    return %c0_i32, %arg0 : i32, i32
  }
}

</mosaic_0001>

<llo_original>
// kernel: tpu_custom_call.1
$region0: #{tpu_custom_call.1}
  #allocation0 [shape = 'u32[]', space=smem, size = 0x4, offset = 0x4, fixed_abs, tag = 'smem constant byte address 0x4 - core index']
  #allocation1 [shape = 'u32[144,128]{1,0:T(1,128)}', space=vmem, size = 0x12000, scoped, tag = 'internal scratch']
  %s0 = inlined_call_operand.vmem [shape: f32[16,2048], index: 0, kind: input, shape index: {}]
  %s1 = inlined_call_operand.vmem [shape: f32[32,16], index: 1, kind: input, shape index: {}]
  %s2 = inlined_call_operand.vmem [shape: f32[32,3], index: 2, kind: input, shape index: {}]
  %s3 = inlined_call_operand.vmem [shape: f32[16,32], index: 3, kind: input, shape index: {}]
  %s4 = inlined_call_operand.vmem [shape: f32[32,8], index: 4, kind: input, shape index: {}]
  %s5 = inlined_call_operand.vmem [shape: f32[1024,8], index: 5, kind: input, shape index: {}]
  %s6 = inlined_call_operand.vmem [shape: f32[8,1024], index: 6, kind: input, shape index: {}]
  %s7 = inlined_call_operand.hbm [shape: f32[16,2048], index: 7, kind: output, shape index: {}]
  %s8 = sld [smem:[#allocation0]]
  $region84: #{tpu_custom_call.1} parent=0
    _
  %s10 = ssub.s32 1, %s8
  %s11 = scalar_select 0, %s10, %s8
  $region1: #{tpu_custom_call.1} parent=0
    #allocation2 [shape = 'u8[131072]{0}', space=vmem, size = 0x20000, scoped, tag = 'input window, operand 0']
    #allocation3 [shape = 'u8[131072]{0}', space=vmem, size = 0x20000, scoped, tag = 'output window, operand 0']
    #allocation4 [shape = 's32[2]{0}', space=sflag, size = 0x8, scoped, tag = 'scoped memory for tpu_custom_call.1']
    %12 = vsyncpa [#allocation4], 0
    %s13 = scalar_lea.sflag [#allocation4], 1
    %14 = vsyncpa %s13, 0
    loop: start=0, step=1, limit=4
    $region2: #{tpu_custom_call.1} parent=1 // loop_pre_header
      _
    $region3: #{tpu_custom_call.1} parent=1 // loop_header
      %s16 = sphi 0, %s20
      %p17 = scmp.ge.s32.totalorder %s16, 4
      %s26 = sphi 0, %s28
      %s29 = sphi 0, %s26
      %s30 = sphi 0, %s29
      %s46 = sphi 0, %s30
      %s50 = sphi 0, %s50
      %s52 = sphi 0, %s50
      %s53 = sphi 0, %s52
      %s67 = sphi 0, %s53
      %s71 = sphi 0, %s71
      %s73 = sphi 0, %s71
      %s74 = sphi 0, %s73
      %s88 = sphi 0, %s74
      %s92 = sphi 0, %s92
      %s94 = sphi 0, %s92
      %s95 = sphi 0, %s94
      %s109 = sphi 0, %s95
      %s113 = sphi 0, %s113
      %s115 = sphi 0, %s113
      %s116 = sphi 0, %s115
      %s130 = sphi 0, %s116
      %s134 = sphi 0, %s134
      %s136 = sphi 0, %s134
      %s137 = sphi 0, %s136
      %s151 = sphi 0, %s137
      %s155 = sphi 0, %s155
      %s157 = sphi 0, %s155
      %s158 = sphi 0, %s157
      %s172 = sphi 0, %s158
      %s178 = sphi 0, %s180
      %s181 = sphi 0, %s178
      %s182 = sphi 0, %s181
      %s198 = sphi 0, %s182
    $region4: #{tpu_custom_call.1} parent=1 // loop_header_branch
      %19 = sbr.rel (%p17) target = $region8
    $region5: #{tpu_custom_call.1} parent=1 // loop_body
      %s21 = ssub.s32 %s16, 1
      %s22 = ssub.s32 %s16, 2
      %s23 = sadd.s32 %s16, 1
      %s24 = ssub.s32 %s16, %s23
      %p25 = scmp.eq.s32.totalorder %s24, 0
      %s27 = sadd.s32 %s26, 1
      %s28 = scalar_select %p25, %s26, %s27
      %p31 = pneg %p25
      %p32 = scmp.eq.s32.totalorder %s16, 1
      %p33 = por %p31, %p32
      %p34 = scmp.ne.s32.totalorder %s26, %s29
      %p35 = scmp.eq.s32.totalorder %s16, 0
      %p36 = por %p34, %p35
      %p37 = scmp.ne.s32.totalorder %s26, %s29
      %p38 = scmp.eq.s32.totalorder %s21, 1
      %p39 = por %p37, %p38
      %p40 = scmp.ne.s32.totalorder %s29, %s30
      %p41 = scmp.eq.s32.totalorder %s21, 0
      %p42 = por %p40, %p41
      %p43 = scmp.ne.s32.totalorder %s29, %s30
      %p44 = scmp.eq.s32.totalorder %s22, 1
      %p45 = por %p43, %p44
      %p47 = scmp.ne.s32.totalorder %s30, %s46
      %p48 = scmp.eq.s32.totalorder %s22, 0
      %p49 = por %p47, %p48
      %s51 = sadd.s32 %s50, 1
      %p54 = scmp.eq.s32.totalorder %s16, 1
      %p55 = scmp.ne.s32.totalorder %s50, %s52
      %p56 = scmp.eq.s32.totalorder %s16, 0
      %p57 = por %p55, %p56
      %p58 = scmp.ne.s32.totalorder %s50, %s52
      %p59 = scmp.eq.s32.totalorder %s21, 1
      %p60 = por %p58, %p59
      %p61 = scmp.ne.s32.totalorder %s52, %s53
      %p62 = scmp.eq.s32.totalorder %s21, 0
      %p63 = por %p61, %p62
      %p64 = scmp.ne.s32.totalorder %s52, %s53
      %p65 = scmp.eq.s32.totalorder %s22, 1
      %p66 = por %p64, %p65
      %p68 = scmp.ne.s32.totalorder %s53, %s67
      %p69 = scmp.eq.s32.totalorder %s22, 0
      %p70 = por %p68, %p69
      %s72 = sadd.s32 %s71, 1
      %p75 = scmp.eq.s32.totalorder %s16, 1
      %p76 = scmp.ne.s32.totalorder %s71, %s73
      %p77 = scmp.eq.s32.totalorder %s16, 0
      %p78 = por %p76, %p77
      %p79 = scmp.ne.s32.totalorder %s71, %s73
      %p80 = scmp.eq.s32.totalorder %s21, 1
      %p81 = por %p79, %p80
      %p82 = scmp.ne.s32.totalorder %s73, %s74
      %p83 = scmp.eq.s32.totalorder %s21, 0
      %p84 = por %p82, %p83
      %p85 = scmp.ne.s32.totalorder %s73, %s74
      %p86 = scmp.eq.s32.totalorder %s22, 1
      %p87 = por %p85, %p86
      %p89 = scmp.ne.s32.totalorder %s74, %s88
      %p90 = scmp.eq.s32.totalorder %s22, 0
      %p91 = por %p89, %p90
      %s93 = sadd.s32 %s92, 1
      %p96 = scmp.eq.s32.totalorder %s16, 1
      %p97 = scmp.ne.s32.totalorder %s92, %s94
      %p98 = scmp.eq.s32.totalorder %s16, 0
      %p99 = por %p97, %p98
      %p100 = scmp.ne.s32.totalorder %s92, %s94
      %p101 = scmp.eq.s32.totalorder %s21, 1
      %p102 = por %p100, %p101
      %p103 = scmp.ne.s32.totalorder %s94, %s95
      %p104 = scmp.eq.s32.totalorder %s21, 0
      %p105 = por %p103, %p104
      %p106 = scmp.ne.s32.totalorder %s94, %s95
      %p107 = scmp.eq.s32.totalorder %s22, 1
      %p108 = por %p106, %p107
      %p110 = scmp.ne.s32.totalorder %s95, %s109
      %p111 = scmp.eq.s32.totalorder %s22, 0
      %p112 = por %p110, %p111
      %s114 = sadd.s32 %s113, 1
      %p117 = scmp.eq.s32.totalorder %s16, 1
      %p118 = scmp.ne.s32.totalorder %s113, %s115
      %p119 = scmp.eq.s32.totalorder %s16, 0
      %p120 = por %p118, %p119
      %p121 = scmp.ne.s32.totalorder %s113, %s115
      %p122 = scmp.eq.s32.totalorder %s21, 1
      %p123 = por %p121, %p122
      %p124 = scmp.ne.s32.totalorder %s115, %s116
      %p125 = scmp.eq.s32.totalorder %s21, 0
      %p126 = por %p124, %p125
      %p127 = scmp.ne.s32.totalorder %s115, %s116
      %p128 = scmp.eq.s32.totalorder %s22, 1
      %p129 = por %p127, %p128
      %p131 = scmp.ne.s32.totalorder %s116, %s130
      %p132 = scmp.eq.s32.totalorder %s22, 0
      %p133 = por %p131, %p132
      %s135 = sadd.s32 %s134, 1
      %p138 = scmp.eq.s32.totalorder %s16, 1
      %p139 = scmp.ne.s32.totalorder %s134, %s136
      %p140 = scmp.eq.s32.totalorder %s16, 0
      %p141 = por %p139, %p140
      %p142 = scmp.ne.s32.totalorder %s134, %s136
      %p143 = scmp.eq.s32.totalorder %s21, 1
      %p144 = por %p142, %p143
      %p145 = scmp.ne.s32.totalorder %s136, %s137
      %p146 = scmp.eq.s32.totalorder %s21, 0
      %p147 = por %p145, %p146
      %p148 = scmp.ne.s32.totalorder %s136, %s137
      %p149 = scmp.eq.s32.totalorder %s22, 1
      %p150 = por %p148, %p149
      %p152 = scmp.ne.s32.totalorder %s137, %s151
      %p153 = scmp.eq.s32.totalorder %s22, 0
      %p154 = por %p152, %p153
      %s156 = sadd.s32 %s155, 1
      %p159 = scmp.eq.s32.totalorder %s16, 1
      %p160 = scmp.ne.s32.totalorder %s155, %s157
      %p161 = scmp.eq.s32.totalorder %s16, 0
      %p162 = por %p160, %p161
      %p163 = scmp.ne.s32.totalorder %s155, %s157
      %p164 = scmp.eq.s32.totalorder %s21, 1
      %p165 = por %p163, %p164
      %p166 = scmp.ne.s32.totalorder %s157, %s158
      %p167 = scmp.eq.s32.totalorder %s21, 0
      %p168 = por %p166, %p167
      %p169 = scmp.ne.s32.totalorder %s157, %s158
      %p170 = scmp.eq.s32.totalorder %s22, 1
      %p171 = por %p169, %p170
      %p173 = scmp.ne.s32.totalorder %s158, %s172
      %p174 = scmp.eq.s32.totalorder %s22, 0
      %p175 = por %p173, %p174
      %s176 = ssub.s32 %s16, %s23
      %p177 = scmp.eq.s32.totalorder %s176, 0
      %s179 = sadd.s32 %s178, 1
      %s180 = scalar_select %p177, %s178, %s179
      %p183 = pneg %p177
      %p184 = scmp.eq.s32.totalorder %s16, 1
      %p185 = por %p183, %p184
      %p186 = scmp.ne.s32.totalorder %s178, %s181
      %p187 = scmp.eq.s32.totalorder %s16, 0
      %p188 = por %p186, %p187
      %p189 = scmp.ne.s32.totalorder %s178, %s181
      %p190 = scmp.eq.s32.totalorder %s21, 1
      %p191 = por %p189, %p190
      %p192 = scmp.ne.s32.totalorder %s181, %s182
      %p193 = scmp.eq.s32.totalorder %s21, 0
      %p194 = por %p192, %p193
      %p195 = scmp.ne.s32.totalorder %s181, %s182
      %p196 = scmp.eq.s32.totalorder %s22, 1
      %p197 = por %p195, %p196
      %p199 = scmp.ne.s32.totalorder %s182, %s198
      %p200 = scmp.eq.s32.totalorder %s22, 0
      %p201 = por %p199, %p200
      %p202 = scmp.le.s32.totalorder 1, %s16
      %p203 = scmp.lt.s32.totalorder %s16, 3
      %p204 = pnand %p202, %p203
      %p205 = pneg %p204
      // Predicated region
      $region9: #{tpu_custom_call.1} parent=5 // pred_check
        _
      $region10: #{tpu_custom_call.1} parent=5 // pred_check_branch
        %207 = sbr.rel (%p204) target = $region12
      $region11: #{tpu_custom_call.1} parent=5 // pred_region
        %s208 = ssub.s32 %s16, 1
        // Predicated region
        $region13: #{tpu_custom_call.1} parent=11 // pred_check
          %p209 = pneg %p63
        $region14: #{tpu_custom_call.1} parent=11 // pred_check_branch
          %211 = sbr.rel (%p209) target = $region16
        $region15: #{tpu_custom_call.1} parent=11 // pred_region
          _
        $region16: #{tpu_custom_call.1} parent=11 // pred_fallthru
          _
        // Predicated region
        $region17: #{tpu_custom_call.1} parent=11 // pred_check
          %p212 = pneg %p84
        $region18: #{tpu_custom_call.1} parent=11 // pred_check_branch
          %214 = sbr.rel (%p212) target = $region20
        $region19: #{tpu_custom_call.1} parent=11 // pred_region
          _
        $region20: #{tpu_custom_call.1} parent=11 // pred_fallthru
          _
        // Predicated region
        $region21: #{tpu_custom_call.1} parent=11 // pred_check
          %p215 = pneg %p105
        $region22: #{tpu_custom_call.1} parent=11 // pred_check_branch
          %217 = sbr.rel (%p215) target = $region24
        $region23: #{tpu_custom_call.1} parent=11 // pred_region
          _
        $region24: #{tpu_custom_call.1} parent=11 // pred_fallthru
          _
        // Predicated region
        $region25: #{tpu_custom_call.1} parent=11 // pred_check
          %p218 = pneg %p126
        $region26: #{tpu_custom_call.1} parent=11 // pred_check_branch
          %220 = sbr.rel (%p218) target = $region28
        $region27: #{tpu_custom_call.1} parent=11 // pred_region
          _
        $region28: #{tpu_custom_call.1} parent=11 // pred_fallthru
          _
        // Predicated region
        $region29: #{tpu_custom_call.1} parent=11 // pred_check
          %p221 = pneg %p147
        $region30: #{tpu_custom_call.1} parent=11 // pred_check_branch
          %223 = sbr.rel (%p221) target = $region32
        $region31: #{tpu_custom_call.1} parent=11 // pred_region
          _
        $region32: #{tpu_custom_call.1} parent=11 // pred_fallthru
          _
        // Predicated region
        $region33: #{tpu_custom_call.1} parent=11 // pred_check
          %p224 = pneg %p168
        $region34: #{tpu_custom_call.1} parent=11 // pred_check_branch
          %226 = sbr.rel (%p224) target = $region36
        $region35: #{tpu_custom_call.1} parent=11 // pred_region
          _
        $region36: #{tpu_custom_call.1} parent=11 // pred_fallthru
          _
      $region12: #{tpu_custom_call.1} parent=5 // pred_fallthru
        _
      %p227 = scmp.lt.s32.totalorder %s16, 2
      // Predicated region
      $region37: #{tpu_custom_call.1} parent=5 // pred_check
        %p228 = pneg %p227
      $region38: #{tpu_custom_call.1} parent=5 // pred_check_branch
        %230 = sbr.rel (%p228) target = $region40
      $region39: #{tpu_custom_call.1} parent=5 // pred_region
        // Predicated region
        $region41: #{tpu_custom_call.1} parent=39 // pred_check
          %p231 = pneg %p36
        $region42: #{tpu_custom_call.1} parent=39 // pred_check_branch
          %233 = sbr.rel (%p231) target = $region44
        $region43: #{tpu_custom_call.1} parent=39 // pred_region
          %s234 = sand.u32 %s26, 1
          %s235 = sand.u32 %s26, 1
          %s236 = smul.addr %s235, 128
          %s237 = scalar_lea.vmem [#allocation2], %s236
          %s238 = smul.u32 8, %s16
          %s239 = smul.addr %s238, 8
          %s240 = scalar_lea.vmem %s0, %s239
          // Predicated region
          $region45: #{tpu_custom_call.1} parent=43 // pred_check
            _
          $region46: #{tpu_custom_call.1} parent=43 // pred_check_branch
            %242 = sbr.rel (0) target = $region48
          $region47: #{tpu_custom_call.1} parent=43 // pred_region
            // Predicated region
            $region49: #{tpu_custom_call.1} parent=47 // pred_check
              _
            $region50: #{tpu_custom_call.1} parent=47 // pred_check_branch
              %244 = sbr.rel (0) target = $region52
            $region51: #{tpu_custom_call.1} parent=47 // pred_region
              loop: start=0, step=1, limit=1
              $region53: #{tpu_custom_call.1} parent=51 // loop_pre_header
                _
              $region54: #{tpu_custom_call.1} parent=51 // loop_header
                %s246 = sphi 0, %s250
                %p247 = scmp.ge.s32.totalorder %s246, 1
                %s251 = sphi %s240, %s240
                %s252 = sphi %s237, %s237
              $region55: #{tpu_custom_call.1} parent=51 // loop_header_branch
                %249 = sbr.rel (%p247) target = $region59
              $region56: #{tpu_custom_call.1} parent=51 // loop_body
                %v253 = vld [vmem:[%s251] sm:$0xff]
                %254 = vst [vmem:[%s252] sm:$0xff] %v253
                %v255 = vld [vmem:[%s251 + $0x8] sm:$0xff]
                %256 = vst [vmem:[%s252 + $0x8] sm:$0xff] %v255
                %v257 = vld [vmem:[%s251 + $0x10] sm:$0xff]
                %258 = vst [vmem:[%s252 + $0x10] sm:$0xff] %v257
                %v259 = vld [vmem:[%s251 + $0x18] sm:$0xff]
                %260 = vst [vmem:[%s252 + $0x18] sm:$0xff] %v259
                %v261 = vld [vmem:[%s251 + $0x20] sm:$0xff]
                %262 = vst [vmem:[%s252 + $0x20] sm:$0xff] %v261
                %v263 = vld [vmem:[%s251 + $0x28] sm:$0xff]
                %264 = vst [vmem:[%s252 + $0x28] sm:$0xff] %v263
                %v265 = vld [vmem:[%s251 + $0x30] sm:$0xff]
                %266 = vst [vmem:[%s252 + $0x30] sm:$0xff] %v265
                %v267 = vld [vmem:[%s251 + $0x38] sm:$0xff]
                %268 = vst [vmem:[%s252 + $0x38] sm:$0xff] %v267
                %v269 = vld [vmem:[%s251 + $0x80] sm:$0xff]
                %270 = vst [vmem:[%s252 + $0x40] sm:$0xff] %v269
                %v271 = vld [vmem:[%s251 + $0x88] sm:$0xff]
                %272 = vst [vmem:[%s252 + $0x48] sm:$0xff] %v271
                %v273 = vld [vmem:[%s251 + $0x90] sm:$0xff]
                %274 = vst [vmem:[%s252 + $0x50] sm:$0xff] %v273
                %v275 = vld [vmem:[%s251 + $0x98] sm:$0xff]
                %276 = vst [vmem:[%s252 + $0x58] sm:$0xff] %v275
                %v277 = vld [vmem:[%s251 + $0xa0] sm:$0xff]
                %278 = vst [vmem:[%s252 + $0x60] sm:$0xff] %v277
                %v279 = vld [vmem:[%s251 + $0xa8] sm:$0xff]
                %280 = vst [vmem:[%s252 + $0x68] sm:$0xff] %v279
                %v281 = vld [vmem:[%s251 + $0xb0] sm:$0xff]
                %282 = vst [vmem:[%s252 + $0x70] sm:$0xff] %v281
                %v283 = vld [vmem:[%s251 + $0xb8] sm:$0xff]
                %284 = vst [vmem:[%s252 + $0x78] sm:$0xff] %v283
              $region57: #{tpu_custom_call.1} parent=51 // loop_footer
                %s250 = sadd.s32 1, %s246
              $region58: #{tpu_custom_call.1} parent=51 // loop_footer_branch
                %245 = sbr.rel target = $region54
              $region59: #{tpu_custom_call.1} parent=51 // loop_exit
                _
            $region52: #{tpu_custom_call.1} parent=47 // pred_fallthru
              _
            // Predicated region
            $region60: #{tpu_custom_call.1} parent=47 // pred_check
              _
            $region61: #{tpu_custom_call.1} parent=47 // pred_check_branch
              %286 = sbr.rel target = $region63
            $region62: #{tpu_custom_call.1} parent=47 // pred_region
              _
            $region63: #{tpu_custom_call.1} parent=47 // pred_fallthru
              _
          $region48: #{tpu_custom_call.1} parent=43 // pred_fallthru
            _
          %287 = vnop
        $region44: #{tpu_custom_call.1} parent=39 // pred_fallthru
          _
      $region40: #{tpu_custom_call.1} parent=5 // pred_fallthru
        _
      %p288 = scmp.le.s32.totalorder 1, %s16
      %p289 = scmp.lt.s32.totalorder %s16, 3
      %p290 = pnand %p288, %p289
      %p291 = pneg %p290
      // Predicated region
      $region64: #{tpu_custom_call.1} parent=5 // pred_check
        _
      $region65: #{tpu_custom_call.1} parent=5 // pred_check_branch
        %293 = sbr.rel (%p290) target = $region67
      $region66: #{tpu_custom_call.1} parent=5 // pred_region
        %s294 = ssub.s32 %s16, 1
        %s295 = sand.u32 %s29, 1
        %s296 = sand.u32 %s29, 1
        %s297 = smul.addr %s296, 128
        %s298 = scalar_lea.vmem [#allocation2], %s297
        // Predicated region
        $region68: #{tpu_custom_call.1} parent=66 // pred_check
          %p299 = pneg %p42
        $region69: #{tpu_custom_call.1} parent=66 // pred_check_branch
          %301 = sbr.rel (%p299) target = $region71
        $region70: #{tpu_custom_call.1} parent=66 // pred_region
          _
        $region71: #{tpu_custom_call.1} parent=66 // pred_fallthru
          _
        %s302 = sand.u32 %s29, 1
        %s303 = sand.u32 %s29, 1
        %s304 = smul.addr %s303, 128
        %s305 = scalar_lea.vmem [#allocation2], %s304
        %p306 = pneg %p42
        %p307 = pneg %p39
        %p308 = pneg %p63
        %p309 = pneg %p60
        %p310 = pneg %p84
        %p311 = pneg %p81
        %p312 = pneg %p105
        %p313 = pneg %p102
        %p314 = pneg %p126
        %p315 = pneg %p123
        %p316 = pneg %p147
        %p317 = pneg %p144
        %p318 = pneg %p168
        %p319 = pneg %p165
        %p320 = pneg %p194
        %p321 = pneg %p191
        %s322 = sand.u32 %s181, 1
        %s323 = scalar_lea.sflag [#allocation4], %s322
        %s324 = sand.u32 %s181, 1
        %s325 = smul.addr %s324, 128
        %s326 = scalar_lea.vmem [#allocation3], %s325
        %s327 = smul.u32 8, %s21
        %s328 = smul.u32 8, %s21
        %v329 = vld [vmem:[%s298] sm:$0xff]
        %v330 = vld [vmem:[%s298 + $0x8] sm:$0xff]
        %v331 = vld [vmem:[%s298 + $0x10] sm:$0xff]
        %v332 = vld [vmem:[%s298 + $0x18] sm:$0xff]
        %v333 = vld [vmem:[%s298 + $0x20] sm:$0xff]
        %v334 = vld [vmem:[%s298 + $0x28] sm:$0xff]
        %v335 = vld [vmem:[%s298 + $0x30] sm:$0xff]
        %v336 = vld [vmem:[%s298 + $0x38] sm:$0xff]
        %v337 = vld [vmem:[%s298 + $0x40] sm:$0xff]
        %v338 = vld [vmem:[%s298 + $0x48] sm:$0xff]
        %v339 = vld [vmem:[%s298 + $0x50] sm:$0xff]
        %v340 = vld [vmem:[%s298 + $0x58] sm:$0xff]
        %v341 = vld [vmem:[%s298 + $0x60] sm:$0xff]
        %v342 = vld [vmem:[%s298 + $0x68] sm:$0xff]
        %v343 = vld [vmem:[%s298 + $0x70] sm:$0xff]
        %v344 = vld [vmem:[%s298 + $0x78] sm:$0xff]
        %v345 = vld [vmem:[%s4] sm:$0xff]
        %v346 = vld [vmem:[%s4 + $0x8] sm:$0xff]
        %v347 = vld [vmem:[%s4 + $0x10] sm:$0xff]
        %v348 = vld [vmem:[%s4 + $0x18] sm:$0xff]
        %v349 = vld [vmem:[%s4] sm:$0x1]
        %v350 = vld [vmem:[%s4 + $0x1] sm:$0x1]
        %v351 = vld [vmem:[%s5] sm:$0xff]
        %v352 = vld [vmem:[%s5 + $0x8] sm:$0xff]
        %v353 = vld [vmem:[%s5 + $0x10] sm:$0xff]
        %v354 = vld [vmem:[%s5 + $0x18] sm:$0xff]
        %v355 = vld [vmem:[%s5 + $0x20] sm:$0xff]
        %v356 = vld [vmem:[%s5 + $0x28] sm:$0xff]
        %v357 = vld [vmem:[%s5 + $0x30] sm:$0xff]
        %v358 = vld [vmem:[%s5 + $0x38] sm:$0xff]
        %v359 = vld [vmem:[%s5 + $0x40] sm:$0xff]
        %v360 = vld [vmem:[%s5 + $0x48] sm:$0xff]
        %v361 = vld [vmem:[%s5 + $0x50] sm:$0xff]
        %v362 = vld [vmem:[%s5 + $0x58] sm:$0xff]
        %v363 = vld [vmem:[%s5 + $0x60] sm:$0xff]
        %v364 = vld [vmem:[%s5 + $0x68] sm:$0xff]
        %v365 = vld [vmem:[%s5 + $0x70] sm:$0xff]
        %v366 = vld [vmem:[%s5 + $0x78] sm:$0xff]
        %v367 = vld [vmem:[%s5 + $0x80] sm:$0xff]
        %v368 = vld [vmem:[%s5 + $0x88] sm:$0xff]
        %v369 = vld [vmem:[%s5 + $0x90] sm:$0xff]
        %v370 = vld [vmem:[%s5 + $0x98] sm:$0xff]
        %v371 = vld [vmem:[%s5 + $0xa0] sm:$0xff]
        %v372 = vld [vmem:[%s5 + $0xa8] sm:$0xff]
        %v373 = vld [vmem:[%s5 + $0xb0] sm:$0xff]
        %v374 = vld [vmem:[%s5 + $0xb8] sm:$0xff]
        %v375 = vld [vmem:[%s5 + $0xc0] sm:$0xff]
        %v376 = vld [vmem:[%s5 + $0xc8] sm:$0xff]
        %v377 = vld [vmem:[%s5 + $0xd0] sm:$0xff]
        %v378 = vld [vmem:[%s5 + $0xd8] sm:$0xff]
        %v379 = vld [vmem:[%s5 + $0xe0] sm:$0xff]
        %v380 = vld [vmem:[%s5 + $0xe8] sm:$0xff]
        %v381 = vld [vmem:[%s5 + $0xf0] sm:$0xff]
        %v382 = vld [vmem:[%s5 + $0xf8] sm:$0xff]
        %v383 = vld [vmem:[%s5 + $0x100] sm:$0xff]
        %v384 = vld [vmem:[%s5 + $0x108] sm:$0xff]
        %v385 = vld [vmem:[%s5 + $0x110] sm:$0xff]
        %v386 = vld [vmem:[%s5 + $0x118] sm:$0xff]
        %v387 = vld [vmem:[%s5 + $0x120] sm:$0xff]
        %v388 = vld [vmem:[%s5 + $0x128] sm:$0xff]
        %v389 = vld [vmem:[%s5 + $0x130] sm:$0xff]
        %v390 = vld [vmem:[%s5 + $0x138] sm:$0xff]
        %v391 = vld [vmem:[%s5 + $0x140] sm:$0xff]
        %v392 = vld [vmem:[%s5 + $0x148] sm:$0xff]
        %v393 = vld [vmem:[%s5 + $0x150] sm:$0xff]
        %v394 = vld [vmem:[%s5 + $0x158] sm:$0xff]
        %v395 = vld [vmem:[%s5 + $0x160] sm:$0xff]
        %v396 = vld [vmem:[%s5 + $0x168] sm:$0xff]
        %v397 = vld [vmem:[%s5 + $0x170] sm:$0xff]
        %v398 = vld [vmem:[%s5 + $0x178] sm:$0xff]
        %v399 = vld [vmem:[%s5 + $0x180] sm:$0xff]
        %v400 = vld [vmem:[%s5 + $0x188] sm:$0xff]
        %v401 = vld [vmem:[%s5 + $0x190] sm:$0xff]
        %v402 = vld [vmem:[%s5 + $0x198] sm:$0xff]
        %v403 = vld [vmem:[%s5 + $0x1a0] sm:$0xff]
        %v404 = vld [vmem:[%s5 + $0x1a8] sm:$0xff]
        %v405 = vld [vmem:[%s5 + $0x1b0] sm:$0xff]
        %v406 = vld [vmem:[%s5 + $0x1b8] sm:$0xff]
        %v407 = vld [vmem:[%s5 + $0x1c0] sm:$0xff]
        %v408 = vld [vmem:[%s5 + $0x1c8] sm:$0xff]
        %v409 = vld [vmem:[%s5 + $0x1d0] sm:$0xff]
        %v410 = vld [vmem:[%s5 + $0x1d8] sm:$0xff]
        %v411 = vld [vmem:[%s5 + $0x1e0] sm:$0xff]
        %v412 = vld [vmem:[%s5 + $0x1e8] sm:$0xff]
        %v413 = vld [vmem:[%s5 + $0x1f0] sm:$0xff]
        %v414 = vld [vmem:[%s5 + $0x1f8] sm:$0xff]
        %v415 = vld [vmem:[%s5 + $0x200] sm:$0xff]
        %v416 = vld [vmem:[%s5 + $0x208] sm:$0xff]
        %v417 = vld [vmem:[%s5 + $0x210] sm:$0xff]
        %v418 = vld [vmem:[%s5 + $0x218] sm:$0xff]
        %v419 = vld [vmem:[%s5 + $0x220] sm:$0xff]
        %v420 = vld [vmem:[%s5 + $0x228] sm:$0xff]
        %v421 = vld [vmem:[%s5 + $0x230] sm:$0xff]
        %v422 = vld [vmem:[%s5 + $0x238] sm:$0xff]
        %v423 = vld [vmem:[%s5 + $0x240] sm:$0xff]
        %v424 = vld [vmem:[%s5 + $0x248] sm:$0xff]
        %v425 = vld [vmem:[%s5 + $0x250] sm:$0xff]
        %v426 = vld [vmem:[%s5 + $0x258] sm:$0xff]
        %v427 = vld [vmem:[%s5 + $0x260] sm:$0xff]
        %v428 = vld [vmem:[%s5 + $0x268] sm:$0xff]
        %v429 = vld [vmem:[%s5 + $0x270] sm:$0xff]
        %v430 = vld [vmem:[%s5 + $0x278] sm:$0xff]
        %v431 = vld [vmem:[%s5 + $0x280] sm:$0xff]
        %v432 = vld [vmem:[%s5 + $0x288] sm:$0xff]
        %v433 = vld [vmem:[%s5 + $0x290] sm:$0xff]
        %v434 = vld [vmem:[%s5 + $0x298] sm:$0xff]
        %v435 = vld [vmem:[%s5 + $0x2a0] sm:$0xff]
        %v436 = vld [vmem:[%s5 + $0x2a8] sm:$0xff]
        %v437 = vld [vmem:[%s5 + $0x2b0] sm:$0xff]
        %v438 = vld [vmem:[%s5 + $0x2b8] sm:$0xff]
        %v439 = vld [vmem:[%s5 + $0x2c0] sm:$0xff]
        %v440 = vld [vmem:[%s5 + $0x2c8] sm:$0xff]
        %v441 = vld [vmem:[%s5 + $0x2d0] sm:$0xff]
        %v442 = vld [vmem:[%s5 + $0x2d8] sm:$0xff]
        %v443 = vld [vmem:[%s5 + $0x2e0] sm:$0xff]
        %v444 = vld [vmem:[%s5 + $0x2e8] sm:$0xff]
        %v445 = vld [vmem:[%s5 + $0x2f0] sm:$0xff]
        %v446 = vld [vmem:[%s5 + $0x2f8] sm:$0xff]
        %v447 = vld [vmem:[%s5 + $0x300] sm:$0xff]
        %v448 = vld [vmem:[%s5 + $0x308] sm:$0xff]
        %v449 = vld [vmem:[%s5 + $0x310] sm:$0xff]
        %v450 = vld [vmem:[%s5 + $0x318] sm:$0xff]
        %v451 = vld [vmem:[%s5 + $0x320] sm:$0xff]
        %v452 = vld [vmem:[%s5 + $0x328] sm:$0xff]
        %v453 = vld [vmem:[%s5 + $0x330] sm:$0xff]
        %v454 = vld [vmem:[%s5 + $0x338] sm:$0xff]
        %v455 = vld [vmem:[%s5 + $0x340] sm:$0xff]
        %v456 = vld [vmem:[%s5 + $0x348] sm:$0xff]
        %v457 = vld [vmem:[%s5 + $0x350] sm:$0xff]
        %v458 = vld [vmem:[%s5 + $0x358] sm:$0xff]
        %v459 = vld [vmem:[%s5 + $0x360] sm:$0xff]
        %v460 = vld [vmem:[%s5 + $0x368] sm:$0xff]
        %v461 = vld [vmem:[%s5 + $0x370] sm:$0xff]
        %v462 = vld [vmem:[%s5 + $0x378] sm:$0xff]
        %v463 = vld [vmem:[%s5 + $0x380] sm:$0xff]
        %v464 = vld [vmem:[%s5 + $0x388] sm:$0xff]
        %v465 = vld [vmem:[%s5 + $0x390] sm:$0xff]
        %v466 = vld [vmem:[%s5 + $0x398] sm:$0xff]
        %v467 = vld [vmem:[%s5 + $0x3a0] sm:$0xff]
        %v468 = vld [vmem:[%s5 + $0x3a8] sm:$0xff]
        %v469 = vld [vmem:[%s5 + $0x3b0] sm:$0xff]
        %v470 = vld [vmem:[%s5 + $0x3b8] sm:$0xff]
        %v471 = vld [vmem:[%s5 + $0x3c0] sm:$0xff]
        %v472 = vld [vmem:[%s5 + $0x3c8] sm:$0xff]
        %v473 = vld [vmem:[%s5 + $0x3d0] sm:$0xff]
        %v474 = vld [vmem:[%s5 + $0x3d8] sm:$0xff]
        %v475 = vld [vmem:[%s5 + $0x3e0] sm:$0xff]
        %v476 = vld [vmem:[%s5 + $0x3e8] sm:$0xff]
        %v477 = vld [vmem:[%s5 + $0x3f0] sm:$0xff]
        %v478 = vld [vmem:[%s5 + $0x3f8] sm:$0xff]
        %v479 = vld [vmem:[%s6] sm:$0xff]
        %v480 = vld [vmem:[%s6 + $0x8] sm:$0xff]
        %v481 = vld [vmem:[%s6 + $0x10] sm:$0xff]
        %v482 = vld [vmem:[%s6 + $0x18] sm:$0xff]
        %v483 = vld [vmem:[%s6 + $0x20] sm:$0xff]
        %v484 = vld [vmem:[%s6 + $0x28] sm:$0xff]
        %v485 = vld [vmem:[%s6 + $0x30] sm:$0xff]
        %v486 = vld [vmem:[%s6 + $0x38] sm:$0xff]
        %v487 = vld [vmem:[%s1] sm:$0xff]
        %v488 = vld [vmem:[%s1 + $0x8] sm:$0xff]
        %v489 = vld [vmem:[%s1 + $0x10] sm:$0xff]
        %v490 = vld [vmem:[%s1 + $0x18] sm:$0xff]
        %492 = vset.pattern.permute.xlu0 0
        %493 = vperm.xlu0 %492, %v345
        %v494 = vpop.permute.xlu0 %493
        %497 = vset.pattern.permute.xlu0 0
        %498 = vperm.xlu0 %497, %v346
        %v499 = vpop.permute.xlu0 %498
        %502 = vset.pattern.permute.xlu0 0
        %503 = vperm.xlu0 %502, %v347
        %v504 = vpop.permute.xlu0 %503
        %507 = vset.pattern.permute.xlu0 0
        %508 = vperm.xlu0 %507, %v348
        %v509 = vpop.permute.xlu0 %508
        %vm511 = vcmask 130048
        %v513 = vsel %vm511, %v487, 0
        %v516 = vsel %vm511, %v488, 0
        %v519 = vsel %vm511, %v489, 0
        %v522 = vsel %vm511, %v490, 0
        %524 = vmatprep.subr.mxu0 0.0
        %525 = vmatpush1.msra.mxu0 0.0
        %526 = vmatprep.subr.mxu0 0.0
        %527 = vmatpush1.msra.mxu0 0.0
        %528 = vmatprep.subr.mxu0 0.0
        %529 = vmatpush1.msra.mxu0 0.0
        %530 = vmatprep.subr.mxu0 0.0
        %531 = vmatpush1.msra.mxu0 0.0
        %532 = vmatprep.subr.mxu0 0.0
        %533 = vmatpush1.msra.mxu0 0.0
        %534 = vmatprep.subr.mxu0 0.0
        %535 = vmatpush1.msra.mxu0 0.0
        %536 = vmatprep.subr.mxu0 0.0
        %537 = vmatpush1.msra.mxu0 0.0
        %538 = vmatprep.subr.mxu0 0.0
        %539 = vmatpush1.msra.mxu0 0.0
        %540 = vmatprep.subr.mxu0 0.0
        %541 = vmatpush1.msra.mxu0 0.0
        %542 = vmatprep.subr.mxu0 0.0
        %543 = vmatpush1.msra.mxu0 0.0
        %544 = vmatprep.subr.mxu0 0.0
        %545 = vmatpush1.msra.mxu0 0.0
        %546 = vmatprep.subr.mxu0 0.0
        %547 = vmatpush1.msra.mxu0 0.0
        %548 = vmatprep.subr.mxu0 0.0
        %549 = vmatpush1.msra.mxu0 0.0
        %550 = vmatprep.subr.mxu0 0.0
        %551 = vmatpush1.msra.mxu0 0.0
        %552 = vmatprep.subr.mxu0 %v338
        %553 = vmatpush1.msra.mxu0 %v337
        %554 = vmatprep.subr.mxu0 %v330
        %555 = vmatpush1.msra.mxu0 %v329
        %556 = vmatprep.subr.mxu0 0.0
        %557 = vmatpush2.msra.mxu0 0.0
        %558 = vmatprep.subr.mxu0 0.0
        %559 = vmatpush2.msra.mxu0 0.0
        %560 = vmatprep.subr.mxu0 0.0
        %561 = vmatpush2.msra.mxu0 0.0
        %562 = vmatprep.subr.mxu0 0.0
        %563 = vmatpush2.msra.mxu0 0.0
        %564 = vmatprep.subr.mxu0 0.0
        %565 = vmatpush2.msra.mxu0 0.0
        %566 = vmatprep.subr.mxu0 0.0
        %567 = vmatpush2.msra.mxu0 0.0
        %568 = vmatprep.subr.mxu0 0.0
        %569 = vmatpush2.msra.mxu0 0.0
        %570 = vmatprep.subr.mxu0 0.0
        %571 = vmatpush2.msra.mxu0 0.0
        %572 = vmatprep.subr.mxu0 0.0
        %573 = vmatpush2.msra.mxu0 0.0
        %574 = vmatprep.subr.mxu0 0.0
        %575 = vmatpush2.msra.mxu0 0.0
        %576 = vmatprep.subr.mxu0 0.0
        %577 = vmatpush2.msra.mxu0 0.0
        %578 = vmatprep.subr.mxu0 0.0
        %579 = vmatpush2.msra.mxu0 0.0
        %580 = vmatprep.subr.mxu0 0.0
        %581 = vmatpush2.msra.mxu0 0.0
        %582 = vmatprep.subr.mxu0 0.0
        %583 = vmatpush2.msra.mxu0 0.0
        %584 = vmatprep.subr.mxu0 0.0
        %585 = vmatpush2.msra.mxu0 0.0
        %586 = vmatprep.subr.mxu0 0.0
        %587 = vmatpush2.msra.mxu0 0.0
        %588 = vmatprep.mubr.f32.mxu0 0.0
        %589 = vmatmul.mubr.f32.gmra.mxu0 %v513
        %v590 = vpop.f32.mrf.mxu0
        %v591 = vadd.f32 %v494, %v590
        %v592 = vpop.f32.mrf.mxu0
        %v593 = vadd.f32 %v494, %v592
        %594 = vmatprep.mubr.f32.mxu0 0.0
        %595 = vmatmul.mubr.f32.gmra.mxu0 %v516
        %v596 = vpop.f32.mrf.mxu0
        %v597 = vadd.f32 %v499, %v596
        %v598 = vpop.f32.mrf.mxu0
        %v599 = vadd.f32 %v499, %v598
        %600 = vmatprep.mubr.f32.mxu0 0.0
        %601 = vmatmul.mubr.f32.gmra.mxu0 %v519
        %v602 = vpop.f32.mrf.mxu0
        %v603 = vadd.f32 %v504, %v602
        %v604 = vpop.f32.mrf.mxu0
        %v605 = vadd.f32 %v504, %v604
        %606 = vmatprep.mubr.f32.mxu0 0.0
        %607 = vmatmul.mubr.f32.gmra.mxu0 %v522
        %v608 = vpop.f32.mrf.mxu0
        %v609 = vadd.f32 %v509, %v608
        %v610 = vpop.f32.mrf.mxu0
        %v611 = vadd.f32 %v509, %v610
        %612 = vdwg.mxu0
        %613 = vmatprep.subr.mxu0 0.0
        %614 = vmatpush1.msra.mxu0 0.0
        %615 = vmatprep.subr.mxu0 0.0
        %616 = vmatpush1.msra.mxu0 0.0
        %617 = vmatprep.subr.mxu0 0.0
        %618 = vmatpush1.msra.mxu0 0.0
        %619 = vmatprep.subr.mxu0 0.0
        %620 = vmatpush1.msra.mxu0 0.0
        %621 = vmatprep.subr.mxu0 0.0
        %622 = vmatpush1.msra.mxu0 0.0
        %623 = vmatprep.subr.mxu0 0.0
        %624 = vmatpush1.msra.mxu0 0.0
        %625 = vmatprep.subr.mxu0 0.0
        %626 = vmatpush1.msra.mxu0 0.0
        %627 = vmatprep.subr.mxu0 0.0
        %628 = vmatpush1.msra.mxu0 0.0
        %629 = vmatprep.subr.mxu0 0.0
        %630 = vmatpush1.msra.mxu0 0.0
        %631 = vmatprep.subr.mxu0 0.0
        %632 = vmatpush1.msra.mxu0 0.0
        %633 = vmatprep.subr.mxu0 0.0
        %634 = vmatpush1.msra.mxu0 0.0
        %635 = vmatprep.subr.mxu0 0.0
        %636 = vmatpush1.msra.mxu0 0.0
        %637 = vmatprep.subr.mxu0 0.0
        %638 = vmatpush1.msra.mxu0 0.0
        %639 = vmatprep.subr.mxu0 0.0
        %640 = vmatpush1.msra.mxu0 0.0
        %641 = vmatprep.subr.mxu0 %v340
        %642 = vmatpush1.msra.mxu0 %v339
        %643 = vmatprep.subr.mxu0 %v332
        %644 = vmatpush1.msra.mxu0 %v331
        %645 = vmatprep.subr.mxu0 0.0
        %646 = vmatpush2.msra.mxu0 0.0
        %647 = vmatprep.subr.mxu0 0.0
        %648 = vmatpush2.msra.mxu0 0.0
        %649 = vmatprep.subr.mxu0 0.0
        %650 = vmatpush2.msra.mxu0 0.0
        %651 = vmatprep.subr.mxu0 0.0
        %652 = vmatpush2.msra.mxu0 0.0
        %653 = vmatprep.subr.mxu0 0.0
        %654 = vmatpush2.msra.mxu0 0.0
        %655 = vmatprep.subr.mxu0 0.0
        %656 = vmatpush2.msra.mxu0 0.0
        %657 = vmatprep.subr.mxu0 0.0
        %658 = vmatpush2.msra.mxu0 0.0
        %659 = vmatprep.subr.mxu0 0.0
        %660 = vmatpush2.msra.mxu0 0.0
        %661 = vmatprep.subr.mxu0 0.0
        %662 = vmatpush2.msra.mxu0 0.0
        %663 = vmatprep.subr.mxu0 0.0
        %664 = vmatpush2.msra.mxu0 0.0
        %665 = vmatprep.subr.mxu0 0.0
        %666 = vmatpush2.msra.mxu0 0.0
        %667 = vmatprep.subr.mxu0 0.0
        %668 = vmatpush2.msra.mxu0 0.0
        %669 = vmatprep.subr.mxu0 0.0
        %670 = vmatpush2.msra.mxu0 0.0
        %671 = vmatprep.subr.mxu0 0.0
        %672 = vmatpush2.msra.mxu0 0.0
        %673 = vmatprep.subr.mxu0 0.0
        %674 = vmatpush2.msra.mxu0 0.0
        %675 = vmatprep.subr.mxu0 0.0
        %676 = vmatpush2.msra.mxu0 0.0
        %677 = vmatprep.mubr.f32.mxu0 0.0
        %678 = vmatmul.mubr.f32.gmra.mxu0 %v513
        %v679 = vpop.f32.mrf.mxu0
        %v680 = vadd.f32 %v494, %v679
        %v681 = vpop.f32.mrf.mxu0
        %v682 = vadd.f32 %v494, %v681
        %683 = vmatprep.mubr.f32.mxu0 0.0
        %684 = vmatmul.mubr.f32.gmra.mxu0 %v516
        %v685 = vpop.f32.mrf.mxu0
        %v686 = vadd.f32 %v499, %v685
        %v687 = vpop.f32.mrf.mxu0
        %v688 = vadd.f32 %v499, %v687
        %689 = vmatprep.mubr.f32.mxu0 0.0
        %690 = vmatmul.mubr.f32.gmra.mxu0 %v519
        %v691 = vpop.f32.mrf.mxu0
        %v692 = vadd.f32 %v504, %v691
        %v693 = vpop.f32.mrf.mxu0
        %v694 = vadd.f32 %v504, %v693
        %695 = vmatprep.mubr.f32.mxu0 0.0
        %696 = vmatmul.mubr.f32.gmra.mxu0 %v522
        %v697 = vpop.f32.mrf.mxu0
        %v698 = vadd.f32 %v509, %v697
        %v699 = vpop.f32.mrf.mxu0
        %v700 = vadd.f32 %v509, %v699
        %701 = vdwg.mxu0
        %702 = vmatprep.subr.mxu0 0.0
        %703 = vmatpush1.msra.mxu0 0.0
        %704 = vmatprep.subr.mxu0 0.0
        %705 = vmatpush1.msra.mxu0 0.0
        %706 = vmatprep.subr.mxu0 0.0
        %707 = vmatpush1.msra.mxu0 0.0
        %708 = vmatprep.subr.mxu0 0.0
        %709 = vmatpush1.msra.mxu0 0.0
        %710 = vmatprep.subr.mxu0 0.0
        %711 = vmatpush1.msra.mxu0 0.0
        %712 = vmatprep.subr.mxu0 0.0
        %713 = vmatpush1.msra.mxu0 0.0
        %714 = vmatprep.subr.mxu0 0.0
        %715 = vmatpush1.msra.mxu0 0.0
        %716 = vmatprep.subr.mxu0 0.0
        %717 = vmatpush1.msra.mxu0 0.0
        %718 = vmatprep.subr.mxu0 0.0
        %719 = vmatpush1.msra.mxu0 0.0
        %720 = vmatprep.subr.mxu0 0.0
        %721 = vmatpush1.msra.mxu0 0.0
        %722 = vmatprep.subr.mxu0 0.0
        %723 = vmatpush1.msra.mxu0 0.0
        %724 = vmatprep.subr.mxu0 0.0
        %725 = vmatpush1.msra.mxu0 0.0
        %726 = vmatprep.subr.mxu0 0.0
        %727 = vmatpush1.msra.mxu0 0.0
        %728 = vmatprep.subr.mxu0 0.0
        %729 = vmatpush1.msra.mxu0 0.0
        %730 = vmatprep.subr.mxu0 %v342
        %731 = vmatpush1.msra.mxu0 %v341
        %732 = vmatprep.subr.mxu0 %v334
        %733 = vmatpush1.msra.mxu0 %v333
        %734 = vmatprep.subr.mxu0 0.0
        %735 = vmatpush2.msra.mxu0 0.0
        %736 = vmatprep.subr.mxu0 0.0
        %737 = vmatpush2.msra.mxu0 0.0
        %738 = vmatprep.subr.mxu0 0.0
        %739 = vmatpush2.msra.mxu0 0.0
        %740 = vmatprep.subr.mxu0 0.0
        %741 = vmatpush2.msra.mxu0 0.0
        %742 = vmatprep.subr.mxu0 0.0
        %743 = vmatpush2.msra.mxu0 0.0
        %744 = vmatprep.subr.mxu0 0.0
        %745 = vmatpush2.msra.mxu0 0.0
        %746 = vmatprep.subr.mxu0 0.0
        %747 = vmatpush2.msra.mxu0 0.0
        %748 = vmatprep.subr.mxu0 0.0
        %749 = vmatpush2.msra.mxu0 0.0
        %750 = vmatprep.subr.mxu0 0.0
        %751 = vmatpush2.msra.mxu0 0.0
        %752 = vmatprep.subr.mxu0 0.0
        %753 = vmatpush2.msra.mxu0 0.0
        %754 = vmatprep.subr.mxu0 0.0
        %755 = vmatpush2.msra.mxu0 0.0
        %756 = vmatprep.subr.mxu0 0.0
        %757 = vmatpush2.msra.mxu0 0.0
        %758 = vmatprep.subr.mxu0 0.0
        %759 = vmatpush2.msra.mxu0 0.0
        %760 = vmatprep.subr.mxu0 0.0
        %761 = vmatpush2.msra.mxu0 0.0
        %762 = vmatprep.subr.mxu0 0.0
        %763 = vmatpush2.msra.mxu0 0.0
        %764 = vmatprep.subr.mxu0 0.0
        %765 = vmatpush2.msra.mxu0 0.0
        %766 = vmatprep.mubr.f32.mxu0 0.0
        %767 = vmatmul.mubr.f32.gmra.mxu0 %v513
        %v768 = vpop.f32.mrf.mxu0
        %v769 = vadd.f32 %v494, %v768
        %v770 = vpop.f32.mrf.mxu0
        %v771 = vadd.f32 %v494, %v770
        %772 = vmatprep.mubr.f32.mxu0 0.0
        %773 = vmatmul.mubr.f32.gmra.mxu0 %v516
        %v774 = vpop.f32.mrf.mxu0
        %v775 = vadd.f32 %v499, %v774
        %v776 = vpop.f32.mrf.mxu0
        %v777 = vadd.f32 %v499, %v776
        %778 = vmatprep.mubr.f32.mxu0 0.0
        %779 = vmatmul.mubr.f32.gmra.mxu0 %v519
        %v780 = vpop.f32.mrf.mxu0
        %v781 = vadd.f32 %v504, %v780
        %v782 = vpop.f32.mrf.mxu0
        %v783 = vadd.f32 %v504, %v782
        %784 = vmatprep.mubr.f32.mxu0 0.0
        %785 = vmatmul.mubr.f32.gmra.mxu0 %v522
        %v786 = vpop.f32.mrf.mxu0
        %v787 = vadd.f32 %v509, %v786
        %v788 = vpop.f32.mrf.mxu0
        %v789 = vadd.f32 %v509, %v788
        %790 = vdwg.mxu0
        %791 = vmatprep.subr.mxu0 0.0
        %792 = vmatpush1.msra.mxu0 0.0
        %793 = vmatprep.subr.mxu0 0.0
        %794 = vmatpush1.msra.mxu0 0.0
        %795 = vmatprep.subr.mxu0 0.0
        %796 = vmatpush1.msra.mxu0 0.0
        %797 = vmatprep.subr.mxu0 0.0
        %798 = vmatpush1.msra.mxu0 0.0
        %799 = vmatprep.subr.mxu0 0.0
        %800 = vmatpush1.msra.mxu0 0.0
        %801 = vmatprep.subr.mxu0 0.0
        %802 = vmatpush1.msra.mxu0 0.0
        %803 = vmatprep.subr.mxu0 0.0
        %804 = vmatpush1.msra.mxu0 0.0
        %805 = vmatprep.subr.mxu0 0.0
        %806 = vmatpush1.msra.mxu0 0.0
        %807 = vmatprep.subr.mxu0 0.0
        %808 = vmatpush1.msra.mxu0 0.0
        %809 = vmatprep.subr.mxu0 0.0
        %810 = vmatpush1.msra.mxu0 0.0
        %811 = vmatprep.subr.mxu0 0.0
        %812 = vmatpush1.msra.mxu0 0.0
        %813 = vmatprep.subr.mxu0 0.0
        %814 = vmatpush1.msra.mxu0 0.0
        %815 = vmatprep.subr.mxu0 0.0
        %816 = vmatpush1.msra.mxu0 0.0
        %817 = vmatprep.subr.mxu0 0.0
        %818 = vmatpush1.msra.mxu0 0.0
        %819 = vmatprep.subr.mxu0 %v344
        %820 = vmatpush1.msra.mxu0 %v343
        %821 = vmatprep.subr.mxu0 %v336
        %822 = vmatpush1.msra.mxu0 %v335
        %823 = vmatprep.subr.mxu0 0.0
        %824 = vmatpush2.msra.mxu0 0.0
        %825 = vmatprep.subr.mxu0 0.0
        %826 = vmatpush2.msra.mxu0 0.0
        %827 = vmatprep.subr.mxu0 0.0
        %828 = vmatpush2.msra.mxu0 0.0
        %829 = vmatprep.subr.mxu0 0.0
        %830 = vmatpush2.msra.mxu0 0.0
        %831 = vmatprep.subr.mxu0 0.0
        %832 = vmatpush2.msra.mxu0 0.0
        %833 = vmatprep.subr.mxu0 0.0
        %834 = vmatpush2.msra.mxu0 0.0
        %835 = vmatprep.subr.mxu0 0.0
        %836 = vmatpush2.msra.mxu0 0.0
        %837 = vmatprep.subr.mxu0 0.0
        %838 = vmatpush2.msra.mxu0 0.0
        %839 = vmatprep.subr.mxu0 0.0
        %840 = vmatpush2.msra.mxu0 0.0
        %841 = vmatprep.subr.mxu0 0.0
        %842 = vmatpush2.msra.mxu0 0.0
        %843 = vmatprep.subr.mxu0 0.0
        %844 = vmatpush2.msra.mxu0 0.0
        %845 = vmatprep.subr.mxu0 0.0
        %846 = vmatpush2.msra.mxu0 0.0
        %847 = vmatprep.subr.mxu0 0.0
        %848 = vmatpush2.msra.mxu0 0.0
        %849 = vmatprep.subr.mxu0 0.0
        %850 = vmatpush2.msra.mxu0 0.0
        %851 = vmatprep.subr.mxu0 0.0
        %852 = vmatpush2.msra.mxu0 0.0
        %853 = vmatprep.subr.mxu0 0.0
        %854 = vmatpush2.msra.mxu0 0.0
        %855 = vmatprep.mubr.f32.mxu0 0.0
        %856 = vmatmul.mubr.f32.gmra.mxu0 %v513
        %v857 = vpop.f32.mrf.mxu0
        %v858 = vadd.f32 %v494, %v857
        %v859 = vpop.f32.mrf.mxu0
        %v860 = vadd.f32 %v494, %v859
        %861 = vmatprep.mubr.f32.mxu0 0.0
        %862 = vmatmul.mubr.f32.gmra.mxu0 %v516
        %v863 = vpop.f32.mrf.mxu0
        %v864 = vadd.f32 %v499, %v863
        %v865 = vpop.f32.mrf.mxu0
        %v866 = vadd.f32 %v499, %v865
        %867 = vmatprep.mubr.f32.mxu0 0.0
        %868 = vmatmul.mubr.f32.gmra.mxu0 %v519
        %v869 = vpop.f32.mrf.mxu0
        %v870 = vadd.f32 %v504, %v869
        %v871 = vpop.f32.mrf.mxu0
        %v872 = vadd.f32 %v504, %v871
        %873 = vmatprep.mubr.f32.mxu0 0.0
        %874 = vmatmul.mubr.f32.gmra.mxu0 %v522
        %v875 = vpop.f32.mrf.mxu0
        %v876 = vadd.f32 %v509, %v875
        %v877 = vpop.f32.mrf.mxu0
        %v878 = vadd.f32 %v509, %v877
        %879 = vdwg.mxu0
        %vm880 = vcmp.gt.f32.partialorder %v591, 0.0
        %vm881 = vcmp.gt.f32.partialorder %v593, 0.0
        %vm882 = vcmp.gt.f32.partialorder %v680, 0.0
        %vm883 = vcmp.gt.f32.partialorder %v682, 0.0
        %vm884 = vcmp.gt.f32.partialorder %v769, 0.0
        %vm885 = vcmp.gt.f32.partialorder %v771, 0.0
        %vm886 = vcmp.gt.f32.partialorder %v858, 0.0
        %vm887 = vcmp.gt.f32.partialorder %v860, 0.0
        %vm888 = vcmp.gt.f32.partialorder %v597, 0.0
        %vm889 = vcmp.gt.f32.partialorder %v599, 0.0
        %vm890 = vcmp.gt.f32.partialorder %v686, 0.0
        %vm891 = vcmp.gt.f32.partialorder %v688, 0.0
        %vm892 = vcmp.gt.f32.partialorder %v775, 0.0
        %vm893 = vcmp.gt.f32.partialorder %v777, 0.0
        %vm894 = vcmp.gt.f32.partialorder %v864, 0.0
        %vm895 = vcmp.gt.f32.partialorder %v866, 0.0
        %vm896 = vcmp.gt.f32.partialorder %v603, 0.0
        %vm897 = vcmp.gt.f32.partialorder %v605, 0.0
        %vm898 = vcmp.gt.f32.partialorder %v692, 0.0
        %vm899 = vcmp.gt.f32.partialorder %v694, 0.0
        %vm900 = vcmp.gt.f32.partialorder %v781, 0.0
        %vm901 = vcmp.gt.f32.partialorder %v783, 0.0
        %vm902 = vcmp.gt.f32.partialorder %v870, 0.0
        %vm903 = vcmp.gt.f32.partialorder %v872, 0.0
        %vm904 = vcmp.gt.f32.partialorder %v609, 0.0
        %vm905 = vcmp.gt.f32.partialorder %v611, 0.0
        %vm906 = vcmp.gt.f32.partialorder %v698, 0.0
        %vm907 = vcmp.gt.f32.partialorder %v700, 0.0
        %vm908 = vcmp.gt.f32.partialorder %v787, 0.0
        %vm909 = vcmp.gt.f32.partialorder %v789, 0.0
        %vm910 = vcmp.gt.f32.partialorder %v876, 0.0
        %vm911 = vcmp.gt.f32.partialorder %v878, 0.0
        %913 = vrot.lane.b32.xlu0 %v349, 121
        %v914 = vpop.permute.xlu0 %913
        %s915 = vtos %v914
        %v916 = vstv %s915
        %v918 = vmul.f32 %v916, %v591
        %v919 = vmul.f32 %v916, %v593
        %v920 = vmul.f32 %v916, %v680
        %v921 = vmul.f32 %v916, %v682
        %v922 = vmul.f32 %v916, %v769
        %v923 = vmul.f32 %v916, %v771
        %v924 = vmul.f32 %v916, %v858
        %v925 = vmul.f32 %v916, %v860
        %v926 = vmul.f32 %v916, %v597
        %v927 = vmul.f32 %v916, %v599
        %v928 = vmul.f32 %v916, %v686
        %v929 = vmul.f32 %v916, %v688
        %v930 = vmul.f32 %v916, %v775
        %v931 = vmul.f32 %v916, %v777
        %v932 = vmul.f32 %v916, %v864
        %v933 = vmul.f32 %v916, %v866
        %v934 = vmul.f32 %v916, %v603
        %v935 = vmul.f32 %v916, %v605
        %v936 = vmul.f32 %v916, %v692
        %v937 = vmul.f32 %v916, %v694
        %v938 = vmul.f32 %v916, %v781
        %v939 = vmul.f32 %v916, %v783
        %v940 = vmul.f32 %v916, %v870
        %v941 = vmul.f32 %v916, %v872
        %v942 = vmul.f32 %v916, %v609
        %v943 = vmul.f32 %v916, %v611
        %v944 = vmul.f32 %v916, %v698
        %v945 = vmul.f32 %v916, %v700
        %v946 = vmul.f32 %v916, %v787
        %v947 = vmul.f32 %v916, %v789
        %v948 = vmul.f32 %v916, %v876
        %v949 = vmul.f32 %v916, %v878
        %v950 = vsel %vm880, %v591, %v918
        %v951 = vsel %vm881, %v593, %v919
        %v952 = vsel %vm882, %v680, %v920
        %v953 = vsel %vm883, %v682, %v921
        %v954 = vsel %vm884, %v769, %v922
        %v955 = vsel %vm885, %v771, %v923
        %v956 = vsel %vm886, %v858, %v924
        %v957 = vsel %vm887, %v860, %v925
        %v958 = vsel %vm888, %v597, %v926
        %v959 = vsel %vm889, %v599, %v927
        %v960 = vsel %vm890, %v686, %v928
        %v961 = vsel %vm891, %v688, %v929
        %v962 = vsel %vm892, %v775, %v930
        %v963 = vsel %vm893, %v777, %v931
        %v964 = vsel %vm894, %v864, %v932
        %v965 = vsel %vm895, %v866, %v933
        %v966 = vsel %vm896, %v603, %v934
        %v967 = vsel %vm897, %v605, %v935
        %v968 = vsel %vm898, %v692, %v936
        %v969 = vsel %vm899, %v694, %v937
        %v970 = vsel %vm900, %v781, %v938
        %v971 = vsel %vm901, %v783, %v939
        %v972 = vsel %vm902, %v870, %v940
        %v973 = vsel %vm903, %v872, %v941
        %v974 = vsel %vm904, %v609, %v942
        %v975 = vsel %vm905, %v611, %v943
        %v976 = vsel %vm906, %v698, %v944
        %v977 = vsel %vm907, %v700, %v945
        %v978 = vsel %vm908, %v787, %v946
        %v979 = vsel %vm909, %v789, %v947
        %v980 = vsel %vm910, %v876, %v948
        %v981 = vsel %vm911, %v878, %v949
        %982 = vmatprep.subr.mxu0 0.0
        %983 = vmatpush1.msra.mxu0 %v366
        %984 = vmatprep.subr.mxu0 0.0
        %985 = vmatpush1.msra.mxu0 %v365
        %986 = vmatprep.subr.mxu0 0.0
        %987 = vmatpush1.msra.mxu0 %v364
        %988 = vmatprep.subr.mxu0 0.0
        %989 = vmatpush1.msra.mxu0 %v363
        %990 = vmatprep.subr.mxu0 0.0
        %991 = vmatpush1.msra.mxu0 %v362
        %992 = vmatprep.subr.mxu0 0.0
        %993 = vmatpush1.msra.mxu0 %v361
        %994 = vmatprep.subr.mxu0 0.0
        %995 = vmatpush1.msra.mxu0 %v360
        %996 = vmatprep.subr.mxu0 0.0
        %997 = vmatpush1.msra.mxu0 %v359
        %998 = vmatprep.subr.mxu0 0.0
        %999 = vmatpush1.msra.mxu0 %v358
        %1000 = vmatprep.subr.mxu0 0.0
        %1001 = vmatpush1.msra.mxu0 %v357
        %1002 = vmatprep.subr.mxu0 0.0
        %1003 = vmatpush1.msra.mxu0 %v356
        %1004 = vmatprep.subr.mxu0 0.0
        %1005 = vmatpush1.msra.mxu0 %v355
        %1006 = vmatprep.subr.mxu0 0.0
        %1007 = vmatpush1.msra.mxu0 %v354
        %1008 = vmatprep.subr.mxu0 0.0
        %1009 = vmatpush1.msra.mxu0 %v353
        %1010 = vmatprep.subr.mxu0 0.0
        %1011 = vmatpush1.msra.mxu0 %v352
        %1012 = vmatprep.subr.mxu0 0.0
        %1013 = vmatpush1.msra.mxu0 %v351
        %1014 = vmatprep.subr.mxu0 0.0
        %1015 = vmatpush2.msra.mxu0 %v382
        %1016 = vmatprep.subr.mxu0 0.0
        %1017 = vmatpush2.msra.mxu0 %v381
        %1018 = vmatprep.subr.mxu0 0.0
        %1019 = vmatpush2.msra.mxu0 %v380
        %1020 = vmatprep.subr.mxu0 0.0
        %1021 = vmatpush2.msra.mxu0 %v379
        %1022 = vmatprep.subr.mxu0 0.0
        %1023 = vmatpush2.msra.mxu0 %v378
        %1024 = vmatprep.subr.mxu0 0.0
        %1025 = vmatpush2.msra.mxu0 %v377
        %1026 = vmatprep.subr.mxu0 0.0
        %1027 = vmatpush2.msra.mxu0 %v376
        %1028 = vmatprep.subr.mxu0 0.0
        %1029 = vmatpush2.msra.mxu0 %v375
        %1030 = vmatprep.subr.mxu0 0.0
        %1031 = vmatpush2.msra.mxu0 %v374
        %1032 = vmatprep.subr.mxu0 0.0
        %1033 = vmatpush2.msra.mxu0 %v373
        %1034 = vmatprep.subr.mxu0 0.0
        %1035 = vmatpush2.msra.mxu0 %v372
        %1036 = vmatprep.subr.mxu0 0.0
        %1037 = vmatpush2.msra.mxu0 %v371
        %1038 = vmatprep.subr.mxu0 0.0
        %1039 = vmatpush2.msra.mxu0 %v370
        %1040 = vmatprep.subr.mxu0 0.0
        %1041 = vmatpush2.msra.mxu0 %v369
        %1042 = vmatprep.subr.mxu0 0.0
        %1043 = vmatpush2.msra.mxu0 %v368
        %1044 = vmatprep.subr.mxu0 0.0
        %1045 = vmatpush2.msra.mxu0 %v367
        %1046 = vmatprep.mubr.f32.mxu0 %v951
        %1047 = vmatmul.mubr.f32.gmra.mxu0 %v950
        %v1048 = vpop.f32.mrf.mxu0
        %v1049 = vadd.f32 0.0, %v1048
        %v1050 = vpop.f32.mrf.mxu0
        %1051 = vmatprep.mubr.f32.mxu0 %v959
        %1052 = vmatmul.mubr.f32.gmra.mxu0 %v958
        %v1053 = vpop.f32.mrf.mxu0
        %v1054 = vadd.f32 0.0, %v1053
        %v1055 = vpop.f32.mrf.mxu0
        %1056 = vmatprep.mubr.f32.mxu0 %v967
        %1057 = vmatmul.mubr.f32.gmra.mxu0 %v966
        %v1058 = vpop.f32.mrf.mxu0
        %v1059 = vadd.f32 0.0, %v1058
        %v1060 = vpop.f32.mrf.mxu0
        %1061 = vmatprep.mubr.f32.mxu0 %v975
        %1062 = vmatmul.mubr.f32.gmra.mxu0 %v974
        %v1063 = vpop.f32.mrf.mxu0
        %v1064 = vadd.f32 0.0, %v1063
        %v1065 = vpop.f32.mrf.mxu0
        %1066 = vdwg.mxu0
        %1067 = vmatprep.subr.mxu0 0.0
        %1068 = vmatpush1.msra.mxu0 %v398
        %1069 = vmatprep.subr.mxu0 0.0
        %1070 = vmatpush1.msra.mxu0 %v397
        %1071 = vmatprep.subr.mxu0 0.0
        %1072 = vmatpush1.msra.mxu0 %v396
        %1073 = vmatprep.subr.mxu0 0.0
        %1074 = vmatpush1.msra.mxu0 %v395
        %1075 = vmatprep.subr.mxu0 0.0
        %1076 = vmatpush1.msra.mxu0 %v394
        %1077 = vmatprep.subr.mxu0 0.0
        %1078 = vmatpush1.msra.mxu0 %v393
        %1079 = vmatprep.subr.mxu0 0.0
        %1080 = vmatpush1.msra.mxu0 %v392
        %1081 = vmatprep.subr.mxu0 0.0
        %1082 = vmatpush1.msra.mxu0 %v391
        %1083 = vmatprep.subr.mxu0 0.0
        %1084 = vmatpush1.msra.mxu0 %v390
        %1085 = vmatprep.subr.mxu0 0.0
        %1086 = vmatpush1.msra.mxu0 %v389
        %1087 = vmatprep.subr.mxu0 0.0
        %1088 = vmatpush1.msra.mxu0 %v388
        %1089 = vmatprep.subr.mxu0 0.0
        %1090 = vmatpush1.msra.mxu0 %v387
        %1091 = vmatprep.subr.mxu0 0.0
        %1092 = vmatpush1.msra.mxu0 %v386
        %1093 = vmatprep.subr.mxu0 0.0
        %1094 = vmatpush1.msra.mxu0 %v385
        %1095 = vmatprep.subr.mxu0 0.0
        %1096 = vmatpush1.msra.mxu0 %v384
        %1097 = vmatprep.subr.mxu0 0.0
        %1098 = vmatpush1.msra.mxu0 %v383
        %1099 = vmatprep.subr.mxu0 0.0
        %1100 = vmatpush2.msra.mxu0 %v414
        %1101 = vmatprep.subr.mxu0 0.0
        %1102 = vmatpush2.msra.mxu0 %v413
        %1103 = vmatprep.subr.mxu0 0.0
        %1104 = vmatpush2.msra.mxu0 %v412
        %1105 = vmatprep.subr.mxu0 0.0
        %1106 = vmatpush2.msra.mxu0 %v411
        %1107 = vmatprep.subr.mxu0 0.0
        %1108 = vmatpush2.msra.mxu0 %v410
        %1109 = vmatprep.subr.mxu0 0.0
        %1110 = vmatpush2.msra.mxu0 %v409
        %1111 = vmatprep.subr.mxu0 0.0
        %1112 = vmatpush2.msra.mxu0 %v408
        %1113 = vmatprep.subr.mxu0 0.0
        %1114 = vmatpush2.msra.mxu0 %v407
        %1115 = vmatprep.subr.mxu0 0.0
        %1116 = vmatpush2.msra.mxu0 %v406
        %1117 = vmatprep.subr.mxu0 0.0
        %1118 = vmatpush2.msra.mxu0 %v405
        %1119 = vmatprep.subr.mxu0 0.0
        %1120 = vmatpush2.msra.mxu0 %v404
        %1121 = vmatprep.subr.mxu0 0.0
        %1122 = vmatpush2.msra.mxu0 %v403
        %1123 = vmatprep.subr.mxu0 0.0
        %1124 = vmatpush2.msra.mxu0 %v402
        %1125 = vmatprep.subr.mxu0 0.0
        %1126 = vmatpush2.msra.mxu0 %v401
        %1127 = vmatprep.subr.mxu0 0.0
        %1128 = vmatpush2.msra.mxu0 %v400
        %1129 = vmatprep.subr.mxu0 0.0
        %1130 = vmatpush2.msra.mxu0 %v399
        %1131 = vmatprep.mubr.f32.mxu0 %v953
        %1132 = vmatmul.mubr.f32.gmra.mxu0 %v952
        %v1133 = vpop.f32.mrf.mxu0
        %v1134 = vadd.f32 %v1049, %v1133
        %v1135 = vpop.f32.mrf.mxu0
        %1136 = vmatprep.mubr.f32.mxu0 %v961
        %1137 = vmatmul.mubr.f32.gmra.mxu0 %v960
        %v1138 = vpop.f32.mrf.mxu0
        %v1139 = vadd.f32 %v1054, %v1138
        %v1140 = vpop.f32.mrf.mxu0
        %1141 = vmatprep.mubr.f32.mxu0 %v969
        %1142 = vmatmul.mubr.f32.gmra.mxu0 %v968
        %v1143 = vpop.f32.mrf.mxu0
        %v1144 = vadd.f32 %v1059, %v1143
        %v1145 = vpop.f32.mrf.mxu0
        %1146 = vmatprep.mubr.f32.mxu0 %v977
        %1147 = vmatmul.mubr.f32.gmra.mxu0 %v976
        %v1148 = vpop.f32.mrf.mxu0
        %v1149 = vadd.f32 %v1064, %v1148
        %v1150 = vpop.f32.mrf.mxu0
        %1151 = vdwg.mxu0
        %1152 = vmatprep.subr.mxu0 0.0
        %1153 = vmatpush1.msra.mxu0 %v430
        %1154 = vmatprep.subr.mxu0 0.0
        %1155 = vmatpush1.msra.mxu0 %v429
        %1156 = vmatprep.subr.mxu0 0.0
        %1157 = vmatpush1.msra.mxu0 %v428
        %1158 = vmatprep.subr.mxu0 0.0
        %1159 = vmatpush1.msra.mxu0 %v427
        %1160 = vmatprep.subr.mxu0 0.0
        %1161 = vmatpush1.msra.mxu0 %v426
        %1162 = vmatprep.subr.mxu0 0.0
        %1163 = vmatpush1.msra.mxu0 %v425
        %1164 = vmatprep.subr.mxu0 0.0
        %1165 = vmatpush1.msra.mxu0 %v424
        %1166 = vmatprep.subr.mxu0 0.0
        %1167 = vmatpush1.msra.mxu0 %v423
        %1168 = vmatprep.subr.mxu0 0.0
        %1169 = vmatpush1.msra.mxu0 %v422
        %1170 = vmatprep.subr.mxu0 0.0
        %1171 = vmatpush1.msra.mxu0 %v421
        %1172 = vmatprep.subr.mxu0 0.0
        %1173 = vmatpush1.msra.mxu0 %v420
        %1174 = vmatprep.subr.mxu0 0.0
        %1175 = vmatpush1.msra.mxu0 %v419
        %1176 = vmatprep.subr.mxu0 0.0
        %1177 = vmatpush1.msra.mxu0 %v418
        %1178 = vmatprep.subr.mxu0 0.0
        %1179 = vmatpush1.msra.mxu0 %v417
        %1180 = vmatprep.subr.mxu0 0.0
        %1181 = vmatpush1.msra.mxu0 %v416
        %1182 = vmatprep.subr.mxu0 0.0
        %1183 = vmatpush1.msra.mxu0 %v415
        %1184 = vmatprep.subr.mxu0 0.0
        %1185 = vmatpush2.msra.mxu0 %v446
        %1186 = vmatprep.subr.mxu0 0.0
        %1187 = vmatpush2.msra.mxu0 %v445
        %1188 = vmatprep.subr.mxu0 0.0
        %1189 = vmatpush2.msra.mxu0 %v444
        %1190 = vmatprep.subr.mxu0 0.0
        %1191 = vmatpush2.msra.mxu0 %v443
        %1192 = vmatprep.subr.mxu0 0.0
        %1193 = vmatpush2.msra.mxu0 %v442
        %1194 = vmatprep.subr.mxu0 0.0
        %1195 = vmatpush2.msra.mxu0 %v441
        %1196 = vmatprep.subr.mxu0 0.0
        %1197 = vmatpush2.msra.mxu0 %v440
        %1198 = vmatprep.subr.mxu0 0.0
        %1199 = vmatpush2.msra.mxu0 %v439
        %1200 = vmatprep.subr.mxu0 0.0
        %1201 = vmatpush2.msra.mxu0 %v438
        %1202 = vmatprep.subr.mxu0 0.0
        %1203 = vmatpush2.msra.mxu0 %v437
        %1204 = vmatprep.subr.mxu0 0.0
        %1205 = vmatpush2.msra.mxu0 %v436
        %1206 = vmatprep.subr.mxu0 0.0
        %1207 = vmatpush2.msra.mxu0 %v435
        %1208 = vmatprep.subr.mxu0 0.0
        %1209 = vmatpush2.msra.mxu0 %v434
        %1210 = vmatprep.subr.mxu0 0.0
        %1211 = vmatpush2.msra.mxu0 %v433
        %1212 = vmatprep.subr.mxu0 0.0
        %1213 = vmatpush2.msra.mxu0 %v432
        %1214 = vmatprep.subr.mxu0 0.0
        %1215 = vmatpush2.msra.mxu0 %v431
        %1216 = vmatprep.mubr.f32.mxu0 %v955
        %1217 = vmatmul.mubr.f32.gmra.mxu0 %v954
        %v1218 = vpop.f32.mrf.mxu0
        %v1219 = vadd.f32 %v1134, %v1218
        %v1220 = vpop.f32.mrf.mxu0
        %1221 = vmatprep.mubr.f32.mxu0 %v963
        %1222 = vmatmul.mubr.f32.gmra.mxu0 %v962
        %v1223 = vpop.f32.mrf.mxu0
        %v1224 = vadd.f32 %v1139, %v1223
        %v1225 = vpop.f32.mrf.mxu0
        %1226 = vmatprep.mubr.f32.mxu0 %v971
        %1227 = vmatmul.mubr.f32.gmra.mxu0 %v970
        %v1228 = vpop.f32.mrf.mxu0
        %v1229 = vadd.f32 %v1144, %v1228
        %v1230 = vpop.f32.mrf.mxu0
        %1231 = vmatprep.mubr.f32.mxu0 %v979
        %1232 = vmatmul.mubr.f32.gmra.mxu0 %v978
        %v1233 = vpop.f32.mrf.mxu0
        %v1234 = vadd.f32 %v1149, %v1233
        %v1235 = vpop.f32.mrf.mxu0
        %1236 = vdwg.mxu0
        %1237 = vmatprep.subr.mxu0 0.0
        %1238 = vmatpush1.msra.mxu0 %v462
        %1239 = vmatprep.subr.mxu0 0.0
        %1240 = vmatpush1.msra.mxu0 %v461
        %1241 = vmatprep.subr.mxu0 0.0
        %1242 = vmatpush1.msra.mxu0 %v460
        %1243 = vmatprep.subr.mxu0 0.0
        %1244 = vmatpush1.msra.mxu0 %v459
        %1245 = vmatprep.subr.mxu0 0.0
        %1246 = vmatpush1.msra.mxu0 %v458
        %1247 = vmatprep.subr.mxu0 0.0
        %1248 = vmatpush1.msra.mxu0 %v457
        %1249 = vmatprep.subr.mxu0 0.0
        %1250 = vmatpush1.msra.mxu0 %v456
        %1251 = vmatprep.subr.mxu0 0.0
        %1252 = vmatpush1.msra.mxu0 %v455
        %1253 = vmatprep.subr.mxu0 0.0
        %1254 = vmatpush1.msra.mxu0 %v454
        %1255 = vmatprep.subr.mxu0 0.0
        %1256 = vmatpush1.msra.mxu0 %v453
        %1257 = vmatprep.subr.mxu0 0.0
        %1258 = vmatpush1.msra.mxu0 %v452
        %1259 = vmatprep.subr.mxu0 0.0
        %1260 = vmatpush1.msra.mxu0 %v451
        %1261 = vmatprep.subr.mxu0 0.0
        %1262 = vmatpush1.msra.mxu0 %v450
        %1263 = vmatprep.subr.mxu0 0.0
        %1264 = vmatpush1.msra.mxu0 %v449
        %1265 = vmatprep.subr.mxu0 0.0
        %1266 = vmatpush1.msra.mxu0 %v448
        %1267 = vmatprep.subr.mxu0 0.0
        %1268 = vmatpush1.msra.mxu0 %v447
        %1269 = vmatprep.subr.mxu0 0.0
        %1270 = vmatpush2.msra.mxu0 %v478
        %1271 = vmatprep.subr.mxu0 0.0
        %1272 = vmatpush2.msra.mxu0 %v477
        %1273 = vmatprep.subr.mxu0 0.0
        %1274 = vmatpush2.msra.mxu0 %v476
        %1275 = vmatprep.subr.mxu0 0.0
        %1276 = vmatpush2.msra.mxu0 %v475
        %1277 = vmatprep.subr.mxu0 0.0
        %1278 = vmatpush2.msra.mxu0 %v474
        %1279 = vmatprep.subr.mxu0 0.0
        %1280 = vmatpush2.msra.mxu0 %v473
        %1281 = vmatprep.subr.mxu0 0.0
        %1282 = vmatpush2.msra.mxu0 %v472
        %1283 = vmatprep.subr.mxu0 0.0
        %1284 = vmatpush2.msra.mxu0 %v471
        %1285 = vmatprep.subr.mxu0 0.0
        %1286 = vmatpush2.msra.mxu0 %v470
        %1287 = vmatprep.subr.mxu0 0.0
        %1288 = vmatpush2.msra.mxu0 %v469
        %1289 = vmatprep.subr.mxu0 0.0
        %1290 = vmatpush2.msra.mxu0 %v468
        %1291 = vmatprep.subr.mxu0 0.0
        %1292 = vmatpush2.msra.mxu0 %v467
        %1293 = vmatprep.subr.mxu0 0.0
        %1294 = vmatpush2.msra.mxu0 %v466
        %1295 = vmatprep.subr.mxu0 0.0
        %1296 = vmatpush2.msra.mxu0 %v465
        %1297 = vmatprep.subr.mxu0 0.0
        %1298 = vmatpush2.msra.mxu0 %v464
        %1299 = vmatprep.subr.mxu0 0.0
        %1300 = vmatpush2.msra.mxu0 %v463
        %1301 = vmatprep.mubr.f32.mxu0 %v957
        %1302 = vmatmul.mubr.f32.gmra.mxu0 %v956
        %v1303 = vpop.f32.mrf.mxu0
        %v1304 = vadd.f32 %v1219, %v1303
        %v1305 = vpop.f32.mrf.mxu0
        %1306 = vmatprep.mubr.f32.mxu0 %v965
        %1307 = vmatmul.mubr.f32.gmra.mxu0 %v964
        %v1308 = vpop.f32.mrf.mxu0
        %v1309 = vadd.f32 %v1224, %v1308
        %v1310 = vpop.f32.mrf.mxu0
        %1311 = vmatprep.mubr.f32.mxu0 %v973
        %1312 = vmatmul.mubr.f32.gmra.mxu0 %v972
        %v1313 = vpop.f32.mrf.mxu0
        %v1314 = vadd.f32 %v1229, %v1313
        %v1315 = vpop.f32.mrf.mxu0
        %1316 = vmatprep.mubr.f32.mxu0 %v981
        %1317 = vmatmul.mubr.f32.gmra.mxu0 %v980
        %v1318 = vpop.f32.mrf.mxu0
        %v1319 = vadd.f32 %v1234, %v1318
        %v1320 = vpop.f32.mrf.mxu0
        %1321 = vdwg.mxu0
        %v1322 = vmul.f32 %v950, %v950
        %v1323 = vmul.f32 %v951, %v951
        %v1324 = vmul.f32 %v952, %v952
        %v1325 = vmul.f32 %v953, %v953
        %v1326 = vmul.f32 %v954, %v954
        %v1327 = vmul.f32 %v955, %v955
        %v1328 = vmul.f32 %v956, %v956
        %v1329 = vmul.f32 %v957, %v957
        %v1330 = vmul.f32 %v958, %v958
        %v1331 = vmul.f32 %v959, %v959
        %v1332 = vmul.f32 %v960, %v960
        %v1333 = vmul.f32 %v961, %v961
        %v1334 = vmul.f32 %v962, %v962
        %v1335 = vmul.f32 %v963, %v963
        %v1336 = vmul.f32 %v964, %v964
        %v1337 = vmul.f32 %v965, %v965
        %v1338 = vmul.f32 %v966, %v966
        %v1339 = vmul.f32 %v967, %v967
        %v1340 = vmul.f32 %v968, %v968
        %v1341 = vmul.f32 %v969, %v969
        %v1342 = vmul.f32 %v970, %v970
        %v1343 = vmul.f32 %v971, %v971
        %v1344 = vmul.f32 %v972, %v972
        %v1345 = vmul.f32 %v973, %v973
        %v1346 = vmul.f32 %v974, %v974
        %v1347 = vmul.f32 %v975, %v975
        %v1348 = vmul.f32 %v976, %v976
        %v1349 = vmul.f32 %v977, %v977
        %v1350 = vmul.f32 %v978, %v978
        %v1351 = vmul.f32 %v979, %v979
        %v1352 = vmul.f32 %v980, %v980
        %v1353 = vmul.f32 %v981, %v981
        %1354 = vmatprep.subr.mxu0 0.0
        %1355 = vmatpush1.msra.mxu0 %v366
        %1356 = vmatprep.subr.mxu0 0.0
        %1357 = vmatpush1.msra.mxu0 %v365
        %1358 = vmatprep.subr.mxu0 0.0
        %1359 = vmatpush1.msra.mxu0 %v364
        %1360 = vmatprep.subr.mxu0 0.0
        %1361 = vmatpush1.msra.mxu0 %v363
        %1362 = vmatprep.subr.mxu0 0.0
        %1363 = vmatpush1.msra.mxu0 %v362
        %1364 = vmatprep.subr.mxu0 0.0
        %1365 = vmatpush1.msra.mxu0 %v361
        %1366 = vmatprep.subr.mxu0 0.0
        %1367 = vmatpush1.msra.mxu0 %v360
        %1368 = vmatprep.subr.mxu0 0.0
        %1369 = vmatpush1.msra.mxu0 %v359
        %1370 = vmatprep.subr.mxu0 0.0
        %1371 = vmatpush1.msra.mxu0 %v358
        %1372 = vmatprep.subr.mxu0 0.0
        %1373 = vmatpush1.msra.mxu0 %v357
        %1374 = vmatprep.subr.mxu0 0.0
        %1375 = vmatpush1.msra.mxu0 %v356
        %1376 = vmatprep.subr.mxu0 0.0
        %1377 = vmatpush1.msra.mxu0 %v355
        %1378 = vmatprep.subr.mxu0 0.0
        %1379 = vmatpush1.msra.mxu0 %v354
        %1380 = vmatprep.subr.mxu0 0.0
        %1381 = vmatpush1.msra.mxu0 %v353
        %1382 = vmatprep.subr.mxu0 0.0
        %1383 = vmatpush1.msra.mxu0 %v352
        %1384 = vmatprep.subr.mxu0 0.0
        %1385 = vmatpush1.msra.mxu0 %v351
        %1386 = vmatprep.subr.mxu0 0.0
        %1387 = vmatpush2.msra.mxu0 %v382
        %1388 = vmatprep.subr.mxu0 0.0
        %1389 = vmatpush2.msra.mxu0 %v381
        %1390 = vmatprep.subr.mxu0 0.0
        %1391 = vmatpush2.msra.mxu0 %v380
        %1392 = vmatprep.subr.mxu0 0.0
        %1393 = vmatpush2.msra.mxu0 %v379
        %1394 = vmatprep.subr.mxu0 0.0
        %1395 = vmatpush2.msra.mxu0 %v378
        %1396 = vmatprep.subr.mxu0 0.0
        %1397 = vmatpush2.msra.mxu0 %v377
        %1398 = vmatprep.subr.mxu0 0.0
        %1399 = vmatpush2.msra.mxu0 %v376
        %1400 = vmatprep.subr.mxu0 0.0
        %1401 = vmatpush2.msra.mxu0 %v375
        %1402 = vmatprep.subr.mxu0 0.0
        %1403 = vmatpush2.msra.mxu0 %v374
        %1404 = vmatprep.subr.mxu0 0.0
        %1405 = vmatpush2.msra.mxu0 %v373
        %1406 = vmatprep.subr.mxu0 0.0
        %1407 = vmatpush2.msra.mxu0 %v372
        %1408 = vmatprep.subr.mxu0 0.0
        %1409 = vmatpush2.msra.mxu0 %v371
        %1410 = vmatprep.subr.mxu0 0.0
        %1411 = vmatpush2.msra.mxu0 %v370
        %1412 = vmatprep.subr.mxu0 0.0
        %1413 = vmatpush2.msra.mxu0 %v369
        %1414 = vmatprep.subr.mxu0 0.0
        %1415 = vmatpush2.msra.mxu0 %v368
        %1416 = vmatprep.subr.mxu0 0.0
        %1417 = vmatpush2.msra.mxu0 %v367
        %1418 = vmatprep.mubr.f32.mxu0 %v1323
        %1419 = vmatmul.mubr.f32.gmra.mxu0 %v1322
        %v1420 = vpop.f32.mrf.mxu0
        %v1421 = vadd.f32 0.0, %v1420
        %v1422 = vpop.f32.mrf.mxu0
        %1423 = vmatprep.mubr.f32.mxu0 %v1331
        %1424 = vmatmul.mubr.f32.gmra.mxu0 %v1330
        %v1425 = vpop.f32.mrf.mxu0
        %v1426 = vadd.f32 0.0, %v1425
        %v1427 = vpop.f32.mrf.mxu0
        %1428 = vmatprep.mubr.f32.mxu0 %v1339
        %1429 = vmatmul.mubr.f32.gmra.mxu0 %v1338
        %v1430 = vpop.f32.mrf.mxu0
        %v1431 = vadd.f32 0.0, %v1430
        %v1432 = vpop.f32.mrf.mxu0
        %1433 = vmatprep.mubr.f32.mxu0 %v1347
        %1434 = vmatmul.mubr.f32.gmra.mxu0 %v1346
        %v1435 = vpop.f32.mrf.mxu0
        %v1436 = vadd.f32 0.0, %v1435
        %v1437 = vpop.f32.mrf.mxu0
        %1438 = vdwg.mxu0
        %1439 = vmatprep.subr.mxu0 0.0
        %1440 = vmatpush1.msra.mxu0 %v398
        %1441 = vmatprep.subr.mxu0 0.0
        %1442 = vmatpush1.msra.mxu0 %v397
        %1443 = vmatprep.subr.mxu0 0.0
        %1444 = vmatpush1.msra.mxu0 %v396
        %1445 = vmatprep.subr.mxu0 0.0
        %1446 = vmatpush1.msra.mxu0 %v395
        %1447 = vmatprep.subr.mxu0 0.0
        %1448 = vmatpush1.msra.mxu0 %v394
        %1449 = vmatprep.subr.mxu0 0.0
        %1450 = vmatpush1.msra.mxu0 %v393
        %1451 = vmatprep.subr.mxu0 0.0
        %1452 = vmatpush1.msra.mxu0 %v392
        %1453 = vmatprep.subr.mxu0 0.0
        %1454 = vmatpush1.msra.mxu0 %v391
        %1455 = vmatprep.subr.mxu0 0.0
        %1456 = vmatpush1.msra.mxu0 %v390
        %1457 = vmatprep.subr.mxu0 0.0
        %1458 = vmatpush1.msra.mxu0 %v389
        %1459 = vmatprep.subr.mxu0 0.0
        %1460 = vmatpush1.msra.mxu0 %v388
        %1461 = vmatprep.subr.mxu0 0.0
        %1462 = vmatpush1.msra.mxu0 %v387
        %1463 = vmatprep.subr.mxu0 0.0
        %1464 = vmatpush1.msra.mxu0 %v386
        %1465 = vmatprep.subr.mxu0 0.0
        %1466 = vmatpush1.msra.mxu0 %v385
        %1467 = vmatprep.subr.mxu0 0.0
        %1468 = vmatpush1.msra.mxu0 %v384
        %1469 = vmatprep.subr.mxu0 0.0
        %1470 = vmatpush1.msra.mxu0 %v383
        %1471 = vmatprep.subr.mxu0 0.0
        %1472 = vmatpush2.msra.mxu0 %v414
        %1473 = vmatprep.subr.mxu0 0.0
        %1474 = vmatpush2.msra.mxu0 %v413
        %1475 = vmatprep.subr.mxu0 0.0
        %1476 = vmatpush2.msra.mxu0 %v412
        %1477 = vmatprep.subr.mxu0 0.0
        %1478 = vmatpush2.msra.mxu0 %v411
        %1479 = vmatprep.subr.mxu0 0.0
        %1480 = vmatpush2.msra.mxu0 %v410
        %1481 = vmatprep.subr.mxu0 0.0
        %1482 = vmatpush2.msra.mxu0 %v409
        %1483 = vmatprep.subr.mxu0 0.0
        %1484 = vmatpush2.msra.mxu0 %v408
        %1485 = vmatprep.subr.mxu0 0.0
        %1486 = vmatpush2.msra.mxu0 %v407
        %1487 = vmatprep.subr.mxu0 0.0
        %1488 = vmatpush2.msra.mxu0 %v406
        %1489 = vmatprep.subr.mxu0 0.0
        %1490 = vmatpush2.msra.mxu0 %v405
        %1491 = vmatprep.subr.mxu0 0.0
        %1492 = vmatpush2.msra.mxu0 %v404
        %1493 = vmatprep.subr.mxu0 0.0
        %1494 = vmatpush2.msra.mxu0 %v403
        %1495 = vmatprep.subr.mxu0 0.0
        %1496 = vmatpush2.msra.mxu0 %v402
        %1497 = vmatprep.subr.mxu0 0.0
        %1498 = vmatpush2.msra.mxu0 %v401
        %1499 = vmatprep.subr.mxu0 0.0
        %1500 = vmatpush2.msra.mxu0 %v400
        %1501 = vmatprep.subr.mxu0 0.0
        %1502 = vmatpush2.msra.mxu0 %v399
        %1503 = vmatprep.mubr.f32.mxu0 %v1325
        %1504 = vmatmul.mubr.f32.gmra.mxu0 %v1324
        %v1505 = vpop.f32.mrf.mxu0
        %v1506 = vadd.f32 %v1421, %v1505
        %v1507 = vpop.f32.mrf.mxu0
        %1508 = vmatprep.mubr.f32.mxu0 %v1333
        %1509 = vmatmul.mubr.f32.gmra.mxu0 %v1332
        %v1510 = vpop.f32.mrf.mxu0
        %v1511 = vadd.f32 %v1426, %v1510
        %v1512 = vpop.f32.mrf.mxu0
        %1513 = vmatprep.mubr.f32.mxu0 %v1341
        %1514 = vmatmul.mubr.f32.gmra.mxu0 %v1340
        %v1515 = vpop.f32.mrf.mxu0
        %v1516 = vadd.f32 %v1431, %v1515
        %v1517 = vpop.f32.mrf.mxu0
        %1518 = vmatprep.mubr.f32.mxu0 %v1349
        %1519 = vmatmul.mubr.f32.gmra.mxu0 %v1348
        %v1520 = vpop.f32.mrf.mxu0
        %v1521 = vadd.f32 %v1436, %v1520
        %v1522 = vpop.f32.mrf.mxu0
        %1523 = vdwg.mxu0
        %1524 = vmatprep.subr.mxu0 0.0
        %1525 = vmatpush1.msra.mxu0 %v430
        %1526 = vmatprep.subr.mxu0 0.0
        %1527 = vmatpush1.msra.mxu0 %v429
        %1528 = vmatprep.subr.mxu0 0.0
        %1529 = vmatpush1.msra.mxu0 %v428
        %1530 = vmatprep.subr.mxu0 0.0
        %1531 = vmatpush1.msra.mxu0 %v427
        %1532 = vmatprep.subr.mxu0 0.0
        %1533 = vmatpush1.msra.mxu0 %v426
        %1534 = vmatprep.subr.mxu0 0.0
        %1535 = vmatpush1.msra.mxu0 %v425
        %1536 = vmatprep.subr.mxu0 0.0
        %1537 = vmatpush1.msra.mxu0 %v424
        %1538 = vmatprep.subr.mxu0 0.0
        %1539 = vmatpush1.msra.mxu0 %v423
        %1540 = vmatprep.subr.mxu0 0.0
        %1541 = vmatpush1.msra.mxu0 %v422
        %1542 = vmatprep.subr.mxu0 0.0
        %1543 = vmatpush1.msra.mxu0 %v421
        %1544 = vmatprep.subr.mxu0 0.0
        %1545 = vmatpush1.msra.mxu0 %v420
        %1546 = vmatprep.subr.mxu0 0.0
        %1547 = vmatpush1.msra.mxu0 %v419
        %1548 = vmatprep.subr.mxu0 0.0
        %1549 = vmatpush1.msra.mxu0 %v418
        %1550 = vmatprep.subr.mxu0 0.0
        %1551 = vmatpush1.msra.mxu0 %v417
        %1552 = vmatprep.subr.mxu0 0.0
        %1553 = vmatpush1.msra.mxu0 %v416
        %1554 = vmatprep.subr.mxu0 0.0
        %1555 = vmatpush1.msra.mxu0 %v415
        %1556 = vmatprep.subr.mxu0 0.0
        %1557 = vmatpush2.msra.mxu0 %v446
        %1558 = vmatprep.subr.mxu0 0.0
        %1559 = vmatpush2.msra.mxu0 %v445
        %1560 = vmatprep.subr.mxu0 0.0
        %1561 = vmatpush2.msra.mxu0 %v444
        %1562 = vmatprep.subr.mxu0 0.0
        %1563 = vmatpush2.msra.mxu0 %v443
        %1564 = vmatprep.subr.mxu0 0.0
        %1565 = vmatpush2.msra.mxu0 %v442
        %1566 = vmatprep.subr.mxu0 0.0
        %1567 = vmatpush2.msra.mxu0 %v441
        %1568 = vmatprep.subr.mxu0 0.0
        %1569 = vmatpush2.msra.mxu0 %v440
        %1570 = vmatprep.subr.mxu0 0.0
        %1571 = vmatpush2.msra.mxu0 %v439
        %1572 = vmatprep.subr.mxu0 0.0
        %1573 = vmatpush2.msra.mxu0 %v438
        %1574 = vmatprep.subr.mxu0 0.0
        %1575 = vmatpush2.msra.mxu0 %v437
        %1576 = vmatprep.subr.mxu0 0.0
        %1577 = vmatpush2.msra.mxu0 %v436
        %1578 = vmatprep.subr.mxu0 0.0
        %1579 = vmatpush2.msra.mxu0 %v435
        %1580 = vmatprep.subr.mxu0 0.0
        %1581 = vmatpush2.msra.mxu0 %v434
        %1582 = vmatprep.subr.mxu0 0.0
        %1583 = vmatpush2.msra.mxu0 %v433
        %1584 = vmatprep.subr.mxu0 0.0
        %1585 = vmatpush2.msra.mxu0 %v432
        %1586 = vmatprep.subr.mxu0 0.0
        %1587 = vmatpush2.msra.mxu0 %v431
        %1588 = vmatprep.mubr.f32.mxu0 %v1327
        %1589 = vmatmul.mubr.f32.gmra.mxu0 %v1326
        %v1590 = vpop.f32.mrf.mxu0
        %v1591 = vadd.f32 %v1506, %v1590
        %v1592 = vpop.f32.mrf.mxu0
        %1593 = vmatprep.mubr.f32.mxu0 %v1335
        %1594 = vmatmul.mubr.f32.gmra.mxu0 %v1334
        %v1595 = vpop.f32.mrf.mxu0
        %v1596 = vadd.f32 %v1511, %v1595
        %v1597 = vpop.f32.mrf.mxu0
        %1598 = vmatprep.mubr.f32.mxu0 %v1343
        %1599 = vmatmul.mubr.f32.gmra.mxu0 %v1342
        %v1600 = vpop.f32.mrf.mxu0
        %v1601 = vadd.f32 %v1516, %v1600
        %v1602 = vpop.f32.mrf.mxu0
        %1603 = vmatprep.mubr.f32.mxu0 %v1351
        %1604 = vmatmul.mubr.f32.gmra.mxu0 %v1350
        %v1605 = vpop.f32.mrf.mxu0
        %v1606 = vadd.f32 %v1521, %v1605
        %v1607 = vpop.f32.mrf.mxu0
        %1608 = vdwg.mxu0
        %1609 = vmatprep.subr.mxu0 0.0
        %1610 = vmatpush1.msra.mxu0 %v462
        %1611 = vmatprep.subr.mxu0 0.0
        %1612 = vmatpush1.msra.mxu0 %v461
        %1613 = vmatprep.subr.mxu0 0.0
        %1614 = vmatpush1.msra.mxu0 %v460
        %1615 = vmatprep.subr.mxu0 0.0
        %1616 = vmatpush1.msra.mxu0 %v459
        %1617 = vmatprep.subr.mxu0 0.0
        %1618 = vmatpush1.msra.mxu0 %v458
        %1619 = vmatprep.subr.mxu0 0.0
        %1620 = vmatpush1.msra.mxu0 %v457
        %1621 = vmatprep.subr.mxu0 0.0
        %1622 = vmatpush1.msra.mxu0 %v456
        %1623 = vmatprep.subr.mxu0 0.0
        %1624 = vmatpush1.msra.mxu0 %v455
        %1625 = vmatprep.subr.mxu0 0.0
        %1626 = vmatpush1.msra.mxu0 %v454
        %1627 = vmatprep.subr.mxu0 0.0
        %1628 = vmatpush1.msra.mxu0 %v453
        %1629 = vmatprep.subr.mxu0 0.0
        %1630 = vmatpush1.msra.mxu0 %v452
        %1631 = vmatprep.subr.mxu0 0.0
        %1632 = vmatpush1.msra.mxu0 %v451
        %1633 = vmatprep.subr.mxu0 0.0
        %1634 = vmatpush1.msra.mxu0 %v450
        %1635 = vmatprep.subr.mxu0 0.0
        %1636 = vmatpush1.msra.mxu0 %v449
        %1637 = vmatprep.subr.mxu0 0.0
        %1638 = vmatpush1.msra.mxu0 %v448
        %1639 = vmatprep.subr.mxu0 0.0
        %1640 = vmatpush1.msra.mxu0 %v447
        %1641 = vmatprep.subr.mxu0 0.0
        %1642 = vmatpush2.msra.mxu0 %v478
        %1643 = vmatprep.subr.mxu0 0.0
        %1644 = vmatpush2.msra.mxu0 %v477
        %1645 = vmatprep.subr.mxu0 0.0
        %1646 = vmatpush2.msra.mxu0 %v476
        %1647 = vmatprep.subr.mxu0 0.0
        %1648 = vmatpush2.msra.mxu0 %v475
        %1649 = vmatprep.subr.mxu0 0.0
        %1650 = vmatpush2.msra.mxu0 %v474
        %1651 = vmatprep.subr.mxu0 0.0
        %1652 = vmatpush2.msra.mxu0 %v473
        %1653 = vmatprep.subr.mxu0 0.0
        %1654 = vmatpush2.msra.mxu0 %v472
        %1655 = vmatprep.subr.mxu0 0.0
        %1656 = vmatpush2.msra.mxu0 %v471
        %1657 = vmatprep.subr.mxu0 0.0
        %1658 = vmatpush2.msra.mxu0 %v470
        %1659 = vmatprep.subr.mxu0 0.0
        %1660 = vmatpush2.msra.mxu0 %v469
        %1661 = vmatprep.subr.mxu0 0.0
        %1662 = vmatpush2.msra.mxu0 %v468
        %1663 = vmatprep.subr.mxu0 0.0
        %1664 = vmatpush2.msra.mxu0 %v467
        %1665 = vmatprep.subr.mxu0 0.0
        %1666 = vmatpush2.msra.mxu0 %v466
        %1667 = vmatprep.subr.mxu0 0.0
        %1668 = vmatpush2.msra.mxu0 %v465
        %1669 = vmatprep.subr.mxu0 0.0
        %1670 = vmatpush2.msra.mxu0 %v464
        %1671 = vmatprep.subr.mxu0 0.0
        %1672 = vmatpush2.msra.mxu0 %v463
        %1673 = vmatprep.mubr.f32.mxu0 %v1329
        %1674 = vmatmul.mubr.f32.gmra.mxu0 %v1328
        %v1675 = vpop.f32.mrf.mxu0
        %v1676 = vadd.f32 %v1591, %v1675
        %v1677 = vpop.f32.mrf.mxu0
        %1678 = vmatprep.mubr.f32.mxu0 %v1337
        %1679 = vmatmul.mubr.f32.gmra.mxu0 %v1336
        %v1680 = vpop.f32.mrf.mxu0
        %v1681 = vadd.f32 %v1596, %v1680
        %v1682 = vpop.f32.mrf.mxu0
        %1683 = vmatprep.mubr.f32.mxu0 %v1345
        %1684 = vmatmul.mubr.f32.gmra.mxu0 %v1344
        %v1685 = vpop.f32.mrf.mxu0
        %v1686 = vadd.f32 %v1601, %v1685
        %v1687 = vpop.f32.mrf.mxu0
        %1688 = vmatprep.mubr.f32.mxu0 %v1353
        %1689 = vmatmul.mubr.f32.gmra.mxu0 %v1352
        %v1690 = vpop.f32.mrf.mxu0
        %v1691 = vadd.f32 %v1606, %v1690
        %v1692 = vpop.f32.mrf.mxu0
        %1693 = vdwg.mxu0
        %vm1694 = vcmask 64512
        %v1695 = vsel %vm1694, %v1304, 0.0
        %v1696 = vsel %vm1694, %v1309, 0.0
        %v1697 = vadd.f32 %v1695, %v1696
        %v1698 = vsel %vm1694, %v1314, 0.0
        %v1699 = vadd.f32 %v1697, %v1698
        %v1700 = vsel %vm1694, %v1319, 0.0
        %v1701 = vadd.f32 %v1699, %v1700
        %v1702 = vrot.slane %v1701, 4
        %v1703 = vadd.f32 %v1701, %v1702
        %v1704 = vrot.slane %v1703, 2
        %v1705 = vadd.f32 %v1703, %v1704
        %v1706 = vrot.slane %v1705, 1
        %v1707 = vadd.f32 %v1705, %v1706
        %v1708 = vmul.f32 %v1707, 0.00024414063
        %v1709 = vsel %vm1694, %v1676, 0.0
        %v1710 = vsel %vm1694, %v1681, 0.0
        %v1711 = vadd.f32 %v1709, %v1710
        %v1712 = vsel %vm1694, %v1686, 0.0
        %v1713 = vadd.f32 %v1711, %v1712
        %v1714 = vsel %vm1694, %v1691, 0.0
        %v1715 = vadd.f32 %v1713, %v1714
        %v1716 = vrot.slane %v1715, 4
        %v1717 = vadd.f32 %v1715, %v1716
        %v1718 = vrot.slane %v1717, 2
        %v1719 = vadd.f32 %v1717, %v1718
        %v1720 = vrot.slane %v1719, 1
        %v1721 = vadd.f32 %v1719, %v1720
        %v1722 = vmul.f32 %v1721, 0.00024414063
        %v1723 = vmul.f32 %v1708, %v1708
        %v1724 = vsub.f32 %v1722, %v1723
        %v1725 = vmax.f32 %v1724, 0.0
        %v1726 = vadd.f32 %v1725, 1e-08
        %v1727 = vrsqrt.pop %v1726
        %vm1728 = vcmask 1040384
        %v1729 = vsel %vm1728, %v1708, %v1727
        %v1731 = vsel %vm1694, %v1729, 0
        %1733 = vmatprep.subr.mxu0 0.0
        %1734 = vmatpush1.msra.mxu0 0.0
        %1735 = vmatprep.subr.mxu0 0.0
        %1736 = vmatpush1.msra.mxu0 0.0
        %1737 = vmatprep.subr.mxu0 0.0
        %1738 = vmatpush1.msra.mxu0 0.0
        %1739 = vmatprep.subr.mxu0 0.0
        %1740 = vmatpush1.msra.mxu0 0.0
        %1741 = vmatprep.subr.mxu0 0.0
        %1742 = vmatpush1.msra.mxu0 0.0
        %1743 = vmatprep.subr.mxu0 0.0
        %1744 = vmatpush1.msra.mxu0 0.0
        %1745 = vmatprep.subr.mxu0 0.0
        %1746 = vmatpush1.msra.mxu0 0.0
        %1747 = vmatprep.subr.mxu0 0.0
        %1748 = vmatpush1.msra.mxu0 0.0
        %1749 = vmatprep.subr.mxu0 0.0
        %1750 = vmatpush1.msra.mxu0 0.0
        %1751 = vmatprep.subr.mxu0 0.0
        %1752 = vmatpush1.msra.mxu0 0.0
        %1753 = vmatprep.subr.mxu0 0.0
        %1754 = vmatpush1.msra.mxu0 0.0
        %1755 = vmatprep.subr.mxu0 0.0
        %1756 = vmatpush1.msra.mxu0 0.0
        %1757 = vmatprep.subr.mxu0 0.0
        %1758 = vmatpush1.msra.mxu0 0.0
        %1759 = vmatprep.subr.mxu0 0.0
        %1760 = vmatpush1.msra.mxu0 0.0
        %1761 = vmatprep.subr.mxu0 0.0
        %1762 = vmatpush1.msra.mxu0 0.0
        %1763 = vmatprep.subr.mxu0 %v480
        %1764 = vmatpush1.msra.mxu0 %v479
        %1765 = vmatprep.subr.mxu0 0.0
        %1766 = vmatpush2.msra.mxu0 0.0
        %1767 = vmatprep.subr.mxu0 0.0
        %1768 = vmatpush2.msra.mxu0 0.0
        %1769 = vmatprep.subr.mxu0 0.0
        %1770 = vmatpush2.msra.mxu0 0.0
        %1771 = vmatprep.subr.mxu0 0.0
        %1772 = vmatpush2.msra.mxu0 0.0
        %1773 = vmatprep.subr.mxu0 0.0
        %1774 = vmatpush2.msra.mxu0 0.0
        %1775 = vmatprep.subr.mxu0 0.0
        %1776 = vmatpush2.msra.mxu0 0.0
        %1777 = vmatprep.subr.mxu0 0.0
        %1778 = vmatpush2.msra.mxu0 0.0
        %1779 = vmatprep.subr.mxu0 0.0
        %1780 = vmatpush2.msra.mxu0 0.0
        %1781 = vmatprep.subr.mxu0 0.0
        %1782 = vmatpush2.msra.mxu0 0.0
        %1783 = vmatprep.subr.mxu0 0.0
        %1784 = vmatpush2.msra.mxu0 0.0
        %1785 = vmatprep.subr.mxu0 0.0
        %1786 = vmatpush2.msra.mxu0 0.0
        %1787 = vmatprep.subr.mxu0 0.0
        %1788 = vmatpush2.msra.mxu0 0.0
        %1789 = vmatprep.subr.mxu0 0.0
        %1790 = vmatpush2.msra.mxu0 0.0
        %1791 = vmatprep.subr.mxu0 0.0
        %1792 = vmatpush2.msra.mxu0 0.0
        %1793 = vmatprep.subr.mxu0 0.0
        %1794 = vmatpush2.msra.mxu0 0.0
        %1795 = vmatprep.subr.mxu0 0.0
        %1796 = vmatpush2.msra.mxu0 0.0
        %1797 = vmatprep.mubr.f32.mxu0 0.0
        %1798 = vmatmul.mubr.f32.gmra.mxu0 %v1731
        %v1799 = vpop.f32.mrf.mxu0
        %v1800 = vadd.f32 0.0, %v1799
        %v1801 = vpop.f32.mrf.mxu0
        %v1802 = vadd.f32 0.0, %v1801
        %1803 = vdwg.mxu0
        %1804 = vmatprep.subr.mxu0 0.0
        %1805 = vmatpush1.msra.mxu0 0.0
        %1806 = vmatprep.subr.mxu0 0.0
        %1807 = vmatpush1.msra.mxu0 0.0
        %1808 = vmatprep.subr.mxu0 0.0
        %1809 = vmatpush1.msra.mxu0 0.0
        %1810 = vmatprep.subr.mxu0 0.0
        %1811 = vmatpush1.msra.mxu0 0.0
        %1812 = vmatprep.subr.mxu0 0.0
        %1813 = vmatpush1.msra.mxu0 0.0
        %1814 = vmatprep.subr.mxu0 0.0
        %1815 = vmatpush1.msra.mxu0 0.0
        %1816 = vmatprep.subr.mxu0 0.0
        %1817 = vmatpush1.msra.mxu0 0.0
        %1818 = vmatprep.subr.mxu0 0.0
        %1819 = vmatpush1.msra.mxu0 0.0
        %1820 = vmatprep.subr.mxu0 0.0
        %1821 = vmatpush1.msra.mxu0 0.0
        %1822 = vmatprep.subr.mxu0 0.0
        %1823 = vmatpush1.msra.mxu0 0.0
        %1824 = vmatprep.subr.mxu0 0.0
        %1825 = vmatpush1.msra.mxu0 0.0
        %1826 = vmatprep.subr.mxu0 0.0
        %1827 = vmatpush1.msra.mxu0 0.0
        %1828 = vmatprep.subr.mxu0 0.0
        %1829 = vmatpush1.msra.mxu0 0.0
        %1830 = vmatprep.subr.mxu0 0.0
        %1831 = vmatpush1.msra.mxu0 0.0
        %1832 = vmatprep.subr.mxu0 0.0
        %1833 = vmatpush1.msra.mxu0 0.0
        %1834 = vmatprep.subr.mxu0 %v482
        %1835 = vmatpush1.msra.mxu0 %v481
        %1836 = vmatprep.subr.mxu0 0.0
        %1837 = vmatpush2.msra.mxu0 0.0
        %1838 = vmatprep.subr.mxu0 0.0
        %1839 = vmatpush2.msra.mxu0 0.0
        %1840 = vmatprep.subr.mxu0 0.0
        %1841 = vmatpush2.msra.mxu0 0.0
        %1842 = vmatprep.subr.mxu0 0.0
        %1843 = vmatpush2.msra.mxu0 0.0
        %1844 = vmatprep.subr.mxu0 0.0
        %1845 = vmatpush2.msra.mxu0 0.0
        %1846 = vmatprep.subr.mxu0 0.0
        %1847 = vmatpush2.msra.mxu0 0.0
        %1848 = vmatprep.subr.mxu0 0.0
        %1849 = vmatpush2.msra.mxu0 0.0
        %1850 = vmatprep.subr.mxu0 0.0
        %1851 = vmatpush2.msra.mxu0 0.0
        %1852 = vmatprep.subr.mxu0 0.0
        %1853 = vmatpush2.msra.mxu0 0.0
        %1854 = vmatprep.subr.mxu0 0.0
        %1855 = vmatpush2.msra.mxu0 0.0
        %1856 = vmatprep.subr.mxu0 0.0
        %1857 = vmatpush2.msra.mxu0 0.0
        %1858 = vmatprep.subr.mxu0 0.0
        %1859 = vmatpush2.msra.mxu0 0.0
        %1860 = vmatprep.subr.mxu0 0.0
        %1861 = vmatpush2.msra.mxu0 0.0
        %1862 = vmatprep.subr.mxu0 0.0
        %1863 = vmatpush2.msra.mxu0 0.0
        %1864 = vmatprep.subr.mxu0 0.0
        %1865 = vmatpush2.msra.mxu0 0.0
        %1866 = vmatprep.subr.mxu0 0.0
        %1867 = vmatpush2.msra.mxu0 0.0
        %1868 = vmatprep.mubr.f32.mxu0 0.0
        %1869 = vmatmul.mubr.f32.gmra.mxu0 %v1731
        %v1870 = vpop.f32.mrf.mxu0
        %v1871 = vadd.f32 0.0, %v1870
        %v1872 = vpop.f32.mrf.mxu0
        %v1873 = vadd.f32 0.0, %v1872
        %1874 = vdwg.mxu0
        %1875 = vmatprep.subr.mxu0 0.0
        %1876 = vmatpush1.msra.mxu0 0.0
        %1877 = vmatprep.subr.mxu0 0.0
        %1878 = vmatpush1.msra.mxu0 0.0
        %1879 = vmatprep.subr.mxu0 0.0
        %1880 = vmatpush1.msra.mxu0 0.0
        %1881 = vmatprep.subr.mxu0 0.0
        %1882 = vmatpush1.msra.mxu0 0.0
        %1883 = vmatprep.subr.mxu0 0.0
        %1884 = vmatpush1.msra.mxu0 0.0
        %1885 = vmatprep.subr.mxu0 0.0
        %1886 = vmatpush1.msra.mxu0 0.0
        %1887 = vmatprep.subr.mxu0 0.0
        %1888 = vmatpush1.msra.mxu0 0.0
        %1889 = vmatprep.subr.mxu0 0.0
        %1890 = vmatpush1.msra.mxu0 0.0
        %1891 = vmatprep.subr.mxu0 0.0
        %1892 = vmatpush1.msra.mxu0 0.0
        %1893 = vmatprep.subr.mxu0 0.0
        %1894 = vmatpush1.msra.mxu0 0.0
        %1895 = vmatprep.subr.mxu0 0.0
        %1896 = vmatpush1.msra.mxu0 0.0
        %1897 = vmatprep.subr.mxu0 0.0
        %1898 = vmatpush1.msra.mxu0 0.0
        %1899 = vmatprep.subr.mxu0 0.0
        %1900 = vmatpush1.msra.mxu0 0.0
        %1901 = vmatprep.subr.mxu0 0.0
        %1902 = vmatpush1.msra.mxu0 0.0
        %1903 = vmatprep.subr.mxu0 0.0
        %1904 = vmatpush1.msra.mxu0 0.0
        %1905 = vmatprep.subr.mxu0 %v484
        %1906 = vmatpush1.msra.mxu0 %v483
        %1907 = vmatprep.subr.mxu0 0.0
        %1908 = vmatpush2.msra.mxu0 0.0
        %1909 = vmatprep.subr.mxu0 0.0
        %1910 = vmatpush2.msra.mxu0 0.0
        %1911 = vmatprep.subr.mxu0 0.0
        %1912 = vmatpush2.msra.mxu0 0.0
        %1913 = vmatprep.subr.mxu0 0.0
        %1914 = vmatpush2.msra.mxu0 0.0
        %1915 = vmatprep.subr.mxu0 0.0
        %1916 = vmatpush2.msra.mxu0 0.0
        %1917 = vmatprep.subr.mxu0 0.0
        %1918 = vmatpush2.msra.mxu0 0.0
        %1919 = vmatprep.subr.mxu0 0.0
        %1920 = vmatpush2.msra.mxu0 0.0
        %1921 = vmatprep.subr.mxu0 0.0
        %1922 = vmatpush2.msra.mxu0 0.0
        %1923 = vmatprep.subr.mxu0 0.0
        %1924 = vmatpush2.msra.mxu0 0.0
        %1925 = vmatprep.subr.mxu0 0.0
        %1926 = vmatpush2.msra.mxu0 0.0
        %1927 = vmatprep.subr.mxu0 0.0
        %1928 = vmatpush2.msra.mxu0 0.0
        %1929 = vmatprep.subr.mxu0 0.0
        %1930 = vmatpush2.msra.mxu0 0.0
        %1931 = vmatprep.subr.mxu0 0.0
        %1932 = vmatpush2.msra.mxu0 0.0
        %1933 = vmatprep.subr.mxu0 0.0
        %1934 = vmatpush2.msra.mxu0 0.0
        %1935 = vmatprep.subr.mxu0 0.0
        %1936 = vmatpush2.msra.mxu0 0.0
        %1937 = vmatprep.subr.mxu0 0.0
        %1938 = vmatpush2.msra.mxu0 0.0
        %1939 = vmatprep.mubr.f32.mxu0 0.0
        %1940 = vmatmul.mubr.f32.gmra.mxu0 %v1731
        %v1941 = vpop.f32.mrf.mxu0
        %v1942 = vadd.f32 0.0, %v1941
        %v1943 = vpop.f32.mrf.mxu0
        %v1944 = vadd.f32 0.0, %v1943
        %1945 = vdwg.mxu0
        %1946 = vmatprep.subr.mxu0 0.0
        %1947 = vmatpush1.msra.mxu0 0.0
        %1948 = vmatprep.subr.mxu0 0.0
        %1949 = vmatpush1.msra.mxu0 0.0
        %1950 = vmatprep.subr.mxu0 0.0
        %1951 = vmatpush1.msra.mxu0 0.0
        %1952 = vmatprep.subr.mxu0 0.0
        %1953 = vmatpush1.msra.mxu0 0.0
        %1954 = vmatprep.subr.mxu0 0.0
        %1955 = vmatpush1.msra.mxu0 0.0
        %1956 = vmatprep.subr.mxu0 0.0
        %1957 = vmatpush1.msra.mxu0 0.0
        %1958 = vmatprep.subr.mxu0 0.0
        %1959 = vmatpush1.msra.mxu0 0.0
        %1960 = vmatprep.subr.mxu0 0.0
        %1961 = vmatpush1.msra.mxu0 0.0
        %1962 = vmatprep.subr.mxu0 0.0
        %1963 = vmatpush1.msra.mxu0 0.0
        %1964 = vmatprep.subr.mxu0 0.0
        %1965 = vmatpush1.msra.mxu0 0.0
        %1966 = vmatprep.subr.mxu0 0.0
        %1967 = vmatpush1.msra.mxu0 0.0
        %1968 = vmatprep.subr.mxu0 0.0
        %1969 = vmatpush1.msra.mxu0 0.0
        %1970 = vmatprep.subr.mxu0 0.0
        %1971 = vmatpush1.msra.mxu0 0.0
        %1972 = vmatprep.subr.mxu0 0.0
        %1973 = vmatpush1.msra.mxu0 0.0
        %1974 = vmatprep.subr.mxu0 0.0
        %1975 = vmatpush1.msra.mxu0 0.0
        %1976 = vmatprep.subr.mxu0 %v486
        %1977 = vmatpush1.msra.mxu0 %v485
        %1978 = vmatprep.subr.mxu0 0.0
        %1979 = vmatpush2.msra.mxu0 0.0
        %1980 = vmatprep.subr.mxu0 0.0
        %1981 = vmatpush2.msra.mxu0 0.0
        %1982 = vmatprep.subr.mxu0 0.0
        %1983 = vmatpush2.msra.mxu0 0.0
        %1984 = vmatprep.subr.mxu0 0.0
        %1985 = vmatpush2.msra.mxu0 0.0
        %1986 = vmatprep.subr.mxu0 0.0
        %1987 = vmatpush2.msra.mxu0 0.0
        %1988 = vmatprep.subr.mxu0 0.0
        %1989 = vmatpush2.msra.mxu0 0.0
        %1990 = vmatprep.subr.mxu0 0.0
        %1991 = vmatpush2.msra.mxu0 0.0
        %1992 = vmatprep.subr.mxu0 0.0
        %1993 = vmatpush2.msra.mxu0 0.0
        %1994 = vmatprep.subr.mxu0 0.0
        %1995 = vmatpush2.msra.mxu0 0.0
        %1996 = vmatprep.subr.mxu0 0.0
        %1997 = vmatpush2.msra.mxu0 0.0
        %1998 = vmatprep.subr.mxu0 0.0
        %1999 = vmatpush2.msra.mxu0 0.0
        %2000 = vmatprep.subr.mxu0 0.0
        %2001 = vmatpush2.msra.mxu0 0.0
        %2002 = vmatprep.subr.mxu0 0.0
        %2003 = vmatpush2.msra.mxu0 0.0
        %2004 = vmatprep.subr.mxu0 0.0
        %2005 = vmatpush2.msra.mxu0 0.0
        %2006 = vmatprep.subr.mxu0 0.0
        %2007 = vmatpush2.msra.mxu0 0.0
        %2008 = vmatprep.subr.mxu0 0.0
        %2009 = vmatpush2.msra.mxu0 0.0
        %2010 = vmatprep.mubr.f32.mxu0 0.0
        %2011 = vmatmul.mubr.f32.gmra.mxu0 %v1731
        %v2012 = vpop.f32.mrf.mxu0
        %v2013 = vadd.f32 0.0, %v2012
        %v2014 = vpop.f32.mrf.mxu0
        %v2015 = vadd.f32 0.0, %v2014
        %2016 = vdwg.mxu0
        %v2017 = vlaneseq
        %v2018 = vshrl.u32 %v2017, 7
        %v2019 = vsub.s32 0, %v2018
        %v2020 = vrot.slane %v1800, %v2019
        %v2021 = vlaneseq
        %v2022 = vshrl.u32 %v2021, 7
        %v2023 = vsub.s32 0, %v2022
        %v2024 = vrot.slane %v1802, %v2023
        %v2025 = vlaneseq
        %v2026 = vshrl.u32 %v2025, 7
        %v2027 = vsub.s32 0, %v2026
        %v2028 = vrot.slane %v1871, %v2027
        %v2029 = vlaneseq
        %v2030 = vshrl.u32 %v2029, 7
        %v2031 = vsub.s32 0, %v2030
        %v2032 = vrot.slane %v1873, %v2031
        %v2033 = vlaneseq
        %v2034 = vshrl.u32 %v2033, 7
        %v2035 = vsub.s32 0, %v2034
        %v2036 = vrot.slane %v1942, %v2035
        %v2037 = vlaneseq
        %v2038 = vshrl.u32 %v2037, 7
        %v2039 = vsub.s32 0, %v2038
        %v2040 = vrot.slane %v1944, %v2039
        %v2041 = vlaneseq
        %v2042 = vshrl.u32 %v2041, 7
        %v2043 = vsub.s32 0, %v2042
        %v2044 = vrot.slane %v2013, %v2043
        %v2045 = vlaneseq
        %v2046 = vshrl.u32 %v2045, 7
        %v2047 = vsub.s32 0, %v2046
        %v2048 = vrot.slane %v2015, %v2047
        %v2049 = vsub.f32 %v950, %v2020
        %v2050 = vsub.f32 %v951, %v2024
        %v2051 = vsub.f32 %v952, %v2028
        %v2052 = vsub.f32 %v953, %v2032
        %v2053 = vsub.f32 %v954, %v2036
        %v2054 = vsub.f32 %v955, %v2040
        %v2055 = vsub.f32 %v956, %v2044
        %v2056 = vsub.f32 %v957, %v2048
        %v2057 = vsub.f32 %v958, %v2020
        %v2058 = vsub.f32 %v959, %v2024
        %v2059 = vsub.f32 %v960, %v2028
        %v2060 = vsub.f32 %v961, %v2032
        %v2061 = vsub.f32 %v962, %v2036
        %v2062 = vsub.f32 %v963, %v2040
        %v2063 = vsub.f32 %v964, %v2044
        %v2064 = vsub.f32 %v965, %v2048
        %v2065 = vsub.f32 %v966, %v2020
        %v2066 = vsub.f32 %v967, %v2024
        %v2067 = vsub.f32 %v968, %v2028
        %v2068 = vsub.f32 %v969, %v2032
        %v2069 = vsub.f32 %v970, %v2036
        %v2070 = vsub.f32 %v971, %v2040
        %v2071 = vsub.f32 %v972, %v2044
        %v2072 = vsub.f32 %v973, %v2048
        %v2073 = vsub.f32 %v974, %v2020
        %v2074 = vsub.f32 %v975, %v2024
        %v2075 = vsub.f32 %v976, %v2028
        %v2076 = vsub.f32 %v977, %v2032
        %v2077 = vsub.f32 %v978, %v2036
        %v2078 = vsub.f32 %v979, %v2040
        %v2079 = vsub.f32 %v980, %v2044
        %v2080 = vsub.f32 %v981, %v2048
        %v2081 = vlaneseq
        %v2082 = vshrl.u32 %v2081, 7
        %v2083 = vsub.s32 1, %v2082
        %v2084 = vrot.slane %v1800, %v2083
        %v2085 = vlaneseq
        %v2086 = vshrl.u32 %v2085, 7
        %v2087 = vsub.s32 1, %v2086
        %v2088 = vrot.slane %v1802, %v2087
        %v2089 = vlaneseq
        %v2090 = vshrl.u32 %v2089, 7
        %v2091 = vsub.s32 1, %v2090
        %v2092 = vrot.slane %v1871, %v2091
        %v2093 = vlaneseq
        %v2094 = vshrl.u32 %v2093, 7
        %v2095 = vsub.s32 1, %v2094
        %v2096 = vrot.slane %v1873, %v2095
        %v2097 = vlaneseq
        %v2098 = vshrl.u32 %v2097, 7
        %v2099 = vsub.s32 1, %v2098
        %v2100 = vrot.slane %v1942, %v2099
        %v2101 = vlaneseq
        %v2102 = vshrl.u32 %v2101, 7
        %v2103 = vsub.s32 1, %v2102
        %v2104 = vrot.slane %v1944, %v2103
        %v2105 = vlaneseq
        %v2106 = vshrl.u32 %v2105, 7
        %v2107 = vsub.s32 1, %v2106
        %v2108 = vrot.slane %v2013, %v2107
        %v2109 = vlaneseq
        %v2110 = vshrl.u32 %v2109, 7
        %v2111 = vsub.s32 1, %v2110
        %v2112 = vrot.slane %v2015, %v2111
        %v2113 = vmul.f32 %v2049, %v2084
        %v2114 = vmul.f32 %v2050, %v2088
        %v2115 = vmul.f32 %v2051, %v2092
        %v2116 = vmul.f32 %v2052, %v2096
        %v2117 = vmul.f32 %v2053, %v2100
        %v2118 = vmul.f32 %v2054, %v2104
        %v2119 = vmul.f32 %v2055, %v2108
        %v2120 = vmul.f32 %v2056, %v2112
        %v2121 = vmul.f32 %v2057, %v2084
        %v2122 = vmul.f32 %v2058, %v2088
        %v2123 = vmul.f32 %v2059, %v2092
        %v2124 = vmul.f32 %v2060, %v2096
        %v2125 = vmul.f32 %v2061, %v2100
        %v2126 = vmul.f32 %v2062, %v2104
        %v2127 = vmul.f32 %v2063, %v2108
        %v2128 = vmul.f32 %v2064, %v2112
        %v2129 = vmul.f32 %v2065, %v2084
        %v2130 = vmul.f32 %v2066, %v2088
        %v2131 = vmul.f32 %v2067, %v2092
        %v2132 = vmul.f32 %v2068, %v2096
        %v2133 = vmul.f32 %v2069, %v2100
        %v2134 = vmul.f32 %v2070, %v2104
        %v2135 = vmul.f32 %v2071, %v2108
        %v2136 = vmul.f32 %v2072, %v2112
        %v2137 = vmul.f32 %v2073, %v2084
        %v2138 = vmul.f32 %v2074, %v2088
        %v2139 = vmul.f32 %v2075, %v2092
        %v2140 = vmul.f32 %v2076, %v2096
        %v2141 = vmul.f32 %v2077, %v2100
        %v2142 = vmul.f32 %v2078, %v2104
        %v2143 = vmul.f32 %v2079, %v2108
        %v2144 = vmul.f32 %v2080, %v2112
        %2145 = vset.pattern.permute.xlu0 1
        %2146 = vperm.xlu0 %2145, %v345
        %v2147 = vpop.permute.xlu0 %2146
        %2149 = vset.pattern.permute.xlu0 1
        %2150 = vperm.xlu0 %2149, %v346
        %v2151 = vpop.permute.xlu0 %2150
        %2153 = vset.pattern.permute.xlu0 1
        %2154 = vperm.xlu0 %2153, %v347
        %v2155 = vpop.permute.xlu0 %2154
        %2157 = vset.pattern.permute.xlu0 1
        %2158 = vperm.xlu0 %2157, %v348
        %v2159 = vpop.permute.xlu0 %2158
        %v2161 = vmul.f32 %v2113, %v2147
        %v2162 = vmul.f32 %v2114, %v2147
        %v2163 = vmul.f32 %v2115, %v2147
        %v2164 = vmul.f32 %v2116, %v2147
        %v2165 = vmul.f32 %v2117, %v2147
        %v2166 = vmul.f32 %v2118, %v2147
        %v2167 = vmul.f32 %v2119, %v2147
        %v2168 = vmul.f32 %v2120, %v2147
        %v2169 = vmul.f32 %v2121, %v2151
        %v2170 = vmul.f32 %v2122, %v2151
        %v2171 = vmul.f32 %v2123, %v2151
        %v2172 = vmul.f32 %v2124, %v2151
        %v2173 = vmul.f32 %v2125, %v2151
        %v2174 = vmul.f32 %v2126, %v2151
        %v2175 = vmul.f32 %v2127, %v2151
        %v2176 = vmul.f32 %v2128, %v2151
        %v2177 = vmul.f32 %v2129, %v2155
        %v2178 = vmul.f32 %v2130, %v2155
        %v2179 = vmul.f32 %v2131, %v2155
        %v2180 = vmul.f32 %v2132, %v2155
        %v2181 = vmul.f32 %v2133, %v2155
        %v2182 = vmul.f32 %v2134, %v2155
        %v2183 = vmul.f32 %v2135, %v2155
        %v2184 = vmul.f32 %v2136, %v2155
        %v2185 = vmul.f32 %v2137, %v2159
        %v2186 = vmul.f32 %v2138, %v2159
        %v2187 = vmul.f32 %v2139, %v2159
        %v2188 = vmul.f32 %v2140, %v2159
        %v2189 = vmul.f32 %v2141, %v2159
        %v2190 = vmul.f32 %v2142, %v2159
        %v2191 = vmul.f32 %v2143, %v2159
        %v2192 = vmul.f32 %v2144, %v2159
        %2193 = vset.pattern.permute.xlu0 2
        %2194 = vperm.xlu0 %2193, %v345
        %v2195 = vpop.permute.xlu0 %2194
        %2197 = vset.pattern.permute.xlu0 2
        %2198 = vperm.xlu0 %2197, %v346
        %v2199 = vpop.permute.xlu0 %2198
        %2201 = vset.pattern.permute.xlu0 2
        %2202 = vperm.xlu0 %2201, %v347
        %v2203 = vpop.permute.xlu0 %2202
        %2205 = vset.pattern.permute.xlu0 2
        %2206 = vperm.xlu0 %2205, %v348
        %v2207 = vpop.permute.xlu0 %2206
        %v2209 = vadd.f32 %v2161, %v2195
        %v2210 = vadd.f32 %v2162, %v2195
        %v2211 = vadd.f32 %v2163, %v2195
        %v2212 = vadd.f32 %v2164, %v2195
        %v2213 = vadd.f32 %v2165, %v2195
        %v2214 = vadd.f32 %v2166, %v2195
        %v2215 = vadd.f32 %v2167, %v2195
        %v2216 = vadd.f32 %v2168, %v2195
        %v2217 = vadd.f32 %v2169, %v2199
        %v2218 = vadd.f32 %v2170, %v2199
        %v2219 = vadd.f32 %v2171, %v2199
        %v2220 = vadd.f32 %v2172, %v2199
        %v2221 = vadd.f32 %v2173, %v2199
        %v2222 = vadd.f32 %v2174, %v2199
        %v2223 = vadd.f32 %v2175, %v2199
        %v2224 = vadd.f32 %v2176, %v2199
        %v2225 = vadd.f32 %v2177, %v2203
        %v2226 = vadd.f32 %v2178, %v2203
        %v2227 = vadd.f32 %v2179, %v2203
        %v2228 = vadd.f32 %v2180, %v2203
        %v2229 = vadd.f32 %v2181, %v2203
        %v2230 = vadd.f32 %v2182, %v2203
        %v2231 = vadd.f32 %v2183, %v2203
        %v2232 = vadd.f32 %v2184, %v2203
        %v2233 = vadd.f32 %v2185, %v2207
        %v2234 = vadd.f32 %v2186, %v2207
        %v2235 = vadd.f32 %v2187, %v2207
        %v2236 = vadd.f32 %v2188, %v2207
        %v2237 = vadd.f32 %v2189, %v2207
        %v2238 = vadd.f32 %v2190, %v2207
        %v2239 = vadd.f32 %v2191, %v2207
        %v2240 = vadd.f32 %v2192, %v2207
        %v2241 = vlaneseq
        %v2242 = vand.u32 %v2241, 127
        %2243 = vrot.lane.b32.xlu0 %v2209, 2
        %v2244 = vpop.permute.xlu0 %2243
        %2245 = vrot.lane.b32.xlu0 %v2217, 2
        %v2246 = vpop.permute.xlu0 %2245
        %2247 = vrot.lane.b32.xlu0 %v2225, 2
        %v2248 = vpop.permute.xlu0 %2247
        %2249 = vrot.lane.b32.xlu0 %v2233, 2
        %v2250 = vpop.permute.xlu0 %2249
        %2251 = vrot.lane.b32.xlu0 %v2210, 2
        %v2252 = vpop.permute.xlu0 %2251
        %2253 = vrot.lane.b32.xlu0 %v2218, 2
        %v2254 = vpop.permute.xlu0 %2253
        %2255 = vrot.lane.b32.xlu0 %v2226, 2
        %v2256 = vpop.permute.xlu0 %2255
        %2257 = vrot.lane.b32.xlu0 %v2234, 2
        %v2258 = vpop.permute.xlu0 %2257
        %2259 = vrot.lane.b32.xlu0 %v2211, 2
        %v2260 = vpop.permute.xlu0 %2259
        %2261 = vrot.lane.b32.xlu0 %v2219, 2
        %v2262 = vpop.permute.xlu0 %2261
        %2263 = vrot.lane.b32.xlu0 %v2227, 2
        %v2264 = vpop.permute.xlu0 %2263
        %2265 = vrot.lane.b32.xlu0 %v2235, 2
        %v2266 = vpop.permute.xlu0 %2265
        %2267 = vrot.lane.b32.xlu0 %v2212, 2
        %v2268 = vpop.permute.xlu0 %2267
        %2269 = vrot.lane.b32.xlu0 %v2220, 2
        %v2270 = vpop.permute.xlu0 %2269
        %2271 = vrot.lane.b32.xlu0 %v2228, 2
        %v2272 = vpop.permute.xlu0 %2271
        %2273 = vrot.lane.b32.xlu0 %v2236, 2
        %v2274 = vpop.permute.xlu0 %2273
        %2275 = vrot.lane.b32.xlu0 %v2213, 2
        %v2276 = vpop.permute.xlu0 %2275
        %2277 = vrot.lane.b32.xlu0 %v2221, 2
        %v2278 = vpop.permute.xlu0 %2277
        %2279 = vrot.lane.b32.xlu0 %v2229, 2
        %v2280 = vpop.permute.xlu0 %2279
        %2281 = vrot.lane.b32.xlu0 %v2237, 2
        %v2282 = vpop.permute.xlu0 %2281
        %2283 = vrot.lane.b32.xlu0 %v2214, 2
        %v2284 = vpop.permute.xlu0 %2283
        %2285 = vrot.lane.b32.xlu0 %v2222, 2
        %v2286 = vpop.permute.xlu0 %2285
        %2287 = vrot.lane.b32.xlu0 %v2230, 2
        %v2288 = vpop.permute.xlu0 %2287
        %2289 = vrot.lane.b32.xlu0 %v2238, 2
        %v2290 = vpop.permute.xlu0 %2289
        %2291 = vrot.lane.b32.xlu0 %v2215, 2
        %v2292 = vpop.permute.xlu0 %2291
        %2293 = vrot.lane.b32.xlu0 %v2223, 2
        %v2294 = vpop.permute.xlu0 %2293
        %2295 = vrot.lane.b32.xlu0 %v2231, 2
        %v2296 = vpop.permute.xlu0 %2295
        %2297 = vrot.lane.b32.xlu0 %v2239, 2
        %v2298 = vpop.permute.xlu0 %2297
        %2299 = vrot.lane.b32.xlu0 %v2216, 2
        %v2300 = vpop.permute.xlu0 %2299
        %2301 = vrot.lane.b32.xlu0 %v2224, 2
        %v2302 = vpop.permute.xlu0 %2301
        %2303 = vrot.lane.b32.xlu0 %v2232, 2
        %v2304 = vpop.permute.xlu0 %2303
        %2305 = vrot.lane.b32.xlu0 %v2240, 2
        %v2306 = vpop.permute.xlu0 %2305
        %vm2307 = vcmp.lt.s32.totalorder %v2242, 2
        %v2308 = vsel %vm2307, %v2292, %v2300
        %v2309 = vsel %vm2307, %v2294, %v2302
        %v2310 = vsel %vm2307, %v2296, %v2304
        %v2311 = vsel %vm2307, %v2298, %v2306
        %v2312 = vsel %vm2307, %v2284, %v2292
        %v2313 = vsel %vm2307, %v2286, %v2294
        %v2314 = vsel %vm2307, %v2288, %v2296
        %v2315 = vsel %vm2307, %v2290, %v2298
        %v2316 = vsel %vm2307, %v2276, %v2284
        %v2317 = vsel %vm2307, %v2278, %v2286
        %v2318 = vsel %vm2307, %v2280, %v2288
        %v2319 = vsel %vm2307, %v2282, %v2290
        %v2320 = vsel %vm2307, %v2268, %v2276
        %v2321 = vsel %vm2307, %v2270, %v2278
        %v2322 = vsel %vm2307, %v2272, %v2280
        %v2323 = vsel %vm2307, %v2274, %v2282
        %v2324 = vsel %vm2307, %v2260, %v2268
        %v2325 = vsel %vm2307, %v2262, %v2270
        %v2326 = vsel %vm2307, %v2264, %v2272
        %v2327 = vsel %vm2307, %v2266, %v2274
        %v2328 = vsel %vm2307, %v2252, %v2260
        %v2329 = vsel %vm2307, %v2254, %v2262
        %v2330 = vsel %vm2307, %v2256, %v2264
        %v2331 = vsel %vm2307, %v2258, %v2266
        %v2332 = vsel %vm2307, %v2244, %v2252
        %v2333 = vsel %vm2307, %v2246, %v2254
        %v2334 = vsel %vm2307, %v2248, %v2256
        %v2335 = vsel %vm2307, %v2250, %v2258
        %v2336 = vsel %vm2307, %v2300, %v2244
        %v2337 = vsel %vm2307, %v2302, %v2246
        %v2338 = vsel %vm2307, %v2304, %v2248
        %v2339 = vsel %vm2307, %v2306, %v2250
        %vm2340 = vcmp.ge.s32.totalorder %v2242, 2
        %v2341 = vsel %vm2340, 1, 0
        %v2342 = vlaneseq
        %v2343 = vshrl.u32 %v2342, 7
        %v2344 = vsub.s32 0, %v2343
        %v2345 = vrot.slane %v2341, %v2344
        %vm2346 = vcmp.eq.s32.totalorder %v2345, 1
        %v2347 = vsel %vm2346, %v2336, 0.0
        %v2348 = vsel %vm2346, %v2332, 0.0
        %v2349 = vsel %vm2346, %v2328, 0.0
        %v2350 = vsel %vm2346, %v2324, 0.0
        %v2351 = vsel %vm2346, %v2320, 0.0
        %v2352 = vsel %vm2346, %v2316, 0.0
        %v2353 = vsel %vm2346, %v2312, 0.0
        %v2354 = vsel %vm2346, %v2308, 0.0
        %v2355 = vsel %vm2346, %v2337, 0.0
        %v2356 = vsel %vm2346, %v2333, 0.0
        %v2357 = vsel %vm2346, %v2329, 0.0
        %v2358 = vsel %vm2346, %v2325, 0.0
        %v2359 = vsel %vm2346, %v2321, 0.0
        %v2360 = vsel %vm2346, %v2317, 0.0
        %v2361 = vsel %vm2346, %v2313, 0.0
        %v2362 = vsel %vm2346, %v2309, 0.0
        %v2363 = vsel %vm2346, %v2338, 0.0
        %v2364 = vsel %vm2346, %v2334, 0.0
        %v2365 = vsel %vm2346, %v2330, 0.0
        %v2366 = vsel %vm2346, %v2326, 0.0
        %v2367 = vsel %vm2346, %v2322, 0.0
        %v2368 = vsel %vm2346, %v2318, 0.0
        %v2369 = vsel %vm2346, %v2314, 0.0
        %v2370 = vsel %vm2346, %v2310, 0.0
        %v2371 = vsel %vm2346, %v2339, 0.0
        %v2372 = vsel %vm2346, %v2335, 0.0
        %v2373 = vsel %vm2346, %v2331, 0.0
        %v2374 = vsel %vm2346, %v2327, 0.0
        %v2375 = vsel %vm2346, %v2323, 0.0
        %v2376 = vsel %vm2346, %v2319, 0.0
        %v2377 = vsel %vm2346, %v2315, 0.0
        %v2378 = vsel %vm2346, %v2311, 0.0
        %v2379 = vld [vmem:[%s2] sm:$0xff]
        %v2380 = vld [vmem:[%s2 + $0x8] sm:$0xff]
        %v2381 = vld [vmem:[%s2 + $0x10] sm:$0xff]
        %v2382 = vld [vmem:[%s2 + $0x18] sm:$0xff]
        %2384 = vset.pattern.permute.xlu0 0
        %2385 = vperm.xlu0 %2384, %v2379
        %v2386 = vpop.permute.xlu0 %2385
        %2389 = vset.pattern.permute.xlu0 0
        %2390 = vperm.xlu0 %2389, %v2380
        %v2391 = vpop.permute.xlu0 %2390
        %2394 = vset.pattern.permute.xlu0 0
        %2395 = vperm.xlu0 %2394, %v2381
        %v2396 = vpop.permute.xlu0 %2395
        %2399 = vset.pattern.permute.xlu0 0
        %2400 = vperm.xlu0 %2399, %v2382
        %v2401 = vpop.permute.xlu0 %2400
        %v2403 = vmul.f32 %v2386, %v2347
        %v2404 = vmul.f32 %v2386, %v2348
        %v2405 = vmul.f32 %v2386, %v2349
        %v2406 = vmul.f32 %v2386, %v2350
        %v2407 = vmul.f32 %v2386, %v2351
        %v2408 = vmul.f32 %v2386, %v2352
        %v2409 = vmul.f32 %v2386, %v2353
        %v2410 = vmul.f32 %v2386, %v2354
        %v2411 = vmul.f32 %v2391, %v2355
        %v2412 = vmul.f32 %v2391, %v2356
        %v2413 = vmul.f32 %v2391, %v2357
        %v2414 = vmul.f32 %v2391, %v2358
        %v2415 = vmul.f32 %v2391, %v2359
        %v2416 = vmul.f32 %v2391, %v2360
        %v2417 = vmul.f32 %v2391, %v2361
        %v2418 = vmul.f32 %v2391, %v2362
        %v2419 = vmul.f32 %v2396, %v2363
        %v2420 = vmul.f32 %v2396, %v2364
        %v2421 = vmul.f32 %v2396, %v2365
        %v2422 = vmul.f32 %v2396, %v2366
        %v2423 = vmul.f32 %v2396, %v2367
        %v2424 = vmul.f32 %v2396, %v2368
        %v2425 = vmul.f32 %v2396, %v2369
        %v2426 = vmul.f32 %v2396, %v2370
        %v2427 = vmul.f32 %v2401, %v2371
        %v2428 = vmul.f32 %v2401, %v2372
        %v2429 = vmul.f32 %v2401, %v2373
        %v2430 = vmul.f32 %v2401, %v2374
        %v2431 = vmul.f32 %v2401, %v2375
        %v2432 = vmul.f32 %v2401, %v2376
        %v2433 = vmul.f32 %v2401, %v2377
        %v2434 = vmul.f32 %v2401, %v2378
        %v2435 = vadd.f32 %v2403, 0.0
        %v2436 = vadd.f32 %v2404, 0.0
        %v2437 = vadd.f32 %v2405, 0.0
        %v2438 = vadd.f32 %v2406, 0.0
        %v2439 = vadd.f32 %v2407, 0.0
        %v2440 = vadd.f32 %v2408, 0.0
        %v2441 = vadd.f32 %v2409, 0.0
        %v2442 = vadd.f32 %v2410, 0.0
        %v2443 = vadd.f32 %v2411, 0.0
        %v2444 = vadd.f32 %v2412, 0.0
        %v2445 = vadd.f32 %v2413, 0.0
        %v2446 = vadd.f32 %v2414, 0.0
        %v2447 = vadd.f32 %v2415, 0.0
        %v2448 = vadd.f32 %v2416, 0.0
        %v2449 = vadd.f32 %v2417, 0.0
        %v2450 = vadd.f32 %v2418, 0.0
        %v2451 = vadd.f32 %v2419, 0.0
        %v2452 = vadd.f32 %v2420, 0.0
        %v2453 = vadd.f32 %v2421, 0.0
        %v2454 = vadd.f32 %v2422, 0.0
        %v2455 = vadd.f32 %v2423, 0.0
        %v2456 = vadd.f32 %v2424, 0.0
        %v2457 = vadd.f32 %v2425, 0.0
        %v2458 = vadd.f32 %v2426, 0.0
        %v2459 = vadd.f32 %v2427, 0.0
        %v2460 = vadd.f32 %v2428, 0.0
        %v2461 = vadd.f32 %v2429, 0.0
        %v2462 = vadd.f32 %v2430, 0.0
        %v2463 = vadd.f32 %v2431, 0.0
        %v2464 = vadd.f32 %v2432, 0.0
        %v2465 = vadd.f32 %v2433, 0.0
        %v2466 = vadd.f32 %v2434, 0.0
        %2467 = vset.pattern.permute.xlu0 1
        %2468 = vperm.xlu0 %2467, %v2379
        %v2469 = vpop.permute.xlu0 %2468
        %2471 = vset.pattern.permute.xlu0 1
        %2472 = vperm.xlu0 %2471, %v2380
        %v2473 = vpop.permute.xlu0 %2472
        %2475 = vset.pattern.permute.xlu0 1
        %2476 = vperm.xlu0 %2475, %v2381
        %v2477 = vpop.permute.xlu0 %2476
        %2479 = vset.pattern.permute.xlu0 1
        %2480 = vperm.xlu0 %2479, %v2382
        %v2481 = vpop.permute.xlu0 %2480
        %v2483 = vmul.f32 %v2469, %v2209
        %v2484 = vmul.f32 %v2469, %v2210
        %v2485 = vmul.f32 %v2469, %v2211
        %v2486 = vmul.f32 %v2469, %v2212
        %v2487 = vmul.f32 %v2469, %v2213
        %v2488 = vmul.f32 %v2469, %v2214
        %v2489 = vmul.f32 %v2469, %v2215
        %v2490 = vmul.f32 %v2469, %v2216
        %v2491 = vmul.f32 %v2473, %v2217
        %v2492 = vmul.f32 %v2473, %v2218
        %v2493 = vmul.f32 %v2473, %v2219
        %v2494 = vmul.f32 %v2473, %v2220
        %v2495 = vmul.f32 %v2473, %v2221
        %v2496 = vmul.f32 %v2473, %v2222
        %v2497 = vmul.f32 %v2473, %v2223
        %v2498 = vmul.f32 %v2473, %v2224
        %v2499 = vmul.f32 %v2477, %v2225
        %v2500 = vmul.f32 %v2477, %v2226
        %v2501 = vmul.f32 %v2477, %v2227
        %v2502 = vmul.f32 %v2477, %v2228
        %v2503 = vmul.f32 %v2477, %v2229
        %v2504 = vmul.f32 %v2477, %v2230
        %v2505 = vmul.f32 %v2477, %v2231
        %v2506 = vmul.f32 %v2477, %v2232
        %v2507 = vmul.f32 %v2481, %v2233
        %v2508 = vmul.f32 %v2481, %v2234
        %v2509 = vmul.f32 %v2481, %v2235
        %v2510 = vmul.f32 %v2481, %v2236
        %v2511 = vmul.f32 %v2481, %v2237
        %v2512 = vmul.f32 %v2481, %v2238
        %v2513 = vmul.f32 %v2481, %v2239
        %v2514 = vmul.f32 %v2481, %v2240
        %v2515 = vadd.f32 %v2435, %v2483
        %v2516 = vadd.f32 %v2436, %v2484
        %v2517 = vadd.f32 %v2437, %v2485
        %v2518 = vadd.f32 %v2438, %v2486
        %v2519 = vadd.f32 %v2439, %v2487
        %v2520 = vadd.f32 %v2440, %v2488
        %v2521 = vadd.f32 %v2441, %v2489
        %v2522 = vadd.f32 %v2442, %v2490
        %v2523 = vadd.f32 %v2443, %v2491
        %v2524 = vadd.f32 %v2444, %v2492
        %v2525 = vadd.f32 %v2445, %v2493
        %v2526 = vadd.f32 %v2446, %v2494
        %v2527 = vadd.f32 %v2447, %v2495
        %v2528 = vadd.f32 %v2448, %v2496
        %v2529 = vadd.f32 %v2449, %v2497
        %v2530 = vadd.f32 %v2450, %v2498
        %v2531 = vadd.f32 %v2451, %v2499
        %v2532 = vadd.f32 %v2452, %v2500
        %v2533 = vadd.f32 %v2453, %v2501
        %v2534 = vadd.f32 %v2454, %v2502
        %v2535 = vadd.f32 %v2455, %v2503
        %v2536 = vadd.f32 %v2456, %v2504
        %v2537 = vadd.f32 %v2457, %v2505
        %v2538 = vadd.f32 %v2458, %v2506
        %v2539 = vadd.f32 %v2459, %v2507
        %v2540 = vadd.f32 %v2460, %v2508
        %v2541 = vadd.f32 %v2461, %v2509
        %v2542 = vadd.f32 %v2462, %v2510
        %v2543 = vadd.f32 %v2463, %v2511
        %v2544 = vadd.f32 %v2464, %v2512
        %v2545 = vadd.f32 %v2465, %v2513
        %v2546 = vadd.f32 %v2466, %v2514
        %2547 = vrot.lane.b32.xlu0 %v2209, 126
        %v2548 = vpop.permute.xlu0 %2547
        %2549 = vrot.lane.b32.xlu0 %v2217, 126
        %v2550 = vpop.permute.xlu0 %2549
        %2551 = vrot.lane.b32.xlu0 %v2225, 126
        %v2552 = vpop.permute.xlu0 %2551
        %2553 = vrot.lane.b32.xlu0 %v2233, 126
        %v2554 = vpop.permute.xlu0 %2553
        %2555 = vrot.lane.b32.xlu0 %v2210, 126
        %v2556 = vpop.permute.xlu0 %2555
        %2557 = vrot.lane.b32.xlu0 %v2218, 126
        %v2558 = vpop.permute.xlu0 %2557
        %2559 = vrot.lane.b32.xlu0 %v2226, 126
        %v2560 = vpop.permute.xlu0 %2559
        %2561 = vrot.lane.b32.xlu0 %v2234, 126
        %v2562 = vpop.permute.xlu0 %2561
        %2563 = vrot.lane.b32.xlu0 %v2211, 126
        %v2564 = vpop.permute.xlu0 %2563
        %2565 = vrot.lane.b32.xlu0 %v2219, 126
        %v2566 = vpop.permute.xlu0 %2565
        %2567 = vrot.lane.b32.xlu0 %v2227, 126
        %v2568 = vpop.permute.xlu0 %2567
        %2569 = vrot.lane.b32.xlu0 %v2235, 126
        %v2570 = vpop.permute.xlu0 %2569
        %2571 = vrot.lane.b32.xlu0 %v2212, 126
        %v2572 = vpop.permute.xlu0 %2571
        %2573 = vrot.lane.b32.xlu0 %v2220, 126
        %v2574 = vpop.permute.xlu0 %2573
        %2575 = vrot.lane.b32.xlu0 %v2228, 126
        %v2576 = vpop.permute.xlu0 %2575
        %2577 = vrot.lane.b32.xlu0 %v2236, 126
        %v2578 = vpop.permute.xlu0 %2577
        %2579 = vrot.lane.b32.xlu0 %v2213, 126
        %v2580 = vpop.permute.xlu0 %2579
        %2581 = vrot.lane.b32.xlu0 %v2221, 126
        %v2582 = vpop.permute.xlu0 %2581
        %2583 = vrot.lane.b32.xlu0 %v2229, 126
        %v2584 = vpop.permute.xlu0 %2583
        %2585 = vrot.lane.b32.xlu0 %v2237, 126
        %v2586 = vpop.permute.xlu0 %2585
        %2587 = vrot.lane.b32.xlu0 %v2214, 126
        %v2588 = vpop.permute.xlu0 %2587
        %2589 = vrot.lane.b32.xlu0 %v2222, 126
        %v2590 = vpop.permute.xlu0 %2589
        %2591 = vrot.lane.b32.xlu0 %v2230, 126
        %v2592 = vpop.permute.xlu0 %2591
        %2593 = vrot.lane.b32.xlu0 %v2238, 126
        %v2594 = vpop.permute.xlu0 %2593
        %2595 = vrot.lane.b32.xlu0 %v2215, 126
        %v2596 = vpop.permute.xlu0 %2595
        %2597 = vrot.lane.b32.xlu0 %v2223, 126
        %v2598 = vpop.permute.xlu0 %2597
        %2599 = vrot.lane.b32.xlu0 %v2231, 126
        %v2600 = vpop.permute.xlu0 %2599
        %2601 = vrot.lane.b32.xlu0 %v2239, 126
        %v2602 = vpop.permute.xlu0 %2601
        %2603 = vrot.lane.b32.xlu0 %v2216, 126
        %v2604 = vpop.permute.xlu0 %2603
        %2605 = vrot.lane.b32.xlu0 %v2224, 126
        %v2606 = vpop.permute.xlu0 %2605
        %2607 = vrot.lane.b32.xlu0 %v2232, 126
        %v2608 = vpop.permute.xlu0 %2607
        %2609 = vrot.lane.b32.xlu0 %v2240, 126
        %v2610 = vpop.permute.xlu0 %2609
        %vm2611 = vcmp.lt.s32.totalorder %v2242, 126
        %v2612 = vsel %vm2611, %v2596, %v2604
        %v2613 = vsel %vm2611, %v2598, %v2606
        %v2614 = vsel %vm2611, %v2600, %v2608
        %v2615 = vsel %vm2611, %v2602, %v2610
        %v2616 = vsel %vm2611, %v2588, %v2596
        %v2617 = vsel %vm2611, %v2590, %v2598
        %v2618 = vsel %vm2611, %v2592, %v2600
        %v2619 = vsel %vm2611, %v2594, %v2602
        %v2620 = vsel %vm2611, %v2580, %v2588
        %v2621 = vsel %vm2611, %v2582, %v2590
        %v2622 = vsel %vm2611, %v2584, %v2592
        %v2623 = vsel %vm2611, %v2586, %v2594
        %v2624 = vsel %vm2611, %v2572, %v2580
        %v2625 = vsel %vm2611, %v2574, %v2582
        %v2626 = vsel %vm2611, %v2576, %v2584
        %v2627 = vsel %vm2611, %v2578, %v2586
        %v2628 = vsel %vm2611, %v2564, %v2572
        %v2629 = vsel %vm2611, %v2566, %v2574
        %v2630 = vsel %vm2611, %v2568, %v2576
        %v2631 = vsel %vm2611, %v2570, %v2578
        %v2632 = vsel %vm2611, %v2556, %v2564
        %v2633 = vsel %vm2611, %v2558, %v2566
        %v2634 = vsel %vm2611, %v2560, %v2568
        %v2635 = vsel %vm2611, %v2562, %v2570
        %v2636 = vsel %vm2611, %v2548, %v2556
        %v2637 = vsel %vm2611, %v2550, %v2558
        %v2638 = vsel %vm2611, %v2552, %v2560
        %v2639 = vsel %vm2611, %v2554, %v2562
        %v2640 = vsel %vm2611, %v2604, %v2548
        %v2641 = vsel %vm2611, %v2606, %v2550
        %v2642 = vsel %vm2611, %v2608, %v2552
        %v2643 = vsel %vm2611, %v2610, %v2554
        %v2644 = vsel %vm2611, 1, 0
        %v2645 = vlaneseq
        %v2646 = vshrl.u32 %v2645, 7
        %v2647 = vsub.s32 0, %v2646
        %v2648 = vrot.slane %v2644, %v2647
        %vm2649 = vcmp.eq.s32.totalorder %v2648, 1
        %v2650 = vsel %vm2649, %v2636, 0.0
        %v2651 = vsel %vm2649, %v2632, 0.0
        %v2652 = vsel %vm2649, %v2628, 0.0
        %v2653 = vsel %vm2649, %v2624, 0.0
        %v2654 = vsel %vm2649, %v2620, 0.0
        %v2655 = vsel %vm2649, %v2616, 0.0
        %v2656 = vsel %vm2649, %v2612, 0.0
        %v2657 = vsel %vm2649, %v2640, 0.0
        %v2658 = vsel %vm2649, %v2637, 0.0
        %v2659 = vsel %vm2649, %v2633, 0.0
        %v2660 = vsel %vm2649, %v2629, 0.0
        %v2661 = vsel %vm2649, %v2625, 0.0
        %v2662 = vsel %vm2649, %v2621, 0.0
        %v2663 = vsel %vm2649, %v2617, 0.0
        %v2664 = vsel %vm2649, %v2613, 0.0
        %v2665 = vsel %vm2649, %v2641, 0.0
        %v2666 = vsel %vm2649, %v2638, 0.0
        %v2667 = vsel %vm2649, %v2634, 0.0
        %v2668 = vsel %vm2649, %v2630, 0.0
        %v2669 = vsel %vm2649, %v2626, 0.0
        %v2670 = vsel %vm2649, %v2622, 0.0
        %v2671 = vsel %vm2649, %v2618, 0.0
        %v2672 = vsel %vm2649, %v2614, 0.0
        %v2673 = vsel %vm2649, %v2642, 0.0
        %v2674 = vsel %vm2649, %v2639, 0.0
        %v2675 = vsel %vm2649, %v2635, 0.0
        %v2676 = vsel %vm2649, %v2631, 0.0
        %v2677 = vsel %vm2649, %v2627, 0.0
        %v2678 = vsel %vm2649, %v2623, 0.0
        %v2679 = vsel %vm2649, %v2619, 0.0
        %v2680 = vsel %vm2649, %v2615, 0.0
        %v2681 = vsel %vm2649, %v2643, 0.0
        %2682 = vset.pattern.permute.xlu0 2
        %2683 = vperm.xlu0 %2682, %v2379
        %v2684 = vpop.permute.xlu0 %2683
        %2686 = vset.pattern.permute.xlu0 2
        %2687 = vperm.xlu0 %2686, %v2380
        %v2688 = vpop.permute.xlu0 %2687
        %2690 = vset.pattern.permute.xlu0 2
        %2691 = vperm.xlu0 %2690, %v2381
        %v2692 = vpop.permute.xlu0 %2691
        %2694 = vset.pattern.permute.xlu0 2
        %2695 = vperm.xlu0 %2694, %v2382
        %v2696 = vpop.permute.xlu0 %2695
        %v2698 = vmul.f32 %v2684, %v2650
        %v2699 = vmul.f32 %v2684, %v2651
        %v2700 = vmul.f32 %v2684, %v2652
        %v2701 = vmul.f32 %v2684, %v2653
        %v2702 = vmul.f32 %v2684, %v2654
        %v2703 = vmul.f32 %v2684, %v2655
        %v2704 = vmul.f32 %v2684, %v2656
        %v2705 = vmul.f32 %v2684, %v2657
        %v2706 = vmul.f32 %v2688, %v2658
        %v2707 = vmul.f32 %v2688, %v2659
        %v2708 = vmul.f32 %v2688, %v2660
        %v2709 = vmul.f32 %v2688, %v2661
        %v2710 = vmul.f32 %v2688, %v2662
        %v2711 = vmul.f32 %v2688, %v2663
        %v2712 = vmul.f32 %v2688, %v2664
        %v2713 = vmul.f32 %v2688, %v2665
        %v2714 = vmul.f32 %v2692, %v2666
        %v2715 = vmul.f32 %v2692, %v2667
        %v2716 = vmul.f32 %v2692, %v2668
        %v2717 = vmul.f32 %v2692, %v2669
        %v2718 = vmul.f32 %v2692, %v2670
        %v2719 = vmul.f32 %v2692, %v2671
        %v2720 = vmul.f32 %v2692, %v2672
        %v2721 = vmul.f32 %v2692, %v2673
        %v2722 = vmul.f32 %v2696, %v2674
        %v2723 = vmul.f32 %v2696, %v2675
        %v2724 = vmul.f32 %v2696, %v2676
        %v2725 = vmul.f32 %v2696, %v2677
        %v2726 = vmul.f32 %v2696, %v2678
        %v2727 = vmul.f32 %v2696, %v2679
        %v2728 = vmul.f32 %v2696, %v2680
        %v2729 = vmul.f32 %v2696, %v2681
        %v2730 = vadd.f32 %v2515, %v2698
        %v2731 = vadd.f32 %v2516, %v2699
        %v2732 = vadd.f32 %v2517, %v2700
        %v2733 = vadd.f32 %v2518, %v2701
        %v2734 = vadd.f32 %v2519, %v2702
        %v2735 = vadd.f32 %v2520, %v2703
        %v2736 = vadd.f32 %v2521, %v2704
        %v2737 = vadd.f32 %v2522, %v2705
        %v2738 = vadd.f32 %v2523, %v2706
        %v2739 = vadd.f32 %v2524, %v2707
        %v2740 = vadd.f32 %v2525, %v2708
        %v2741 = vadd.f32 %v2526, %v2709
        %v2742 = vadd.f32 %v2527, %v2710
        %v2743 = vadd.f32 %v2528, %v2711
        %v2744 = vadd.f32 %v2529, %v2712
        %v2745 = vadd.f32 %v2530, %v2713
        %v2746 = vadd.f32 %v2531, %v2714
        %v2747 = vadd.f32 %v2532, %v2715
        %v2748 = vadd.f32 %v2533, %v2716
        %v2749 = vadd.f32 %v2534, %v2717
        %v2750 = vadd.f32 %v2535, %v2718
        %v2751 = vadd.f32 %v2536, %v2719
        %v2752 = vadd.f32 %v2537, %v2720
        %v2753 = vadd.f32 %v2538, %v2721
        %v2754 = vadd.f32 %v2539, %v2722
        %v2755 = vadd.f32 %v2540, %v2723
        %v2756 = vadd.f32 %v2541, %v2724
        %v2757 = vadd.f32 %v2542, %v2725
        %v2758 = vadd.f32 %v2543, %v2726
        %v2759 = vadd.f32 %v2544, %v2727
        %v2760 = vadd.f32 %v2545, %v2728
        %v2761 = vadd.f32 %v2546, %v2729
        %2762 = vset.pattern.permute.xlu0 3
        %2763 = vperm.xlu0 %2762, %v345
        %v2764 = vpop.permute.xlu0 %2763
        %2766 = vset.pattern.permute.xlu0 3
        %2767 = vperm.xlu0 %2766, %v346
        %v2768 = vpop.permute.xlu0 %2767
        %2770 = vset.pattern.permute.xlu0 3
        %2771 = vperm.xlu0 %2770, %v347
        %v2772 = vpop.permute.xlu0 %2771
        %2774 = vset.pattern.permute.xlu0 3
        %2775 = vperm.xlu0 %2774, %v348
        %v2776 = vpop.permute.xlu0 %2775
        %v2778 = vadd.f32 %v2730, %v2764
        %v2779 = vadd.f32 %v2731, %v2764
        %v2780 = vadd.f32 %v2732, %v2764
        %v2781 = vadd.f32 %v2733, %v2764
        %v2782 = vadd.f32 %v2734, %v2764
        %v2783 = vadd.f32 %v2735, %v2764
        %v2784 = vadd.f32 %v2736, %v2764
        %v2785 = vadd.f32 %v2737, %v2764
        %v2786 = vadd.f32 %v2738, %v2768
        %v2787 = vadd.f32 %v2739, %v2768
        %v2788 = vadd.f32 %v2740, %v2768
        %v2789 = vadd.f32 %v2741, %v2768
        %v2790 = vadd.f32 %v2742, %v2768
        %v2791 = vadd.f32 %v2743, %v2768
        %v2792 = vadd.f32 %v2744, %v2768
        %v2793 = vadd.f32 %v2745, %v2768
        %v2794 = vadd.f32 %v2746, %v2772
        %v2795 = vadd.f32 %v2747, %v2772
        %v2796 = vadd.f32 %v2748, %v2772
        %v2797 = vadd.f32 %v2749, %v2772
        %v2798 = vadd.f32 %v2750, %v2772
        %v2799 = vadd.f32 %v2751, %v2772
        %v2800 = vadd.f32 %v2752, %v2772
        %v2801 = vadd.f32 %v2753, %v2772
        %v2802 = vadd.f32 %v2754, %v2776
        %v2803 = vadd.f32 %v2755, %v2776
        %v2804 = vadd.f32 %v2756, %v2776
        %v2805 = vadd.f32 %v2757, %v2776
        %v2806 = vadd.f32 %v2758, %v2776
        %v2807 = vadd.f32 %v2759, %v2776
        %v2808 = vadd.f32 %v2760, %v2776
        %v2809 = vadd.f32 %v2761, %v2776
        %vm2810 = vcmp.gt.f32.partialorder %v2778, 0.0
        %vm2811 = vcmp.gt.f32.partialorder %v2779, 0.0
        %vm2812 = vcmp.gt.f32.partialorder %v2780, 0.0
        %vm2813 = vcmp.gt.f32.partialorder %v2781, 0.0
        %vm2814 = vcmp.gt.f32.partialorder %v2782, 0.0
        %vm2815 = vcmp.gt.f32.partialorder %v2783, 0.0
        %vm2816 = vcmp.gt.f32.partialorder %v2784, 0.0
        %vm2817 = vcmp.gt.f32.partialorder %v2785, 0.0
        %vm2818 = vcmp.gt.f32.partialorder %v2786, 0.0
        %vm2819 = vcmp.gt.f32.partialorder %v2787, 0.0
        %vm2820 = vcmp.gt.f32.partialorder %v2788, 0.0
        %vm2821 = vcmp.gt.f32.partialorder %v2789, 0.0
        %vm2822 = vcmp.gt.f32.partialorder %v2790, 0.0
        %vm2823 = vcmp.gt.f32.partialorder %v2791, 0.0
        %vm2824 = vcmp.gt.f32.partialorder %v2792, 0.0
        %vm2825 = vcmp.gt.f32.partialorder %v2793, 0.0
        %vm2826 = vcmp.gt.f32.partialorder %v2794, 0.0
        %vm2827 = vcmp.gt.f32.partialorder %v2795, 0.0
        %vm2828 = vcmp.gt.f32.partialorder %v2796, 0.0
        %vm2829 = vcmp.gt.f32.partialorder %v2797, 0.0
        %vm2830 = vcmp.gt.f32.partialorder %v2798, 0.0
        %vm2831 = vcmp.gt.f32.partialorder %v2799, 0.0
        %vm2832 = vcmp.gt.f32.partialorder %v2800, 0.0
        %vm2833 = vcmp.gt.f32.partialorder %v2801, 0.0
        %vm2834 = vcmp.gt.f32.partialorder %v2802, 0.0
        %vm2835 = vcmp.gt.f32.partialorder %v2803, 0.0
        %vm2836 = vcmp.gt.f32.partialorder %v2804, 0.0
        %vm2837 = vcmp.gt.f32.partialorder %v2805, 0.0
        %vm2838 = vcmp.gt.f32.partialorder %v2806, 0.0
        %vm2839 = vcmp.gt.f32.partialorder %v2807, 0.0
        %vm2840 = vcmp.gt.f32.partialorder %v2808, 0.0
        %vm2841 = vcmp.gt.f32.partialorder %v2809, 0.0
        %2843 = vrot.lane.b32.xlu0 %v350, 121
        %v2844 = vpop.permute.xlu0 %2843
        %s2845 = vtos %v2844
        %v2846 = vstv %s2845
        %v2848 = vmul.f32 %v2846, %v2778
        %v2849 = vmul.f32 %v2846, %v2779
        %v2850 = vmul.f32 %v2846, %v2780
        %v2851 = vmul.f32 %v2846, %v2781
        %v2852 = vmul.f32 %v2846, %v2782
        %v2853 = vmul.f32 %v2846, %v2783
        %v2854 = vmul.f32 %v2846, %v2784
        %v2855 = vmul.f32 %v2846, %v2785
        %v2856 = vmul.f32 %v2846, %v2786
        %v2857 = vmul.f32 %v2846, %v2787
        %v2858 = vmul.f32 %v2846, %v2788
        %v2859 = vmul.f32 %v2846, %v2789
        %v2860 = vmul.f32 %v2846, %v2790
        %v2861 = vmul.f32 %v2846, %v2791
        %v2862 = vmul.f32 %v2846, %v2792
        %v2863 = vmul.f32 %v2846, %v2793
        %v2864 = vmul.f32 %v2846, %v2794
        %v2865 = vmul.f32 %v2846, %v2795
        %v2866 = vmul.f32 %v2846, %v2796
        %v2867 = vmul.f32 %v2846, %v2797
        %v2868 = vmul.f32 %v2846, %v2798
        %v2869 = vmul.f32 %v2846, %v2799
        %v2870 = vmul.f32 %v2846, %v2800
        %v2871 = vmul.f32 %v2846, %v2801
        %v2872 = vmul.f32 %v2846, %v2802
        %v2873 = vmul.f32 %v2846, %v2803
        %v2874 = vmul.f32 %v2846, %v2804
        %v2875 = vmul.f32 %v2846, %v2805
        %v2876 = vmul.f32 %v2846, %v2806
        %v2877 = vmul.f32 %v2846, %v2807
        %v2878 = vmul.f32 %v2846, %v2808
        %v2879 = vmul.f32 %v2846, %v2809
        %v2880 = vsel %vm2810, %v2778, %v2848
        %v2881 = vsel %vm2811, %v2779, %v2849
        %v2882 = vsel %vm2812, %v2780, %v2850
        %v2883 = vsel %vm2813, %v2781, %v2851
        %v2884 = vsel %vm2814, %v2782, %v2852
        %v2885 = vsel %vm2815, %v2783, %v2853
        %v2886 = vsel %vm2816, %v2784, %v2854
        %v2887 = vsel %vm2817, %v2785, %v2855
        %v2888 = vsel %vm2818, %v2786, %v2856
        %v2889 = vsel %vm2819, %v2787, %v2857
        %v2890 = vsel %vm2820, %v2788, %v2858
        %v2891 = vsel %vm2821, %v2789, %v2859
        %v2892 = vsel %vm2822, %v2790, %v2860
        %v2893 = vsel %vm2823, %v2791, %v2861
        %v2894 = vsel %vm2824, %v2792, %v2862
        %v2895 = vsel %vm2825, %v2793, %v2863
        %v2896 = vsel %vm2826, %v2794, %v2864
        %v2897 = vsel %vm2827, %v2795, %v2865
        %v2898 = vsel %vm2828, %v2796, %v2866
        %v2899 = vsel %vm2829, %v2797, %v2867
        %v2900 = vsel %vm2830, %v2798, %v2868
        %v2901 = vsel %vm2831, %v2799, %v2869
        %v2902 = vsel %vm2832, %v2800, %v2870
        %v2903 = vsel %vm2833, %v2801, %v2871
        %v2904 = vsel %vm2834, %v2802, %v2872
        %v2905 = vsel %vm2835, %v2803, %v2873
        %v2906 = vsel %vm2836, %v2804, %v2874
        %v2907 = vsel %vm2837, %v2805, %v2875
        %v2908 = vsel %vm2838, %v2806, %v2876
        %v2909 = vsel %vm2839, %v2807, %v2877
        %v2910 = vsel %vm2840, %v2808, %v2878
        %v2911 = vsel %vm2841, %v2809, %v2879
        %2912 = vmatprep.subr.mxu0 0.0
        %2913 = vmatpush1.msra.mxu0 %v366
        %2914 = vmatprep.subr.mxu0 0.0
        %2915 = vmatpush1.msra.mxu0 %v365
        %2916 = vmatprep.subr.mxu0 0.0
        %2917 = vmatpush1.msra.mxu0 %v364
        %2918 = vmatprep.subr.mxu0 0.0
        %2919 = vmatpush1.msra.mxu0 %v363
        %2920 = vmatprep.subr.mxu0 0.0
        %2921 = vmatpush1.msra.mxu0 %v362
        %2922 = vmatprep.subr.mxu0 0.0
        %2923 = vmatpush1.msra.mxu0 %v361
        %2924 = vmatprep.subr.mxu0 0.0
        %2925 = vmatpush1.msra.mxu0 %v360
        %2926 = vmatprep.subr.mxu0 0.0
        %2927 = vmatpush1.msra.mxu0 %v359
        %2928 = vmatprep.subr.mxu0 0.0
        %2929 = vmatpush1.msra.mxu0 %v358
        %2930 = vmatprep.subr.mxu0 0.0
        %2931 = vmatpush1.msra.mxu0 %v357
        %2932 = vmatprep.subr.mxu0 0.0
        %2933 = vmatpush1.msra.mxu0 %v356
        %2934 = vmatprep.subr.mxu0 0.0
        %2935 = vmatpush1.msra.mxu0 %v355
        %2936 = vmatprep.subr.mxu0 0.0
        %2937 = vmatpush1.msra.mxu0 %v354
        %2938 = vmatprep.subr.mxu0 0.0
        %2939 = vmatpush1.msra.mxu0 %v353
        %2940 = vmatprep.subr.mxu0 0.0
        %2941 = vmatpush1.msra.mxu0 %v352
        %2942 = vmatprep.subr.mxu0 0.0
        %2943 = vmatpush1.msra.mxu0 %v351
        %2944 = vmatprep.subr.mxu0 0.0
        %2945 = vmatpush2.msra.mxu0 %v382
        %2946 = vmatprep.subr.mxu0 0.0
        %2947 = vmatpush2.msra.mxu0 %v381
        %2948 = vmatprep.subr.mxu0 0.0
        %2949 = vmatpush2.msra.mxu0 %v380
        %2950 = vmatprep.subr.mxu0 0.0
        %2951 = vmatpush2.msra.mxu0 %v379
        %2952 = vmatprep.subr.mxu0 0.0
        %2953 = vmatpush2.msra.mxu0 %v378
        %2954 = vmatprep.subr.mxu0 0.0
        %2955 = vmatpush2.msra.mxu0 %v377
        %2956 = vmatprep.subr.mxu0 0.0
        %2957 = vmatpush2.msra.mxu0 %v376
        %2958 = vmatprep.subr.mxu0 0.0
        %2959 = vmatpush2.msra.mxu0 %v375
        %2960 = vmatprep.subr.mxu0 0.0
        %2961 = vmatpush2.msra.mxu0 %v374
        %2962 = vmatprep.subr.mxu0 0.0
        %2963 = vmatpush2.msra.mxu0 %v373
        %2964 = vmatprep.subr.mxu0 0.0
        %2965 = vmatpush2.msra.mxu0 %v372
        %2966 = vmatprep.subr.mxu0 0.0
        %2967 = vmatpush2.msra.mxu0 %v371
        %2968 = vmatprep.subr.mxu0 0.0
        %2969 = vmatpush2.msra.mxu0 %v370
        %2970 = vmatprep.subr.mxu0 0.0
        %2971 = vmatpush2.msra.mxu0 %v369
        %2972 = vmatprep.subr.mxu0 0.0
        %2973 = vmatpush2.msra.mxu0 %v368
        %2974 = vmatprep.subr.mxu0 0.0
        %2975 = vmatpush2.msra.mxu0 %v367
        %2976 = vmatprep.mubr.f32.mxu0 %v2881
        %2977 = vmatmul.mubr.f32.gmra.mxu0 %v2880
        %v2978 = vpop.f32.mrf.mxu0
        %v2979 = vadd.f32 0.0, %v2978
        %v2980 = vpop.f32.mrf.mxu0
        %2981 = vmatprep.mubr.f32.mxu0 %v2889
        %2982 = vmatmul.mubr.f32.gmra.mxu0 %v2888
        %v2983 = vpop.f32.mrf.mxu0
        %v2984 = vadd.f32 0.0, %v2983
        %v2985 = vpop.f32.mrf.mxu0
        %2986 = vmatprep.mubr.f32.mxu0 %v2897
        %2987 = vmatmul.mubr.f32.gmra.mxu0 %v2896
        %v2988 = vpop.f32.mrf.mxu0
        %v2989 = vadd.f32 0.0, %v2988
        %v2990 = vpop.f32.mrf.mxu0
        %2991 = vmatprep.mubr.f32.mxu0 %v2905
        %2992 = vmatmul.mubr.f32.gmra.mxu0 %v2904
        %v2993 = vpop.f32.mrf.mxu0
        %v2994 = vadd.f32 0.0, %v2993
        %v2995 = vpop.f32.mrf.mxu0
        %2996 = vdwg.mxu0
        %2997 = vmatprep.subr.mxu0 0.0
        %2998 = vmatpush1.msra.mxu0 %v398
        %2999 = vmatprep.subr.mxu0 0.0
        %3000 = vmatpush1.msra.mxu0 %v397
        %3001 = vmatprep.subr.mxu0 0.0
        %3002 = vmatpush1.msra.mxu0 %v396
        %3003 = vmatprep.subr.mxu0 0.0
        %3004 = vmatpush1.msra.mxu0 %v395
        %3005 = vmatprep.subr.mxu0 0.0
        %3006 = vmatpush1.msra.mxu0 %v394
        %3007 = vmatprep.subr.mxu0 0.0
        %3008 = vmatpush1.msra.mxu0 %v393
        %3009 = vmatprep.subr.mxu0 0.0
        %3010 = vmatpush1.msra.mxu0 %v392
        %3011 = vmatprep.subr.mxu0 0.0
        %3012 = vmatpush1.msra.mxu0 %v391
        %3013 = vmatprep.subr.mxu0 0.0
        %3014 = vmatpush1.msra.mxu0 %v390
        %3015 = vmatprep.subr.mxu0 0.0
        %3016 = vmatpush1.msra.mxu0 %v389
        %3017 = vmatprep.subr.mxu0 0.0
        %3018 = vmatpush1.msra.mxu0 %v388
        %3019 = vmatprep.subr.mxu0 0.0
        %3020 = vmatpush1.msra.mxu0 %v387
        %3021 = vmatprep.subr.mxu0 0.0
        %3022 = vmatpush1.msra.mxu0 %v386
        %3023 = vmatprep.subr.mxu0 0.0
        %3024 = vmatpush1.msra.mxu0 %v385
        %3025 = vmatprep.subr.mxu0 0.0
        %3026 = vmatpush1.msra.mxu0 %v384
        %3027 = vmatprep.subr.mxu0 0.0
        %3028 = vmatpush1.msra.mxu0 %v383
        %3029 = vmatprep.subr.mxu0 0.0
        %3030 = vmatpush2.msra.mxu0 %v414
        %3031 = vmatprep.subr.mxu0 0.0
        %3032 = vmatpush2.msra.mxu0 %v413
        %3033 = vmatprep.subr.mxu0 0.0
        %3034 = vmatpush2.msra.mxu0 %v412
        %3035 = vmatprep.subr.mxu0 0.0
        %3036 = vmatpush2.msra.mxu0 %v411
        %3037 = vmatprep.subr.mxu0 0.0
        %3038 = vmatpush2.msra.mxu0 %v410
        %3039 = vmatprep.subr.mxu0 0.0
        %3040 = vmatpush2.msra.mxu0 %v409
        %3041 = vmatprep.subr.mxu0 0.0
        %3042 = vmatpush2.msra.mxu0 %v408
        %3043 = vmatprep.subr.mxu0 0.0
        %3044 = vmatpush2.msra.mxu0 %v407
        %3045 = vmatprep.subr.mxu0 0.0
        %3046 = vmatpush2.msra.mxu0 %v406
        %3047 = vmatprep.subr.mxu0 0.0
        %3048 = vmatpush2.msra.mxu0 %v405
        %3049 = vmatprep.subr.mxu0 0.0
        %3050 = vmatpush2.msra.mxu0 %v404
        %3051 = vmatprep.subr.mxu0 0.0
        %3052 = vmatpush2.msra.mxu0 %v403
        %3053 = vmatprep.subr.mxu0 0.0
        %3054 = vmatpush2.msra.mxu0 %v402
        %3055 = vmatprep.subr.mxu0 0.0
        %3056 = vmatpush2.msra.mxu0 %v401
        %3057 = vmatprep.subr.mxu0 0.0
        %3058 = vmatpush2.msra.mxu0 %v400
        %3059 = vmatprep.subr.mxu0 0.0
        %3060 = vmatpush2.msra.mxu0 %v399
        %3061 = vmatprep.mubr.f32.mxu0 %v2883
        %3062 = vmatmul.mubr.f32.gmra.mxu0 %v2882
        %v3063 = vpop.f32.mrf.mxu0
        %v3064 = vadd.f32 %v2979, %v3063
        %v3065 = vpop.f32.mrf.mxu0
        %3066 = vmatprep.mubr.f32.mxu0 %v2891
        %3067 = vmatmul.mubr.f32.gmra.mxu0 %v2890
        %v3068 = vpop.f32.mrf.mxu0
        %v3069 = vadd.f32 %v2984, %v3068
        %v3070 = vpop.f32.mrf.mxu0
        %3071 = vmatprep.mubr.f32.mxu0 %v2899
        %3072 = vmatmul.mubr.f32.gmra.mxu0 %v2898
        %v3073 = vpop.f32.mrf.mxu0
        %v3074 = vadd.f32 %v2989, %v3073
        %v3075 = vpop.f32.mrf.mxu0
        %3076 = vmatprep.mubr.f32.mxu0 %v2907
        %3077 = vmatmul.mubr.f32.gmra.mxu0 %v2906
        %v3078 = vpop.f32.mrf.mxu0
        %v3079 = vadd.f32 %v2994, %v3078
        %v3080 = vpop.f32.mrf.mxu0
        %3081 = vdwg.mxu0
        %3082 = vmatprep.subr.mxu0 0.0
        %3083 = vmatpush1.msra.mxu0 %v430
        %3084 = vmatprep.subr.mxu0 0.0
        %3085 = vmatpush1.msra.mxu0 %v429
        %3086 = vmatprep.subr.mxu0 0.0
        %3087 = vmatpush1.msra.mxu0 %v428
        %3088 = vmatprep.subr.mxu0 0.0
        %3089 = vmatpush1.msra.mxu0 %v427
        %3090 = vmatprep.subr.mxu0 0.0
        %3091 = vmatpush1.msra.mxu0 %v426
        %3092 = vmatprep.subr.mxu0 0.0
        %3093 = vmatpush1.msra.mxu0 %v425
        %3094 = vmatprep.subr.mxu0 0.0
        %3095 = vmatpush1.msra.mxu0 %v424
        %3096 = vmatprep.subr.mxu0 0.0
        %3097 = vmatpush1.msra.mxu0 %v423
        %3098 = vmatprep.subr.mxu0 0.0
        %3099 = vmatpush1.msra.mxu0 %v422
        %3100 = vmatprep.subr.mxu0 0.0
        %3101 = vmatpush1.msra.mxu0 %v421
        %3102 = vmatprep.subr.mxu0 0.0
        %3103 = vmatpush1.msra.mxu0 %v420
        %3104 = vmatprep.subr.mxu0 0.0
        %3105 = vmatpush1.msra.mxu0 %v419
        %3106 = vmatprep.subr.mxu0 0.0
        %3107 = vmatpush1.msra.mxu0 %v418
        %3108 = vmatprep.subr.mxu0 0.0
        %3109 = vmatpush1.msra.mxu0 %v417
        %3110 = vmatprep.subr.mxu0 0.0
        %3111 = vmatpush1.msra.mxu0 %v416
        %3112 = vmatprep.subr.mxu0 0.0
        %3113 = vmatpush1.msra.mxu0 %v415
        %3114 = vmatprep.subr.mxu0 0.0
        %3115 = vmatpush2.msra.mxu0 %v446
        %3116 = vmatprep.subr.mxu0 0.0
        %3117 = vmatpush2.msra.mxu0 %v445
        %3118 = vmatprep.subr.mxu0 0.0
        %3119 = vmatpush2.msra.mxu0 %v444
        %3120 = vmatprep.subr.mxu0 0.0
        %3121 = vmatpush2.msra.mxu0 %v443
        %3122 = vmatprep.subr.mxu0 0.0
        %3123 = vmatpush2.msra.mxu0 %v442
        %3124 = vmatprep.subr.mxu0 0.0
        %3125 = vmatpush2.msra.mxu0 %v441
        %3126 = vmatprep.subr.mxu0 0.0
        %3127 = vmatpush2.msra.mxu0 %v440
        %3128 = vmatprep.subr.mxu0 0.0
        %3129 = vmatpush2.msra.mxu0 %v439
        %3130 = vmatprep.subr.mxu0 0.0
        %3131 = vmatpush2.msra.mxu0 %v438
        %3132 = vmatprep.subr.mxu0 0.0
        %3133 = vmatpush2.msra.mxu0 %v437
        %3134 = vmatprep.subr.mxu0 0.0
        %3135 = vmatpush2.msra.mxu0 %v436
        %3136 = vmatprep.subr.mxu0 0.0
        %3137 = vmatpush2.msra.mxu0 %v435
        %3138 = vmatprep.subr.mxu0 0.0
        %3139 = vmatpush2.msra.mxu0 %v434
        %3140 = vmatprep.subr.mxu0 0.0
        %3141 = vmatpush2.msra.mxu0 %v433
        %3142 = vmatprep.subr.mxu0 0.0
        %3143 = vmatpush2.msra.mxu0 %v432
        %3144 = vmatprep.subr.mxu0 0.0
        %3145 = vmatpush2.msra.mxu0 %v431
        %3146 = vmatprep.mubr.f32.mxu0 %v2885
        %3147 = vmatmul.mubr.f32.gmra.mxu0 %v2884
        %v3148 = vpop.f32.mrf.mxu0
        %v3149 = vadd.f32 %v3064, %v3148
        %v3150 = vpop.f32.mrf.mxu0
        %3151 = vmatprep.mubr.f32.mxu0 %v2893
        %3152 = vmatmul.mubr.f32.gmra.mxu0 %v2892
        %v3153 = vpop.f32.mrf.mxu0
        %v3154 = vadd.f32 %v3069, %v3153
        %v3155 = vpop.f32.mrf.mxu0
        %3156 = vmatprep.mubr.f32.mxu0 %v2901
        %3157 = vmatmul.mubr.f32.gmra.mxu0 %v2900
        %v3158 = vpop.f32.mrf.mxu0
        %v3159 = vadd.f32 %v3074, %v3158
        %v3160 = vpop.f32.mrf.mxu0
        %3161 = vmatprep.mubr.f32.mxu0 %v2909
        %3162 = vmatmul.mubr.f32.gmra.mxu0 %v2908
        %v3163 = vpop.f32.mrf.mxu0
        %v3164 = vadd.f32 %v3079, %v3163
        %v3165 = vpop.f32.mrf.mxu0
        %3166 = vdwg.mxu0
        %3167 = vmatprep.subr.mxu0 0.0
        %3168 = vmatpush1.msra.mxu0 %v462
        %3169 = vmatprep.subr.mxu0 0.0
        %3170 = vmatpush1.msra.mxu0 %v461
        %3171 = vmatprep.subr.mxu0 0.0
        %3172 = vmatpush1.msra.mxu0 %v460
        %3173 = vmatprep.subr.mxu0 0.0
        %3174 = vmatpush1.msra.mxu0 %v459
        %3175 = vmatprep.subr.mxu0 0.0
        %3176 = vmatpush1.msra.mxu0 %v458
        %3177 = vmatprep.subr.mxu0 0.0
        %3178 = vmatpush1.msra.mxu0 %v457
        %3179 = vmatprep.subr.mxu0 0.0
        %3180 = vmatpush1.msra.mxu0 %v456
        %3181 = vmatprep.subr.mxu0 0.0
        %3182 = vmatpush1.msra.mxu0 %v455
        %3183 = vmatprep.subr.mxu0 0.0
        %3184 = vmatpush1.msra.mxu0 %v454
        %3185 = vmatprep.subr.mxu0 0.0
        %3186 = vmatpush1.msra.mxu0 %v453
        %3187 = vmatprep.subr.mxu0 0.0
        %3188 = vmatpush1.msra.mxu0 %v452
        %3189 = vmatprep.subr.mxu0 0.0
        %3190 = vmatpush1.msra.mxu0 %v451
        %3191 = vmatprep.subr.mxu0 0.0
        %3192 = vmatpush1.msra.mxu0 %v450
        %3193 = vmatprep.subr.mxu0 0.0
        %3194 = vmatpush1.msra.mxu0 %v449
        %3195 = vmatprep.subr.mxu0 0.0
        %3196 = vmatpush1.msra.mxu0 %v448
        %3197 = vmatprep.subr.mxu0 0.0
        %3198 = vmatpush1.msra.mxu0 %v447
        %3199 = vmatprep.subr.mxu0 0.0
        %3200 = vmatpush2.msra.mxu0 %v478
        %3201 = vmatprep.subr.mxu0 0.0
        %3202 = vmatpush2.msra.mxu0 %v477
        %3203 = vmatprep.subr.mxu0 0.0
        %3204 = vmatpush2.msra.mxu0 %v476
        %3205 = vmatprep.subr.mxu0 0.0
        %3206 = vmatpush2.msra.mxu0 %v475
        %3207 = vmatprep.subr.mxu0 0.0
        %3208 = vmatpush2.msra.mxu0 %v474
        %3209 = vmatprep.subr.mxu0 0.0
        %3210 = vmatpush2.msra.mxu0 %v473
        %3211 = vmatprep.subr.mxu0 0.0
        %3212 = vmatpush2.msra.mxu0 %v472
        %3213 = vmatprep.subr.mxu0 0.0
        %3214 = vmatpush2.msra.mxu0 %v471
        %3215 = vmatprep.subr.mxu0 0.0
        %3216 = vmatpush2.msra.mxu0 %v470
        %3217 = vmatprep.subr.mxu0 0.0
        %3218 = vmatpush2.msra.mxu0 %v469
        %3219 = vmatprep.subr.mxu0 0.0
        %3220 = vmatpush2.msra.mxu0 %v468
        %3221 = vmatprep.subr.mxu0 0.0
        %3222 = vmatpush2.msra.mxu0 %v467
        %3223 = vmatprep.subr.mxu0 0.0
        %3224 = vmatpush2.msra.mxu0 %v466
        %3225 = vmatprep.subr.mxu0 0.0
        %3226 = vmatpush2.msra.mxu0 %v465
        %3227 = vmatprep.subr.mxu0 0.0
        %3228 = vmatpush2.msra.mxu0 %v464
        %3229 = vmatprep.subr.mxu0 0.0
        %3230 = vmatpush2.msra.mxu0 %v463
        %3231 = vmatprep.mubr.f32.mxu0 %v2887
        %3232 = vmatmul.mubr.f32.gmra.mxu0 %v2886
        %v3233 = vpop.f32.mrf.mxu0
        %v3234 = vadd.f32 %v3149, %v3233
        %v3235 = vpop.f32.mrf.mxu0
        %3236 = vmatprep.mubr.f32.mxu0 %v2895
        %3237 = vmatmul.mubr.f32.gmra.mxu0 %v2894
        %v3238 = vpop.f32.mrf.mxu0
        %v3239 = vadd.f32 %v3154, %v3238
        %v3240 = vpop.f32.mrf.mxu0
        %3241 = vmatprep.mubr.f32.mxu0 %v2903
        %3242 = vmatmul.mubr.f32.gmra.mxu0 %v2902
        %v3243 = vpop.f32.mrf.mxu0
        %v3244 = vadd.f32 %v3159, %v3243
        %v3245 = vpop.f32.mrf.mxu0
        %3246 = vmatprep.mubr.f32.mxu0 %v2911
        %3247 = vmatmul.mubr.f32.gmra.mxu0 %v2910
        %v3248 = vpop.f32.mrf.mxu0
        %v3249 = vadd.f32 %v3164, %v3248
        %v3250 = vpop.f32.mrf.mxu0
        %3251 = vdwg.mxu0
        %v3252 = vmul.f32 %v2880, %v2880
        %v3253 = vmul.f32 %v2881, %v2881
        %v3254 = vmul.f32 %v2882, %v2882
        %v3255 = vmul.f32 %v2883, %v2883
        %v3256 = vmul.f32 %v2884, %v2884
        %v3257 = vmul.f32 %v2885, %v2885
        %v3258 = vmul.f32 %v2886, %v2886
        %v3259 = vmul.f32 %v2887, %v2887
        %v3260 = vmul.f32 %v2888, %v2888
        %v3261 = vmul.f32 %v2889, %v2889
        %v3262 = vmul.f32 %v2890, %v2890
        %v3263 = vmul.f32 %v2891, %v2891
        %v3264 = vmul.f32 %v2892, %v2892
        %v3265 = vmul.f32 %v2893, %v2893
        %v3266 = vmul.f32 %v2894, %v2894
        %v3267 = vmul.f32 %v2895, %v2895
        %v3268 = vmul.f32 %v2896, %v2896
        %v3269 = vmul.f32 %v2897, %v2897
        %v3270 = vmul.f32 %v2898, %v2898
        %v3271 = vmul.f32 %v2899, %v2899
        %v3272 = vmul.f32 %v2900, %v2900
        %v3273 = vmul.f32 %v2901, %v2901
        %v3274 = vmul.f32 %v2902, %v2902
        %v3275 = vmul.f32 %v2903, %v2903
        %v3276 = vmul.f32 %v2904, %v2904
        %v3277 = vmul.f32 %v2905, %v2905
        %v3278 = vmul.f32 %v2906, %v2906
        %v3279 = vmul.f32 %v2907, %v2907
        %v3280 = vmul.f32 %v2908, %v2908
        %v3281 = vmul.f32 %v2909, %v2909
        %v3282 = vmul.f32 %v2910, %v2910
        %v3283 = vmul.f32 %v2911, %v2911
        %3284 = vmatprep.subr.mxu0 0.0
        %3285 = vmatpush1.msra.mxu0 %v366
        %3286 = vmatprep.subr.mxu0 0.0
        %3287 = vmatpush1.msra.mxu0 %v365
        %3288 = vmatprep.subr.mxu0 0.0
        %3289 = vmatpush1.msra.mxu0 %v364
        %3290 = vmatprep.subr.mxu0 0.0
        %3291 = vmatpush1.msra.mxu0 %v363
        %3292 = vmatprep.subr.mxu0 0.0
        %3293 = vmatpush1.msra.mxu0 %v362
        %3294 = vmatprep.subr.mxu0 0.0
        %3295 = vmatpush1.msra.mxu0 %v361
        %3296 = vmatprep.subr.mxu0 0.0
        %3297 = vmatpush1.msra.mxu0 %v360
        %3298 = vmatprep.subr.mxu0 0.0
        %3299 = vmatpush1.msra.mxu0 %v359
        %3300 = vmatprep.subr.mxu0 0.0
        %3301 = vmatpush1.msra.mxu0 %v358
        %3302 = vmatprep.subr.mxu0 0.0
        %3303 = vmatpush1.msra.mxu0 %v357
        %3304 = vmatprep.subr.mxu0 0.0
        %3305 = vmatpush1.msra.mxu0 %v356
        %3306 = vmatprep.subr.mxu0 0.0
        %3307 = vmatpush1.msra.mxu0 %v355
        %3308 = vmatprep.subr.mxu0 0.0
        %3309 = vmatpush1.msra.mxu0 %v354
        %3310 = vmatprep.subr.mxu0 0.0
        %3311 = vmatpush1.msra.mxu0 %v353
        %3312 = vmatprep.subr.mxu0 0.0
        %3313 = vmatpush1.msra.mxu0 %v352
        %3314 = vmatprep.subr.mxu0 0.0
        %3315 = vmatpush1.msra.mxu0 %v351
        %3316 = vmatprep.subr.mxu0 0.0
        %3317 = vmatpush2.msra.mxu0 %v382
        %3318 = vmatprep.subr.mxu0 0.0
        %3319 = vmatpush2.msra.mxu0 %v381
        %3320 = vmatprep.subr.mxu0 0.0
        %3321 = vmatpush2.msra.mxu0 %v380
        %3322 = vmatprep.subr.mxu0 0.0
        %3323 = vmatpush2.msra.mxu0 %v379
        %3324 = vmatprep.subr.mxu0 0.0
        %3325 = vmatpush2.msra.mxu0 %v378
        %3326 = vmatprep.subr.mxu0 0.0
        %3327 = vmatpush2.msra.mxu0 %v377
        %3328 = vmatprep.subr.mxu0 0.0
        %3329 = vmatpush2.msra.mxu0 %v376
        %3330 = vmatprep.subr.mxu0 0.0
        %3331 = vmatpush2.msra.mxu0 %v375
        %3332 = vmatprep.subr.mxu0 0.0
        %3333 = vmatpush2.msra.mxu0 %v374
        %3334 = vmatprep.subr.mxu0 0.0
        %3335 = vmatpush2.msra.mxu0 %v373
        %3336 = vmatprep.subr.mxu0 0.0
        %3337 = vmatpush2.msra.mxu0 %v372
        %3338 = vmatprep.subr.mxu0 0.0
        %3339 = vmatpush2.msra.mxu0 %v371
        %3340 = vmatprep.subr.mxu0 0.0
        %3341 = vmatpush2.msra.mxu0 %v370
        %3342 = vmatprep.subr.mxu0 0.0
        %3343 = vmatpush2.msra.mxu0 %v369
        %3344 = vmatprep.subr.mxu0 0.0
        %3345 = vmatpush2.msra.mxu0 %v368
        %3346 = vmatprep.subr.mxu0 0.0
        %3347 = vmatpush2.msra.mxu0 %v367
        %3348 = vmatprep.mubr.f32.mxu0 %v3253
        %3349 = vmatmul.mubr.f32.gmra.mxu0 %v3252
        %v3350 = vpop.f32.mrf.mxu0
        %v3351 = vadd.f32 0.0, %v3350
        %v3352 = vpop.f32.mrf.mxu0
        %3353 = vmatprep.mubr.f32.mxu0 %v3261
        %3354 = vmatmul.mubr.f32.gmra.mxu0 %v3260
        %v3355 = vpop.f32.mrf.mxu0
        %v3356 = vadd.f32 0.0, %v3355
        %v3357 = vpop.f32.mrf.mxu0
        %3358 = vmatprep.mubr.f32.mxu0 %v3269
        %3359 = vmatmul.mubr.f32.gmra.mxu0 %v3268
        %v3360 = vpop.f32.mrf.mxu0
        %v3361 = vadd.f32 0.0, %v3360
        %v3362 = vpop.f32.mrf.mxu0
        %3363 = vmatprep.mubr.f32.mxu0 %v3277
        %3364 = vmatmul.mubr.f32.gmra.mxu0 %v3276
        %v3365 = vpop.f32.mrf.mxu0
        %v3366 = vadd.f32 0.0, %v3365
        %v3367 = vpop.f32.mrf.mxu0
        %3368 = vdwg.mxu0
        %3369 = vmatprep.subr.mxu0 0.0
        %3370 = vmatpush1.msra.mxu0 %v398
        %3371 = vmatprep.subr.mxu0 0.0
        %3372 = vmatpush1.msra.mxu0 %v397
        %3373 = vmatprep.subr.mxu0 0.0
        %3374 = vmatpush1.msra.mxu0 %v396
        %3375 = vmatprep.subr.mxu0 0.0
        %3376 = vmatpush1.msra.mxu0 %v395
        %3377 = vmatprep.subr.mxu0 0.0
        %3378 = vmatpush1.msra.mxu0 %v394
        %3379 = vmatprep.subr.mxu0 0.0
        %3380 = vmatpush1.msra.mxu0 %v393
        %3381 = vmatprep.subr.mxu0 0.0
        %3382 = vmatpush1.msra.mxu0 %v392
        %3383 = vmatprep.subr.mxu0 0.0
        %3384 = vmatpush1.msra.mxu0 %v391
        %3385 = vmatprep.subr.mxu0 0.0
        %3386 = vmatpush1.msra.mxu0 %v390
        %3387 = vmatprep.subr.mxu0 0.0
        %3388 = vmatpush1.msra.mxu0 %v389
        %3389 = vmatprep.subr.mxu0 0.0
        %3390 = vmatpush1.msra.mxu0 %v388
        %3391 = vmatprep.subr.mxu0 0.0
        %3392 = vmatpush1.msra.mxu0 %v387
        %3393 = vmatprep.subr.mxu0 0.0
        %3394 = vmatpush1.msra.mxu0 %v386
        %3395 = vmatprep.subr.mxu0 0.0
        %3396 = vmatpush1.msra.mxu0 %v385
        %3397 = vmatprep.subr.mxu0 0.0
        %3398 = vmatpush1.msra.mxu0 %v384
        %3399 = vmatprep.subr.mxu0 0.0
        %3400 = vmatpush1.msra.mxu0 %v383
        %3401 = vmatprep.subr.mxu0 0.0
        %3402 = vmatpush2.msra.mxu0 %v414
        %3403 = vmatprep.subr.mxu0 0.0
        %3404 = vmatpush2.msra.mxu0 %v413
        %3405 = vmatprep.subr.mxu0 0.0
        %3406 = vmatpush2.msra.mxu0 %v412
        %3407 = vmatprep.subr.mxu0 0.0
        %3408 = vmatpush2.msra.mxu0 %v411
        %3409 = vmatprep.subr.mxu0 0.0
        %3410 = vmatpush2.msra.mxu0 %v410
        %3411 = vmatprep.subr.mxu0 0.0
        %3412 = vmatpush2.msra.mxu0 %v409
        %3413 = vmatprep.subr.mxu0 0.0
        %3414 = vmatpush2.msra.mxu0 %v408
        %3415 = vmatprep.subr.mxu0 0.0
        %3416 = vmatpush2.msra.mxu0 %v407
        %3417 = vmatprep.subr.mxu0 0.0
        %3418 = vmatpush2.msra.mxu0 %v406
        %3419 = vmatprep.subr.mxu0 0.0
        %3420 = vmatpush2.msra.mxu0 %v405
        %3421 = vmatprep.subr.mxu0 0.0
        %3422 = vmatpush2.msra.mxu0 %v404
        %3423 = vmatprep.subr.mxu0 0.0
        %3424 = vmatpush2.msra.mxu0 %v403
        %3425 = vmatprep.subr.mxu0 0.0
        %3426 = vmatpush2.msra.mxu0 %v402
        %3427 = vmatprep.subr.mxu0 0.0
        %3428 = vmatpush2.msra.mxu0 %v401
        %3429 = vmatprep.subr.mxu0 0.0
        %3430 = vmatpush2.msra.mxu0 %v400
        %3431 = vmatprep.subr.mxu0 0.0
        %3432 = vmatpush2.msra.mxu0 %v399
        %3433 = vmatprep.mubr.f32.mxu0 %v3255
        %3434 = vmatmul.mubr.f32.gmra.mxu0 %v3254
        %v3435 = vpop.f32.mrf.mxu0
        %v3436 = vadd.f32 %v3351, %v3435
        %v3437 = vpop.f32.mrf.mxu0
        %3438 = vmatprep.mubr.f32.mxu0 %v3263
        %3439 = vmatmul.mubr.f32.gmra.mxu0 %v3262
        %v3440 = vpop.f32.mrf.mxu0
        %v3441 = vadd.f32 %v3356, %v3440
        %v3442 = vpop.f32.mrf.mxu0
        %3443 = vmatprep.mubr.f32.mxu0 %v3271
        %3444 = vmatmul.mubr.f32.gmra.mxu0 %v3270
        %v3445 = vpop.f32.mrf.mxu0
        %v3446 = vadd.f32 %v3361, %v3445
        %v3447 = vpop.f32.mrf.mxu0
        %3448 = vmatprep.mubr.f32.mxu0 %v3279
        %3449 = vmatmul.mubr.f32.gmra.mxu0 %v3278
        %v3450 = vpop.f32.mrf.mxu0
        %v3451 = vadd.f32 %v3366, %v3450
        %v3452 = vpop.f32.mrf.mxu0
        %3453 = vdwg.mxu0
        %3454 = vmatprep.subr.mxu0 0.0
        %3455 = vmatpush1.msra.mxu0 %v430
        %3456 = vmatprep.subr.mxu0 0.0
        %3457 = vmatpush1.msra.mxu0 %v429
        %3458 = vmatprep.subr.mxu0 0.0
        %3459 = vmatpush1.msra.mxu0 %v428
        %3460 = vmatprep.subr.mxu0 0.0
        %3461 = vmatpush1.msra.mxu0 %v427
        %3462 = vmatprep.subr.mxu0 0.0
        %3463 = vmatpush1.msra.mxu0 %v426
        %3464 = vmatprep.subr.mxu0 0.0
        %3465 = vmatpush1.msra.mxu0 %v425
        %3466 = vmatprep.subr.mxu0 0.0
        %3467 = vmatpush1.msra.mxu0 %v424
        %3468 = vmatprep.subr.mxu0 0.0
        %3469 = vmatpush1.msra.mxu0 %v423
        %3470 = vmatprep.subr.mxu0 0.0
        %3471 = vmatpush1.msra.mxu0 %v422
        %3472 = vmatprep.subr.mxu0 0.0
        %3473 = vmatpush1.msra.mxu0 %v421
        %3474 = vmatprep.subr.mxu0 0.0
        %3475 = vmatpush1.msra.mxu0 %v420
        %3476 = vmatprep.subr.mxu0 0.0
        %3477 = vmatpush1.msra.mxu0 %v419
        %3478 = vmatprep.subr.mxu0 0.0
        %3479 = vmatpush1.msra.mxu0 %v418
        %3480 = vmatprep.subr.mxu0 0.0
        %3481 = vmatpush1.msra.mxu0 %v417
        %3482 = vmatprep.subr.mxu0 0.0
        %3483 = vmatpush1.msra.mxu0 %v416
        %3484 = vmatprep.subr.mxu0 0.0
        %3485 = vmatpush1.msra.mxu0 %v415
        %3486 = vmatprep.subr.mxu0 0.0
        %3487 = vmatpush2.msra.mxu0 %v446
        %3488 = vmatprep.subr.mxu0 0.0
        %3489 = vmatpush2.msra.mxu0 %v445
        %3490 = vmatprep.subr.mxu0 0.0
        %3491 = vmatpush2.msra.mxu0 %v444
        %3492 = vmatprep.subr.mxu0 0.0
        %3493 = vmatpush2.msra.mxu0 %v443
        %3494 = vmatprep.subr.mxu0 0.0
        %3495 = vmatpush2.msra.mxu0 %v442
        %3496 = vmatprep.subr.mxu0 0.0
        %3497 = vmatpush2.msra.mxu0 %v441
        %3498 = vmatprep.subr.mxu0 0.0
        %3499 = vmatpush2.msra.mxu0 %v440
        %3500 = vmatprep.subr.mxu0 0.0
        %3501 = vmatpush2.msra.mxu0 %v439
        %3502 = vmatprep.subr.mxu0 0.0
        %3503 = vmatpush2.msra.mxu0 %v438
        %3504 = vmatprep.subr.mxu0 0.0
        %3505 = vmatpush2.msra.mxu0 %v437
        %3506 = vmatprep.subr.mxu0 0.0
        %3507 = vmatpush2.msra.mxu0 %v436
        %3508 = vmatprep.subr.mxu0 0.0
        %3509 = vmatpush2.msra.mxu0 %v435
        %3510 = vmatprep.subr.mxu0 0.0
        %3511 = vmatpush2.msra.mxu0 %v434
        %3512 = vmatprep.subr.mxu0 0.0
        %3513 = vmatpush2.msra.mxu0 %v433
        %3514 = vmatprep.subr.mxu0 0.0
        %3515 = vmatpush2.msra.mxu0 %v432
        %3516 = vmatprep.subr.mxu0 0.0
        %3517 = vmatpush2.msra.mxu0 %v431
        %3518 = vmatprep.mubr.f32.mxu0 %v3257
        %3519 = vmatmul.mubr.f32.gmra.mxu0 %v3256
        %v3520 = vpop.f32.mrf.mxu0
        %v3521 = vadd.f32 %v3436, %v3520
        %v3522 = vpop.f32.mrf.mxu0
        %3523 = vmatprep.mubr.f32.mxu0 %v3265
        %3524 = vmatmul.mubr.f32.gmra.mxu0 %v3264
        %v3525 = vpop.f32.mrf.mxu0
        %v3526 = vadd.f32 %v3441, %v3525
        %v3527 = vpop.f32.mrf.mxu0
        %3528 = vmatprep.mubr.f32.mxu0 %v3273
        %3529 = vmatmul.mubr.f32.gmra.mxu0 %v3272
        %v3530 = vpop.f32.mrf.mxu0
        %v3531 = vadd.f32 %v3446, %v3530
        %v3532 = vpop.f32.mrf.mxu0
        %3533 = vmatprep.mubr.f32.mxu0 %v3281
        %3534 = vmatmul.mubr.f32.gmra.mxu0 %v3280
        %v3535 = vpop.f32.mrf.mxu0
        %v3536 = vadd.f32 %v3451, %v3535
        %v3537 = vpop.f32.mrf.mxu0
        %3538 = vdwg.mxu0
        %3539 = vmatprep.subr.mxu0 0.0
        %3540 = vmatpush1.msra.mxu0 %v462
        %3541 = vmatprep.subr.mxu0 0.0
        %3542 = vmatpush1.msra.mxu0 %v461
        %3543 = vmatprep.subr.mxu0 0.0
        %3544 = vmatpush1.msra.mxu0 %v460
        %3545 = vmatprep.subr.mxu0 0.0
        %3546 = vmatpush1.msra.mxu0 %v459
        %3547 = vmatprep.subr.mxu0 0.0
        %3548 = vmatpush1.msra.mxu0 %v458
        %3549 = vmatprep.subr.mxu0 0.0
        %3550 = vmatpush1.msra.mxu0 %v457
        %3551 = vmatprep.subr.mxu0 0.0
        %3552 = vmatpush1.msra.mxu0 %v456
        %3553 = vmatprep.subr.mxu0 0.0
        %3554 = vmatpush1.msra.mxu0 %v455
        %3555 = vmatprep.subr.mxu0 0.0
        %3556 = vmatpush1.msra.mxu0 %v454
        %3557 = vmatprep.subr.mxu0 0.0
        %3558 = vmatpush1.msra.mxu0 %v453
        %3559 = vmatprep.subr.mxu0 0.0
        %3560 = vmatpush1.msra.mxu0 %v452
        %3561 = vmatprep.subr.mxu0 0.0
        %3562 = vmatpush1.msra.mxu0 %v451
        %3563 = vmatprep.subr.mxu0 0.0
        %3564 = vmatpush1.msra.mxu0 %v450
        %3565 = vmatprep.subr.mxu0 0.0
        %3566 = vmatpush1.msra.mxu0 %v449
        %3567 = vmatprep.subr.mxu0 0.0
        %3568 = vmatpush1.msra.mxu0 %v448
        %3569 = vmatprep.subr.mxu0 0.0
        %3570 = vmatpush1.msra.mxu0 %v447
        %3571 = vmatprep.subr.mxu0 0.0
        %3572 = vmatpush2.msra.mxu0 %v478
        %3573 = vmatprep.subr.mxu0 0.0
        %3574 = vmatpush2.msra.mxu0 %v477
        %3575 = vmatprep.subr.mxu0 0.0
        %3576 = vmatpush2.msra.mxu0 %v476
        %3577 = vmatprep.subr.mxu0 0.0
        %3578 = vmatpush2.msra.mxu0 %v475
        %3579 = vmatprep.subr.mxu0 0.0
        %3580 = vmatpush2.msra.mxu0 %v474
        %3581 = vmatprep.subr.mxu0 0.0
        %3582 = vmatpush2.msra.mxu0 %v473
        %3583 = vmatprep.subr.mxu0 0.0
        %3584 = vmatpush2.msra.mxu0 %v472
        %3585 = vmatprep.subr.mxu0 0.0
        %3586 = vmatpush2.msra.mxu0 %v471
        %3587 = vmatprep.subr.mxu0 0.0
        %3588 = vmatpush2.msra.mxu0 %v470
        %3589 = vmatprep.subr.mxu0 0.0
        %3590 = vmatpush2.msra.mxu0 %v469
        %3591 = vmatprep.subr.mxu0 0.0
        %3592 = vmatpush2.msra.mxu0 %v468
        %3593 = vmatprep.subr.mxu0 0.0
        %3594 = vmatpush2.msra.mxu0 %v467
        %3595 = vmatprep.subr.mxu0 0.0
        %3596 = vmatpush2.msra.mxu0 %v466
        %3597 = vmatprep.subr.mxu0 0.0
        %3598 = vmatpush2.msra.mxu0 %v465
        %3599 = vmatprep.subr.mxu0 0.0
        %3600 = vmatpush2.msra.mxu0 %v464
        %3601 = vmatprep.subr.mxu0 0.0
        %3602 = vmatpush2.msra.mxu0 %v463
        %3603 = vmatprep.mubr.f32.mxu0 %v3259
        %3604 = vmatmul.mubr.f32.gmra.mxu0 %v3258
        %v3605 = vpop.f32.mrf.mxu0
        %v3606 = vadd.f32 %v3521, %v3605
        %v3607 = vpop.f32.mrf.mxu0
        %3608 = vmatprep.mubr.f32.mxu0 %v3267
        %3609 = vmatmul.mubr.f32.gmra.mxu0 %v3266
        %v3610 = vpop.f32.mrf.mxu0
        %v3611 = vadd.f32 %v3526, %v3610
        %v3612 = vpop.f32.mrf.mxu0
        %3613 = vmatprep.mubr.f32.mxu0 %v3275
        %3614 = vmatmul.mubr.f32.gmra.mxu0 %v3274
        %v3615 = vpop.f32.mrf.mxu0
        %v3616 = vadd.f32 %v3531, %v3615
        %v3617 = vpop.f32.mrf.mxu0
        %3618 = vmatprep.mubr.f32.mxu0 %v3283
        %3619 = vmatmul.mubr.f32.gmra.mxu0 %v3282
        %v3620 = vpop.f32.mrf.mxu0
        %v3621 = vadd.f32 %v3536, %v3620
        %v3622 = vpop.f32.mrf.mxu0
        %3623 = vdwg.mxu0
        %v3624 = vsel %vm1694, %v3234, 0.0
        %v3625 = vsel %vm1694, %v3239, 0.0
        %v3626 = vadd.f32 %v3624, %v3625
        %v3627 = vsel %vm1694, %v3244, 0.0
        %v3628 = vadd.f32 %v3626, %v3627
        %v3629 = vsel %vm1694, %v3249, 0.0
        %v3630 = vadd.f32 %v3628, %v3629
        %v3631 = vrot.slane %v3630, 4
        %v3632 = vadd.f32 %v3630, %v3631
        %v3633 = vrot.slane %v3632, 2
        %v3634 = vadd.f32 %v3632, %v3633
        %v3635 = vrot.slane %v3634, 1
        %v3636 = vadd.f32 %v3634, %v3635
        %v3637 = vmul.f32 %v3636, 0.00024414063
        %v3638 = vsel %vm1694, %v3606, 0.0
        %v3639 = vsel %vm1694, %v3611, 0.0
        %v3640 = vadd.f32 %v3638, %v3639
        %v3641 = vsel %vm1694, %v3616, 0.0
        %v3642 = vadd.f32 %v3640, %v3641
        %v3643 = vsel %vm1694, %v3621, 0.0
        %v3644 = vadd.f32 %v3642, %v3643
        %v3645 = vrot.slane %v3644, 4
        %v3646 = vadd.f32 %v3644, %v3645
        %v3647 = vrot.slane %v3646, 2
        %v3648 = vadd.f32 %v3646, %v3647
        %v3649 = vrot.slane %v3648, 1
        %v3650 = vadd.f32 %v3648, %v3649
        %v3651 = vmul.f32 %v3650, 0.00024414063
        %v3652 = vmul.f32 %v3637, %v3637
        %v3653 = vsub.f32 %v3651, %v3652
        %v3654 = vmax.f32 %v3653, 0.0
        %v3655 = vadd.f32 %v3654, 1e-08
        %v3656 = vrsqrt.pop %v3655
        %v3657 = vsel %vm1728, %v3637, %v3656
        %v3659 = vsel %vm1694, %v3657, 0
        %3661 = vmatprep.subr.mxu0 0.0
        %3662 = vmatpush1.msra.mxu0 0.0
        %3663 = vmatprep.subr.mxu0 0.0
        %3664 = vmatpush1.msra.mxu0 0.0
        %3665 = vmatprep.subr.mxu0 0.0
        %3666 = vmatpush1.msra.mxu0 0.0
        %3667 = vmatprep.subr.mxu0 0.0
        %3668 = vmatpush1.msra.mxu0 0.0
        %3669 = vmatprep.subr.mxu0 0.0
        %3670 = vmatpush1.msra.mxu0 0.0
        %3671 = vmatprep.subr.mxu0 0.0
        %3672 = vmatpush1.msra.mxu0 0.0
        %3673 = vmatprep.subr.mxu0 0.0
        %3674 = vmatpush1.msra.mxu0 0.0
        %3675 = vmatprep.subr.mxu0 0.0
        %3676 = vmatpush1.msra.mxu0 0.0
        %3677 = vmatprep.subr.mxu0 0.0
        %3678 = vmatpush1.msra.mxu0 0.0
        %3679 = vmatprep.subr.mxu0 0.0
        %3680 = vmatpush1.msra.mxu0 0.0
        %3681 = vmatprep.subr.mxu0 0.0
        %3682 = vmatpush1.msra.mxu0 0.0
        %3683 = vmatprep.subr.mxu0 0.0
        %3684 = vmatpush1.msra.mxu0 0.0
        %3685 = vmatprep.subr.mxu0 0.0
        %3686 = vmatpush1.msra.mxu0 0.0
        %3687 = vmatprep.subr.mxu0 0.0
        %3688 = vmatpush1.msra.mxu0 0.0
        %3689 = vmatprep.subr.mxu0 0.0
        %3690 = vmatpush1.msra.mxu0 0.0
        %3691 = vmatprep.subr.mxu0 %v480
        %3692 = vmatpush1.msra.mxu0 %v479
        %3693 = vmatprep.subr.mxu0 0.0
        %3694 = vmatpush2.msra.mxu0 0.0
        %3695 = vmatprep.subr.mxu0 0.0
        %3696 = vmatpush2.msra.mxu0 0.0
        %3697 = vmatprep.subr.mxu0 0.0
        %3698 = vmatpush2.msra.mxu0 0.0
        %3699 = vmatprep.subr.mxu0 0.0
        %3700 = vmatpush2.msra.mxu0 0.0
        %3701 = vmatprep.subr.mxu0 0.0
        %3702 = vmatpush2.msra.mxu0 0.0
        %3703 = vmatprep.subr.mxu0 0.0
        %3704 = vmatpush2.msra.mxu0 0.0
        %3705 = vmatprep.subr.mxu0 0.0
        %3706 = vmatpush2.msra.mxu0 0.0
        %3707 = vmatprep.subr.mxu0 0.0
        %3708 = vmatpush2.msra.mxu0 0.0
        %3709 = vmatprep.subr.mxu0 0.0
        %3710 = vmatpush2.msra.mxu0 0.0
        %3711 = vmatprep.subr.mxu0 0.0
        %3712 = vmatpush2.msra.mxu0 0.0
        %3713 = vmatprep.subr.mxu0 0.0
        %3714 = vmatpush2.msra.mxu0 0.0
        %3715 = vmatprep.subr.mxu0 0.0
        %3716 = vmatpush2.msra.mxu0 0.0
        %3717 = vmatprep.subr.mxu0 0.0
        %3718 = vmatpush2.msra.mxu0 0.0
        %3719 = vmatprep.subr.mxu0 0.0
        %3720 = vmatpush2.msra.mxu0 0.0
        %3721 = vmatprep.subr.mxu0 0.0
        %3722 = vmatpush2.msra.mxu0 0.0
        %3723 = vmatprep.subr.mxu0 0.0
        %3724 = vmatpush2.msra.mxu0 0.0
        %3725 = vmatprep.mubr.f32.mxu0 0.0
        %3726 = vmatmul.mubr.f32.gmra.mxu0 %v3659
        %v3727 = vpop.f32.mrf.mxu0
        %v3728 = vadd.f32 0.0, %v3727
        %v3729 = vpop.f32.mrf.mxu0
        %v3730 = vadd.f32 0.0, %v3729
        %3731 = vdwg.mxu0
        %3732 = vmatprep.subr.mxu0 0.0
        %3733 = vmatpush1.msra.mxu0 0.0
        %3734 = vmatprep.subr.mxu0 0.0
        %3735 = vmatpush1.msra.mxu0 0.0
        %3736 = vmatprep.subr.mxu0 0.0
        %3737 = vmatpush1.msra.mxu0 0.0
        %3738 = vmatprep.subr.mxu0 0.0
        %3739 = vmatpush1.msra.mxu0 0.0
        %3740 = vmatprep.subr.mxu0 0.0
        %3741 = vmatpush1.msra.mxu0 0.0
        %3742 = vmatprep.subr.mxu0 0.0
        %3743 = vmatpush1.msra.mxu0 0.0
        %3744 = vmatprep.subr.mxu0 0.0
        %3745 = vmatpush1.msra.mxu0 0.0
        %3746 = vmatprep.subr.mxu0 0.0
        %3747 = vmatpush1.msra.mxu0 0.0
        %3748 = vmatprep.subr.mxu0 0.0
        %3749 = vmatpush1.msra.mxu0 0.0
        %3750 = vmatprep.subr.mxu0 0.0
        %3751 = vmatpush1.msra.mxu0 0.0
        %3752 = vmatprep.subr.mxu0 0.0
        %3753 = vmatpush1.msra.mxu0 0.0
        %3754 = vmatprep.subr.mxu0 0.0
        %3755 = vmatpush1.msra.mxu0 0.0
        %3756 = vmatprep.subr.mxu0 0.0
        %3757 = vmatpush1.msra.mxu0 0.0
        %3758 = vmatprep.subr.mxu0 0.0
        %3759 = vmatpush1.msra.mxu0 0.0
        %3760 = vmatprep.subr.mxu0 0.0
        %3761 = vmatpush1.msra.mxu0 0.0
        %3762 = vmatprep.subr.mxu0 %v482
        %3763 = vmatpush1.msra.mxu0 %v481
        %3764 = vmatprep.subr.mxu0 0.0
        %3765 = vmatpush2.msra.mxu0 0.0
        %3766 = vmatprep.subr.mxu0 0.0
        %3767 = vmatpush2.msra.mxu0 0.0
        %3768 = vmatprep.subr.mxu0 0.0
        %3769 = vmatpush2.msra.mxu0 0.0
        %3770 = vmatprep.subr.mxu0 0.0
        %3771 = vmatpush2.msra.mxu0 0.0
        %3772 = vmatprep.subr.mxu0 0.0
        %3773 = vmatpush2.msra.mxu0 0.0
        %3774 = vmatprep.subr.mxu0 0.0
        %3775 = vmatpush2.msra.mxu0 0.0
        %3776 = vmatprep.subr.mxu0 0.0
        %3777 = vmatpush2.msra.mxu0 0.0
        %3778 = vmatprep.subr.mxu0 0.0
        %3779 = vmatpush2.msra.mxu0 0.0
        %3780 = vmatprep.subr.mxu0 0.0
        %3781 = vmatpush2.msra.mxu0 0.0
        %3782 = vmatprep.subr.mxu0 0.0
        %3783 = vmatpush2.msra.mxu0 0.0
        %3784 = vmatprep.subr.mxu0 0.0
        %3785 = vmatpush2.msra.mxu0 0.0
        %3786 = vmatprep.subr.mxu0 0.0
        %3787 = vmatpush2.msra.mxu0 0.0
        %3788 = vmatprep.subr.mxu0 0.0
        %3789 = vmatpush2.msra.mxu0 0.0
        %3790 = vmatprep.subr.mxu0 0.0
        %3791 = vmatpush2.msra.mxu0 0.0
        %3792 = vmatprep.subr.mxu0 0.0
        %3793 = vmatpush2.msra.mxu0 0.0
        %3794 = vmatprep.subr.mxu0 0.0
        %3795 = vmatpush2.msra.mxu0 0.0
        %3796 = vmatprep.mubr.f32.mxu0 0.0
        %3797 = vmatmul.mubr.f32.gmra.mxu0 %v3659
        %v3798 = vpop.f32.mrf.mxu0
        %v3799 = vadd.f32 0.0, %v3798
        %v3800 = vpop.f32.mrf.mxu0
        %v3801 = vadd.f32 0.0, %v3800
        %3802 = vdwg.mxu0
        %3803 = vmatprep.subr.mxu0 0.0
        %3804 = vmatpush1.msra.mxu0 0.0
        %3805 = vmatprep.subr.mxu0 0.0
        %3806 = vmatpush1.msra.mxu0 0.0
        %3807 = vmatprep.subr.mxu0 0.0
        %3808 = vmatpush1.msra.mxu0 0.0
        %3809 = vmatprep.subr.mxu0 0.0
        %3810 = vmatpush1.msra.mxu0 0.0
        %3811 = vmatprep.subr.mxu0 0.0
        %3812 = vmatpush1.msra.mxu0 0.0
        %3813 = vmatprep.subr.mxu0 0.0
        %3814 = vmatpush1.msra.mxu0 0.0
        %3815 = vmatprep.subr.mxu0 0.0
        %3816 = vmatpush1.msra.mxu0 0.0
        %3817 = vmatprep.subr.mxu0 0.0
        %3818 = vmatpush1.msra.mxu0 0.0
        %3819 = vmatprep.subr.mxu0 0.0
        %3820 = vmatpush1.msra.mxu0 0.0
        %3821 = vmatprep.subr.mxu0 0.0
        %3822 = vmatpush1.msra.mxu0 0.0
        %3823 = vmatprep.subr.mxu0 0.0
        %3824 = vmatpush1.msra.mxu0 0.0
        %3825 = vmatprep.subr.mxu0 0.0
        %3826 = vmatpush1.msra.mxu0 0.0
        %3827 = vmatprep.subr.mxu0 0.0
        %3828 = vmatpush1.msra.mxu0 0.0
        %3829 = vmatprep.subr.mxu0 0.0
        %3830 = vmatpush1.msra.mxu0 0.0
        %3831 = vmatprep.subr.mxu0 0.0
        %3832 = vmatpush1.msra.mxu0 0.0
        %3833 = vmatprep.subr.mxu0 %v484
        %3834 = vmatpush1.msra.mxu0 %v483
        %3835 = vmatprep.subr.mxu0 0.0
        %3836 = vmatpush2.msra.mxu0 0.0
        %3837 = vmatprep.subr.mxu0 0.0
        %3838 = vmatpush2.msra.mxu0 0.0
        %3839 = vmatprep.subr.mxu0 0.0
        %3840 = vmatpush2.msra.mxu0 0.0
        %3841 = vmatprep.subr.mxu0 0.0
        %3842 = vmatpush2.msra.mxu0 0.0
        %3843 = vmatprep.subr.mxu0 0.0
        %3844 = vmatpush2.msra.mxu0 0.0
        %3845 = vmatprep.subr.mxu0 0.0
        %3846 = vmatpush2.msra.mxu0 0.0
        %3847 = vmatprep.subr.mxu0 0.0
        %3848 = vmatpush2.msra.mxu0 0.0
        %3849 = vmatprep.subr.mxu0 0.0
        %3850 = vmatpush2.msra.mxu0 0.0
        %3851 = vmatprep.subr.mxu0 0.0
        %3852 = vmatpush2.msra.mxu0 0.0
        %3853 = vmatprep.subr.mxu0 0.0
        %3854 = vmatpush2.msra.mxu0 0.0
        %3855 = vmatprep.subr.mxu0 0.0
        %3856 = vmatpush2.msra.mxu0 0.0
        %3857 = vmatprep.subr.mxu0 0.0
        %3858 = vmatpush2.msra.mxu0 0.0
        %3859 = vmatprep.subr.mxu0 0.0
        %3860 = vmatpush2.msra.mxu0 0.0
        %3861 = vmatprep.subr.mxu0 0.0
        %3862 = vmatpush2.msra.mxu0 0.0
        %3863 = vmatprep.subr.mxu0 0.0
        %3864 = vmatpush2.msra.mxu0 0.0
        %3865 = vmatprep.subr.mxu0 0.0
        %3866 = vmatpush2.msra.mxu0 0.0
        %3867 = vmatprep.mubr.f32.mxu0 0.0
        %3868 = vmatmul.mubr.f32.gmra.mxu0 %v3659
        %v3869 = vpop.f32.mrf.mxu0
        %v3870 = vadd.f32 0.0, %v3869
        %v3871 = vpop.f32.mrf.mxu0
        %v3872 = vadd.f32 0.0, %v3871
        %3873 = vdwg.mxu0
        %3874 = vmatprep.subr.mxu0 0.0
        %3875 = vmatpush1.msra.mxu0 0.0
        %3876 = vmatprep.subr.mxu0 0.0
        %3877 = vmatpush1.msra.mxu0 0.0
        %3878 = vmatprep.subr.mxu0 0.0
        %3879 = vmatpush1.msra.mxu0 0.0
        %3880 = vmatprep.subr.mxu0 0.0
        %3881 = vmatpush1.msra.mxu0 0.0
        %3882 = vmatprep.subr.mxu0 0.0
        %3883 = vmatpush1.msra.mxu0 0.0
        %3884 = vmatprep.subr.mxu0 0.0
        %3885 = vmatpush1.msra.mxu0 0.0
        %3886 = vmatprep.subr.mxu0 0.0
        %3887 = vmatpush1.msra.mxu0 0.0
        %3888 = vmatprep.subr.mxu0 0.0
        %3889 = vmatpush1.msra.mxu0 0.0
        %3890 = vmatprep.subr.mxu0 0.0
        %3891 = vmatpush1.msra.mxu0 0.0
        %3892 = vmatprep.subr.mxu0 0.0
        %3893 = vmatpush1.msra.mxu0 0.0
        %3894 = vmatprep.subr.mxu0 0.0
        %3895 = vmatpush1.msra.mxu0 0.0
        %3896 = vmatprep.subr.mxu0 0.0
        %3897 = vmatpush1.msra.mxu0 0.0
        %3898 = vmatprep.subr.mxu0 0.0
        %3899 = vmatpush1.msra.mxu0 0.0
        %3900 = vmatprep.subr.mxu0 0.0
        %3901 = vmatpush1.msra.mxu0 0.0
        %3902 = vmatprep.subr.mxu0 0.0
        %3903 = vmatpush1.msra.mxu0 0.0
        %3904 = vmatprep.subr.mxu0 %v486
        %3905 = vmatpush1.msra.mxu0 %v485
        %3906 = vmatprep.subr.mxu0 0.0
        %3907 = vmatpush2.msra.mxu0 0.0
        %3908 = vmatprep.subr.mxu0 0.0
        %3909 = vmatpush2.msra.mxu0 0.0
        %3910 = vmatprep.subr.mxu0 0.0
        %3911 = vmatpush2.msra.mxu0 0.0
        %3912 = vmatprep.subr.mxu0 0.0
        %3913 = vmatpush2.msra.mxu0 0.0
        %3914 = vmatprep.subr.mxu0 0.0
        %3915 = vmatpush2.msra.mxu0 0.0
        %3916 = vmatprep.subr.mxu0 0.0
        %3917 = vmatpush2.msra.mxu0 0.0
        %3918 = vmatprep.subr.mxu0 0.0
        %3919 = vmatpush2.msra.mxu0 0.0
        %3920 = vmatprep.subr.mxu0 0.0
        %3921 = vmatpush2.msra.mxu0 0.0
        %3922 = vmatprep.subr.mxu0 0.0
        %3923 = vmatpush2.msra.mxu0 0.0
        %3924 = vmatprep.subr.mxu0 0.0
        %3925 = vmatpush2.msra.mxu0 0.0
        %3926 = vmatprep.subr.mxu0 0.0
        %3927 = vmatpush2.msra.mxu0 0.0
        %3928 = vmatprep.subr.mxu0 0.0
        %3929 = vmatpush2.msra.mxu0 0.0
        %3930 = vmatprep.subr.mxu0 0.0
        %3931 = vmatpush2.msra.mxu0 0.0
        %3932 = vmatprep.subr.mxu0 0.0
        %3933 = vmatpush2.msra.mxu0 0.0
        %3934 = vmatprep.subr.mxu0 0.0
        %3935 = vmatpush2.msra.mxu0 0.0
        %3936 = vmatprep.subr.mxu0 0.0
        %3937 = vmatpush2.msra.mxu0 0.0
        %3938 = vmatprep.mubr.f32.mxu0 0.0
        %3939 = vmatmul.mubr.f32.gmra.mxu0 %v3659
        %v3940 = vpop.f32.mrf.mxu0
        %v3941 = vadd.f32 0.0, %v3940
        %v3942 = vpop.f32.mrf.mxu0
        %v3943 = vadd.f32 0.0, %v3942
        %3944 = vdwg.mxu0
        %v3945 = vlaneseq
        %v3946 = vshrl.u32 %v3945, 7
        %v3947 = vsub.s32 0, %v3946
        %v3948 = vrot.slane %v3728, %v3947
        %v3949 = vlaneseq
        %v3950 = vshrl.u32 %v3949, 7
        %v3951 = vsub.s32 0, %v3950
        %v3952 = vrot.slane %v3730, %v3951
        %v3953 = vlaneseq
        %v3954 = vshrl.u32 %v3953, 7
        %v3955 = vsub.s32 0, %v3954
        %v3956 = vrot.slane %v3799, %v3955
        %v3957 = vlaneseq
        %v3958 = vshrl.u32 %v3957, 7
        %v3959 = vsub.s32 0, %v3958
        %v3960 = vrot.slane %v3801, %v3959
        %v3961 = vlaneseq
        %v3962 = vshrl.u32 %v3961, 7
        %v3963 = vsub.s32 0, %v3962
        %v3964 = vrot.slane %v3870, %v3963
        %v3965 = vlaneseq
        %v3966 = vshrl.u32 %v3965, 7
        %v3967 = vsub.s32 0, %v3966
        %v3968 = vrot.slane %v3872, %v3967
        %v3969 = vlaneseq
        %v3970 = vshrl.u32 %v3969, 7
        %v3971 = vsub.s32 0, %v3970
        %v3972 = vrot.slane %v3941, %v3971
        %v3973 = vlaneseq
        %v3974 = vshrl.u32 %v3973, 7
        %v3975 = vsub.s32 0, %v3974
        %v3976 = vrot.slane %v3943, %v3975
        %v3977 = vsub.f32 %v2880, %v3948
        %v3978 = vsub.f32 %v2881, %v3952
        %v3979 = vsub.f32 %v2882, %v3956
        %v3980 = vsub.f32 %v2883, %v3960
        %v3981 = vsub.f32 %v2884, %v3964
        %v3982 = vsub.f32 %v2885, %v3968
        %v3983 = vsub.f32 %v2886, %v3972
        %v3984 = vsub.f32 %v2887, %v3976
        %v3985 = vsub.f32 %v2888, %v3948
        %v3986 = vsub.f32 %v2889, %v3952
        %v3987 = vsub.f32 %v2890, %v3956
        %v3988 = vsub.f32 %v2891, %v3960
        %v3989 = vsub.f32 %v2892, %v3964
        %v3990 = vsub.f32 %v2893, %v3968
        %v3991 = vsub.f32 %v2894, %v3972
        %v3992 = vsub.f32 %v2895, %v3976
        %v3993 = vsub.f32 %v2896, %v3948
        %v3994 = vsub.f32 %v2897, %v3952
        %v3995 = vsub.f32 %v2898, %v3956
        %v3996 = vsub.f32 %v2899, %v3960
        %v3997 = vsub.f32 %v2900, %v3964
        %v3998 = vsub.f32 %v2901, %v3968
        %v3999 = vsub.f32 %v2902, %v3972
        %v4000 = vsub.f32 %v2903, %v3976
        %v4001 = vsub.f32 %v2904, %v3948
        %v4002 = vsub.f32 %v2905, %v3952
        %v4003 = vsub.f32 %v2906, %v3956
        %v4004 = vsub.f32 %v2907, %v3960
        %v4005 = vsub.f32 %v2908, %v3964
        %v4006 = vsub.f32 %v2909, %v3968
        %v4007 = vsub.f32 %v2910, %v3972
        %v4008 = vsub.f32 %v2911, %v3976
        %v4009 = vlaneseq
        %v4010 = vshrl.u32 %v4009, 7
        %v4011 = vsub.s32 1, %v4010
        %v4012 = vrot.slane %v3728, %v4011
        %v4013 = vlaneseq
        %v4014 = vshrl.u32 %v4013, 7
        %v4015 = vsub.s32 1, %v4014
        %v4016 = vrot.slane %v3730, %v4015
        %v4017 = vlaneseq
        %v4018 = vshrl.u32 %v4017, 7
        %v4019 = vsub.s32 1, %v4018
        %v4020 = vrot.slane %v3799, %v4019
        %v4021 = vlaneseq
        %v4022 = vshrl.u32 %v4021, 7
        %v4023 = vsub.s32 1, %v4022
        %v4024 = vrot.slane %v3801, %v4023
        %v4025 = vlaneseq
        %v4026 = vshrl.u32 %v4025, 7
        %v4027 = vsub.s32 1, %v4026
        %v4028 = vrot.slane %v3870, %v4027
        %v4029 = vlaneseq
        %v4030 = vshrl.u32 %v4029, 7
        %v4031 = vsub.s32 1, %v4030
        %v4032 = vrot.slane %v3872, %v4031
        %v4033 = vlaneseq
        %v4034 = vshrl.u32 %v4033, 7
        %v4035 = vsub.s32 1, %v4034
        %v4036 = vrot.slane %v3941, %v4035
        %v4037 = vlaneseq
        %v4038 = vshrl.u32 %v4037, 7
        %v4039 = vsub.s32 1, %v4038
        %v4040 = vrot.slane %v3943, %v4039
        %v4041 = vmul.f32 %v3977, %v4012
        %v4042 = vmul.f32 %v3978, %v4016
        %v4043 = vmul.f32 %v3979, %v4020
        %v4044 = vmul.f32 %v3980, %v4024
        %v4045 = vmul.f32 %v3981, %v4028
        %v4046 = vmul.f32 %v3982, %v4032
        %v4047 = vmul.f32 %v3983, %v4036
        %v4048 = vmul.f32 %v3984, %v4040
        %v4049 = vmul.f32 %v3985, %v4012
        %v4050 = vmul.f32 %v3986, %v4016
        %v4051 = vmul.f32 %v3987, %v4020
        %v4052 = vmul.f32 %v3988, %v4024
        %v4053 = vmul.f32 %v3989, %v4028
        %v4054 = vmul.f32 %v3990, %v4032
        %v4055 = vmul.f32 %v3991, %v4036
        %v4056 = vmul.f32 %v3992, %v4040
        %v4057 = vmul.f32 %v3993, %v4012
        %v4058 = vmul.f32 %v3994, %v4016
        %v4059 = vmul.f32 %v3995, %v4020
        %v4060 = vmul.f32 %v3996, %v4024
        %v4061 = vmul.f32 %v3997, %v4028
        %v4062 = vmul.f32 %v3998, %v4032
        %v4063 = vmul.f32 %v3999, %v4036
        %v4064 = vmul.f32 %v4000, %v4040
        %v4065 = vmul.f32 %v4001, %v4012
        %v4066 = vmul.f32 %v4002, %v4016
        %v4067 = vmul.f32 %v4003, %v4020
        %v4068 = vmul.f32 %v4004, %v4024
        %v4069 = vmul.f32 %v4005, %v4028
        %v4070 = vmul.f32 %v4006, %v4032
        %v4071 = vmul.f32 %v4007, %v4036
        %v4072 = vmul.f32 %v4008, %v4040
        %4073 = vset.pattern.permute.xlu0 4
        %4074 = vperm.xlu0 %4073, %v345
        %v4075 = vpop.permute.xlu0 %4074
        %4077 = vset.pattern.permute.xlu0 4
        %4078 = vperm.xlu0 %4077, %v346
        %v4079 = vpop.permute.xlu0 %4078
        %4081 = vset.pattern.permute.xlu0 4
        %4082 = vperm.xlu0 %4081, %v347
        %v4083 = vpop.permute.xlu0 %4082
        %4085 = vset.pattern.permute.xlu0 4
        %4086 = vperm.xlu0 %4085, %v348
        %v4087 = vpop.permute.xlu0 %4086
        %v4089 = vmul.f32 %v4041, %v4075
        %v4090 = vmul.f32 %v4042, %v4075
        %v4091 = vmul.f32 %v4043, %v4075
        %v4092 = vmul.f32 %v4044, %v4075
        %v4093 = vmul.f32 %v4045, %v4075
        %v4094 = vmul.f32 %v4046, %v4075
        %v4095 = vmul.f32 %v4047, %v4075
        %v4096 = vmul.f32 %v4048, %v4075
        %v4097 = vmul.f32 %v4049, %v4079
        %v4098 = vmul.f32 %v4050, %v4079
        %v4099 = vmul.f32 %v4051, %v4079
        %v4100 = vmul.f32 %v4052, %v4079
        %v4101 = vmul.f32 %v4053, %v4079
        %v4102 = vmul.f32 %v4054, %v4079
        %v4103 = vmul.f32 %v4055, %v4079
        %v4104 = vmul.f32 %v4056, %v4079
        %v4105 = vmul.f32 %v4057, %v4083
        %v4106 = vmul.f32 %v4058, %v4083
        %v4107 = vmul.f32 %v4059, %v4083
        %v4108 = vmul.f32 %v4060, %v4083
        %v4109 = vmul.f32 %v4061, %v4083
        %v4110 = vmul.f32 %v4062, %v4083
        %v4111 = vmul.f32 %v4063, %v4083
        %v4112 = vmul.f32 %v4064, %v4083
        %v4113 = vmul.f32 %v4065, %v4087
        %v4114 = vmul.f32 %v4066, %v4087
        %v4115 = vmul.f32 %v4067, %v4087
        %v4116 = vmul.f32 %v4068, %v4087
        %v4117 = vmul.f32 %v4069, %v4087
        %v4118 = vmul.f32 %v4070, %v4087
        %v4119 = vmul.f32 %v4071, %v4087
        %v4120 = vmul.f32 %v4072, %v4087
        %4121 = vset.pattern.permute.xlu0 5
        %4122 = vperm.xlu0 %4121, %v345
        %v4123 = vpop.permute.xlu0 %4122
        %4125 = vset.pattern.permute.xlu0 5
        %4126 = vperm.xlu0 %4125, %v346
        %v4127 = vpop.permute.xlu0 %4126
        %4129 = vset.pattern.permute.xlu0 5
        %4130 = vperm.xlu0 %4129, %v347
        %v4131 = vpop.permute.xlu0 %4130
        %4133 = vset.pattern.permute.xlu0 5
        %4134 = vperm.xlu0 %4133, %v348
        %v4135 = vpop.permute.xlu0 %4134
        %v4137 = vadd.f32 %v4089, %v4123
        %v4138 = vadd.f32 %v4090, %v4123
        %v4139 = vadd.f32 %v4091, %v4123
        %v4140 = vadd.f32 %v4092, %v4123
        %v4141 = vadd.f32 %v4093, %v4123
        %v4142 = vadd.f32 %v4094, %v4123
        %v4143 = vadd.f32 %v4095, %v4123
        %v4144 = vadd.f32 %v4096, %v4123
        %v4145 = vadd.f32 %v4097, %v4127
        %v4146 = vadd.f32 %v4098, %v4127
        %v4147 = vadd.f32 %v4099, %v4127
        %v4148 = vadd.f32 %v4100, %v4127
        %v4149 = vadd.f32 %v4101, %v4127
        %v4150 = vadd.f32 %v4102, %v4127
        %v4151 = vadd.f32 %v4103, %v4127
        %v4152 = vadd.f32 %v4104, %v4127
        %v4153 = vadd.f32 %v4105, %v4131
        %v4154 = vadd.f32 %v4106, %v4131
        %v4155 = vadd.f32 %v4107, %v4131
        %v4156 = vadd.f32 %v4108, %v4131
        %v4157 = vadd.f32 %v4109, %v4131
        %v4158 = vadd.f32 %v4110, %v4131
        %v4159 = vadd.f32 %v4111, %v4131
        %v4160 = vadd.f32 %v4112, %v4131
        %v4161 = vadd.f32 %v4113, %v4135
        %v4162 = vadd.f32 %v4114, %v4135
        %v4163 = vadd.f32 %v4115, %v4135
        %v4164 = vadd.f32 %v4116, %v4135
        %v4165 = vadd.f32 %v4117, %v4135
        %v4166 = vadd.f32 %v4118, %v4135
        %v4167 = vadd.f32 %v4119, %v4135
        %v4168 = vadd.f32 %v4120, %v4135
        %v4169 = vld [vmem:[%s3] sm:$0xff]
        %v4170 = vld [vmem:[%s3 + $0x8] sm:$0xff]
        %4171 = vset.pattern.permute.xlu0 6
        %4172 = vperm.xlu0 %4171, %v345
        %v4173 = vpop.permute.xlu0 %4172
        %4175 = vset.pattern.permute.xlu0 6
        %4176 = vperm.xlu0 %4175, %v346
        %v4177 = vpop.permute.xlu0 %4176
        %vm4179 = vcmask 261120
        %v4181 = vsel %vm4179, %v4169, 0
        %v4184 = vsel %vm4179, %v4170, 0
        %4186 = vmatprep.subr.mxu0 0.0
        %4187 = vmatpush1.msra.mxu0 0.0
        %4188 = vmatprep.subr.mxu0 0.0
        %4189 = vmatpush1.msra.mxu0 0.0
        %4190 = vmatprep.subr.mxu0 0.0
        %4191 = vmatpush1.msra.mxu0 0.0
        %4192 = vmatprep.subr.mxu0 0.0
        %4193 = vmatpush1.msra.mxu0 0.0
        %4194 = vmatprep.subr.mxu0 0.0
        %4195 = vmatpush1.msra.mxu0 0.0
        %4196 = vmatprep.subr.mxu0 0.0
        %4197 = vmatpush1.msra.mxu0 0.0
        %4198 = vmatprep.subr.mxu0 0.0
        %4199 = vmatpush1.msra.mxu0 0.0
        %4200 = vmatprep.subr.mxu0 0.0
        %4201 = vmatpush1.msra.mxu0 0.0
        %4202 = vmatprep.subr.mxu0 0.0
        %4203 = vmatpush1.msra.mxu0 0.0
        %4204 = vmatprep.subr.mxu0 0.0
        %4205 = vmatpush1.msra.mxu0 0.0
        %4206 = vmatprep.subr.mxu0 0.0
        %4207 = vmatpush1.msra.mxu0 0.0
        %4208 = vmatprep.subr.mxu0 0.0
        %4209 = vmatpush1.msra.mxu0 0.0
        %4210 = vmatprep.subr.mxu0 %v4162
        %4211 = vmatpush1.msra.mxu0 %v4161
        %4212 = vmatprep.subr.mxu0 %v4154
        %4213 = vmatpush1.msra.mxu0 %v4153
        %4214 = vmatprep.subr.mxu0 %v4146
        %4215 = vmatpush1.msra.mxu0 %v4145
        %4216 = vmatprep.subr.mxu0 %v4138
        %4217 = vmatpush1.msra.mxu0 %v4137
        %4218 = vmatprep.subr.mxu0 0.0
        %4219 = vmatpush2.msra.mxu0 0.0
        %4220 = vmatprep.subr.mxu0 0.0
        %4221 = vmatpush2.msra.mxu0 0.0
        %4222 = vmatprep.subr.mxu0 0.0
        %4223 = vmatpush2.msra.mxu0 0.0
        %4224 = vmatprep.subr.mxu0 0.0
        %4225 = vmatpush2.msra.mxu0 0.0
        %4226 = vmatprep.subr.mxu0 0.0
        %4227 = vmatpush2.msra.mxu0 0.0
        %4228 = vmatprep.subr.mxu0 0.0
        %4229 = vmatpush2.msra.mxu0 0.0
        %4230 = vmatprep.subr.mxu0 0.0
        %4231 = vmatpush2.msra.mxu0 0.0
        %4232 = vmatprep.subr.mxu0 0.0
        %4233 = vmatpush2.msra.mxu0 0.0
        %4234 = vmatprep.subr.mxu0 0.0
        %4235 = vmatpush2.msra.mxu0 0.0
        %4236 = vmatprep.subr.mxu0 0.0
        %4237 = vmatpush2.msra.mxu0 0.0
        %4238 = vmatprep.subr.mxu0 0.0
        %4239 = vmatpush2.msra.mxu0 0.0
        %4240 = vmatprep.subr.mxu0 0.0
        %4241 = vmatpush2.msra.mxu0 0.0
        %4242 = vmatprep.subr.mxu0 0.0
        %4243 = vmatpush2.msra.mxu0 0.0
        %4244 = vmatprep.subr.mxu0 0.0
        %4245 = vmatpush2.msra.mxu0 0.0
        %4246 = vmatprep.subr.mxu0 0.0
        %4247 = vmatpush2.msra.mxu0 0.0
        %4248 = vmatprep.subr.mxu0 0.0
        %4249 = vmatpush2.msra.mxu0 0.0
        %4250 = vmatprep.mubr.f32.mxu0 0.0
        %4251 = vmatmul.mubr.f32.gmra.mxu0 %v4181
        %v4252 = vpop.f32.mrf.mxu0
        %v4253 = vadd.f32 %v4173, %v4252
        %v4254 = vpop.f32.mrf.mxu0
        %v4255 = vadd.f32 %v4173, %v4254
        %4256 = vmatprep.mubr.f32.mxu0 0.0
        %4257 = vmatmul.mubr.f32.gmra.mxu0 %v4184
        %v4258 = vpop.f32.mrf.mxu0
        %v4259 = vadd.f32 %v4177, %v4258
        %v4260 = vpop.f32.mrf.mxu0
        %v4261 = vadd.f32 %v4177, %v4260
        %4262 = vdwg.mxu0
        %4263 = vmatprep.subr.mxu0 0.0
        %4264 = vmatpush1.msra.mxu0 0.0
        %4265 = vmatprep.subr.mxu0 0.0
        %4266 = vmatpush1.msra.mxu0 0.0
        %4267 = vmatprep.subr.mxu0 0.0
        %4268 = vmatpush1.msra.mxu0 0.0
        %4269 = vmatprep.subr.mxu0 0.0
        %4270 = vmatpush1.msra.mxu0 0.0
        %4271 = vmatprep.subr.mxu0 0.0
        %4272 = vmatpush1.msra.mxu0 0.0
        %4273 = vmatprep.subr.mxu0 0.0
        %4274 = vmatpush1.msra.mxu0 0.0
        %4275 = vmatprep.subr.mxu0 0.0
        %4276 = vmatpush1.msra.mxu0 0.0
        %4277 = vmatprep.subr.mxu0 0.0
        %4278 = vmatpush1.msra.mxu0 0.0
        %4279 = vmatprep.subr.mxu0 0.0
        %4280 = vmatpush1.msra.mxu0 0.0
        %4281 = vmatprep.subr.mxu0 0.0
        %4282 = vmatpush1.msra.mxu0 0.0
        %4283 = vmatprep.subr.mxu0 0.0
        %4284 = vmatpush1.msra.mxu0 0.0
        %4285 = vmatprep.subr.mxu0 0.0
        %4286 = vmatpush1.msra.mxu0 0.0
        %4287 = vmatprep.subr.mxu0 %v4164
        %4288 = vmatpush1.msra.mxu0 %v4163
        %4289 = vmatprep.subr.mxu0 %v4156
        %4290 = vmatpush1.msra.mxu0 %v4155
        %4291 = vmatprep.subr.mxu0 %v4148
        %4292 = vmatpush1.msra.mxu0 %v4147
        %4293 = vmatprep.subr.mxu0 %v4140
        %4294 = vmatpush1.msra.mxu0 %v4139
        %4295 = vmatprep.subr.mxu0 0.0
        %4296 = vmatpush2.msra.mxu0 0.0
        %4297 = vmatprep.subr.mxu0 0.0
        %4298 = vmatpush2.msra.mxu0 0.0
        %4299 = vmatprep.subr.mxu0 0.0
        %4300 = vmatpush2.msra.mxu0 0.0
        %4301 = vmatprep.subr.mxu0 0.0
        %4302 = vmatpush2.msra.mxu0 0.0
        %4303 = vmatprep.subr.mxu0 0.0
        %4304 = vmatpush2.msra.mxu0 0.0
        %4305 = vmatprep.subr.mxu0 0.0
        %4306 = vmatpush2.msra.mxu0 0.0
        %4307 = vmatprep.subr.mxu0 0.0
        %4308 = vmatpush2.msra.mxu0 0.0
        %4309 = vmatprep.subr.mxu0 0.0
        %4310 = vmatpush2.msra.mxu0 0.0
        %4311 = vmatprep.subr.mxu0 0.0
        %4312 = vmatpush2.msra.mxu0 0.0
        %4313 = vmatprep.subr.mxu0 0.0
        %4314 = vmatpush2.msra.mxu0 0.0
        %4315 = vmatprep.subr.mxu0 0.0
        %4316 = vmatpush2.msra.mxu0 0.0
        %4317 = vmatprep.subr.mxu0 0.0
        %4318 = vmatpush2.msra.mxu0 0.0
        %4319 = vmatprep.subr.mxu0 0.0
        %4320 = vmatpush2.msra.mxu0 0.0
        %4321 = vmatprep.subr.mxu0 0.0
        %4322 = vmatpush2.msra.mxu0 0.0
        %4323 = vmatprep.subr.mxu0 0.0
        %4324 = vmatpush2.msra.mxu0 0.0
        %4325 = vmatprep.subr.mxu0 0.0
        %4326 = vmatpush2.msra.mxu0 0.0
        %4327 = vmatprep.mubr.f32.mxu0 0.0
        %4328 = vmatmul.mubr.f32.gmra.mxu0 %v4181
        %v4329 = vpop.f32.mrf.mxu0
        %v4330 = vadd.f32 %v4173, %v4329
        %v4331 = vpop.f32.mrf.mxu0
        %v4332 = vadd.f32 %v4173, %v4331
        %4333 = vmatprep.mubr.f32.mxu0 0.0
        %4334 = vmatmul.mubr.f32.gmra.mxu0 %v4184
        %v4335 = vpop.f32.mrf.mxu0
        %v4336 = vadd.f32 %v4177, %v4335
        %v4337 = vpop.f32.mrf.mxu0
        %v4338 = vadd.f32 %v4177, %v4337
        %4339 = vdwg.mxu0
        %4340 = vmatprep.subr.mxu0 0.0
        %4341 = vmatpush1.msra.mxu0 0.0
        %4342 = vmatprep.subr.mxu0 0.0
        %4343 = vmatpush1.msra.mxu0 0.0
        %4344 = vmatprep.subr.mxu0 0.0
        %4345 = vmatpush1.msra.mxu0 0.0
        %4346 = vmatprep.subr.mxu0 0.0
        %4347 = vmatpush1.msra.mxu0 0.0
        %4348 = vmatprep.subr.mxu0 0.0
        %4349 = vmatpush1.msra.mxu0 0.0
        %4350 = vmatprep.subr.mxu0 0.0
        %4351 = vmatpush1.msra.mxu0 0.0
        %4352 = vmatprep.subr.mxu0 0.0
        %4353 = vmatpush1.msra.mxu0 0.0
        %4354 = vmatprep.subr.mxu0 0.0
        %4355 = vmatpush1.msra.mxu0 0.0
        %4356 = vmatprep.subr.mxu0 0.0
        %4357 = vmatpush1.msra.mxu0 0.0
        %4358 = vmatprep.subr.mxu0 0.0
        %4359 = vmatpush1.msra.mxu0 0.0
        %4360 = vmatprep.subr.mxu0 0.0
        %4361 = vmatpush1.msra.mxu0 0.0
        %4362 = vmatprep.subr.mxu0 0.0
        %4363 = vmatpush1.msra.mxu0 0.0
        %4364 = vmatprep.subr.mxu0 %v4166
        %4365 = vmatpush1.msra.mxu0 %v4165
        %4366 = vmatprep.subr.mxu0 %v4158
        %4367 = vmatpush1.msra.mxu0 %v4157
        %4368 = vmatprep.subr.mxu0 %v4150
        %4369 = vmatpush1.msra.mxu0 %v4149
        %4370 = vmatprep.subr.mxu0 %v4142
        %4371 = vmatpush1.msra.mxu0 %v4141
        %4372 = vmatprep.subr.mxu0 0.0
        %4373 = vmatpush2.msra.mxu0 0.0
        %4374 = vmatprep.subr.mxu0 0.0
        %4375 = vmatpush2.msra.mxu0 0.0
        %4376 = vmatprep.subr.mxu0 0.0
        %4377 = vmatpush2.msra.mxu0 0.0
        %4378 = vmatprep.subr.mxu0 0.0
        %4379 = vmatpush2.msra.mxu0 0.0
        %4380 = vmatprep.subr.mxu0 0.0
        %4381 = vmatpush2.msra.mxu0 0.0
        %4382 = vmatprep.subr.mxu0 0.0
        %4383 = vmatpush2.msra.mxu0 0.0
        %4384 = vmatprep.subr.mxu0 0.0
        %4385 = vmatpush2.msra.mxu0 0.0
        %4386 = vmatprep.subr.mxu0 0.0
        %4387 = vmatpush2.msra.mxu0 0.0
        %4388 = vmatprep.subr.mxu0 0.0
        %4389 = vmatpush2.msra.mxu0 0.0
        %4390 = vmatprep.subr.mxu0 0.0
        %4391 = vmatpush2.msra.mxu0 0.0
        %4392 = vmatprep.subr.mxu0 0.0
        %4393 = vmatpush2.msra.mxu0 0.0
        %4394 = vmatprep.subr.mxu0 0.0
        %4395 = vmatpush2.msra.mxu0 0.0
        %4396 = vmatprep.subr.mxu0 0.0
        %4397 = vmatpush2.msra.mxu0 0.0
        %4398 = vmatprep.subr.mxu0 0.0
        %4399 = vmatpush2.msra.mxu0 0.0
        %4400 = vmatprep.subr.mxu0 0.0
        %4401 = vmatpush2.msra.mxu0 0.0
        %4402 = vmatprep.subr.mxu0 0.0
        %4403 = vmatpush2.msra.mxu0 0.0
        %4404 = vmatprep.mubr.f32.mxu0 0.0
        %4405 = vmatmul.mubr.f32.gmra.mxu0 %v4181
        %v4406 = vpop.f32.mrf.mxu0
        %v4407 = vadd.f32 %v4173, %v4406
        %v4408 = vpop.f32.mrf.mxu0
        %v4409 = vadd.f32 %v4173, %v4408
        %4410 = vmatprep.mubr.f32.mxu0 0.0
        %4411 = vmatmul.mubr.f32.gmra.mxu0 %v4184
        %v4412 = vpop.f32.mrf.mxu0
        %v4413 = vadd.f32 %v4177, %v4412
        %v4414 = vpop.f32.mrf.mxu0
        %v4415 = vadd.f32 %v4177, %v4414
        %4416 = vdwg.mxu0
        %4417 = vmatprep.subr.mxu0 0.0
        %4418 = vmatpush1.msra.mxu0 0.0
        %4419 = vmatprep.subr.mxu0 0.0
        %4420 = vmatpush1.msra.mxu0 0.0
        %4421 = vmatprep.subr.mxu0 0.0
        %4422 = vmatpush1.msra.mxu0 0.0
        %4423 = vmatprep.subr.mxu0 0.0
        %4424 = vmatpush1.msra.mxu0 0.0
        %4425 = vmatprep.subr.mxu0 0.0
        %4426 = vmatpush1.msra.mxu0 0.0
        %4427 = vmatprep.subr.mxu0 0.0
        %4428 = vmatpush1.msra.mxu0 0.0
        %4429 = vmatprep.subr.mxu0 0.0
        %4430 = vmatpush1.msra.mxu0 0.0
        %4431 = vmatprep.subr.mxu0 0.0
        %4432 = vmatpush1.msra.mxu0 0.0
        %4433 = vmatprep.subr.mxu0 0.0
        %4434 = vmatpush1.msra.mxu0 0.0
        %4435 = vmatprep.subr.mxu0 0.0
        %4436 = vmatpush1.msra.mxu0 0.0
        %4437 = vmatprep.subr.mxu0 0.0
        %4438 = vmatpush1.msra.mxu0 0.0
        %4439 = vmatprep.subr.mxu0 0.0
        %4440 = vmatpush1.msra.mxu0 0.0
        %4441 = vmatprep.subr.mxu0 %v4168
        %4442 = vmatpush1.msra.mxu0 %v4167
        %4443 = vmatprep.subr.mxu0 %v4160
        %4444 = vmatpush1.msra.mxu0 %v4159
        %4445 = vmatprep.subr.mxu0 %v4152
        %4446 = vmatpush1.msra.mxu0 %v4151
        %4447 = vmatprep.subr.mxu0 %v4144
        %4448 = vmatpush1.msra.mxu0 %v4143
        %4449 = vmatprep.subr.mxu0 0.0
        %4450 = vmatpush2.msra.mxu0 0.0
        %4451 = vmatprep.subr.mxu0 0.0
        %4452 = vmatpush2.msra.mxu0 0.0
        %4453 = vmatprep.subr.mxu0 0.0
        %4454 = vmatpush2.msra.mxu0 0.0
        %4455 = vmatprep.subr.mxu0 0.0
        %4456 = vmatpush2.msra.mxu0 0.0
        %4457 = vmatprep.subr.mxu0 0.0
        %4458 = vmatpush2.msra.mxu0 0.0
        %4459 = vmatprep.subr.mxu0 0.0
        %4460 = vmatpush2.msra.mxu0 0.0
        %4461 = vmatprep.subr.mxu0 0.0
        %4462 = vmatpush2.msra.mxu0 0.0
        %4463 = vmatprep.subr.mxu0 0.0
        %4464 = vmatpush2.msra.mxu0 0.0
        %4465 = vmatprep.subr.mxu0 0.0
        %4466 = vmatpush2.msra.mxu0 0.0
        %4467 = vmatprep.subr.mxu0 0.0
        %4468 = vmatpush2.msra.mxu0 0.0
        %4469 = vmatprep.subr.mxu0 0.0
        %4470 = vmatpush2.msra.mxu0 0.0
        %4471 = vmatprep.subr.mxu0 0.0
        %4472 = vmatpush2.msra.mxu0 0.0
        %4473 = vmatprep.subr.mxu0 0.0
        %4474 = vmatpush2.msra.mxu0 0.0
        %4475 = vmatprep.subr.mxu0 0.0
        %4476 = vmatpush2.msra.mxu0 0.0
        %4477 = vmatprep.subr.mxu0 0.0
        %4478 = vmatpush2.msra.mxu0 0.0
        %4479 = vmatprep.subr.mxu0 0.0
        %4480 = vmatpush2.msra.mxu0 0.0
        %4481 = vmatprep.mubr.f32.mxu0 0.0
        %4482 = vmatmul.mubr.f32.gmra.mxu0 %v4181
        %v4483 = vpop.f32.mrf.mxu0
        %v4484 = vadd.f32 %v4173, %v4483
        %v4485 = vpop.f32.mrf.mxu0
        %v4486 = vadd.f32 %v4173, %v4485
        %4487 = vmatprep.mubr.f32.mxu0 0.0
        %4488 = vmatmul.mubr.f32.gmra.mxu0 %v4184
        %v4489 = vpop.f32.mrf.mxu0
        %v4490 = vadd.f32 %v4177, %v4489
        %v4491 = vpop.f32.mrf.mxu0
        %v4492 = vadd.f32 %v4177, %v4491
        %4493 = vdwg.mxu0
        %v4494 = vadd.f32 %v329, %v4253
        %v4495 = vadd.f32 %v330, %v4255
        %v4496 = vadd.f32 %v331, %v4330
        %v4497 = vadd.f32 %v332, %v4332
        %v4498 = vadd.f32 %v333, %v4407
        %v4499 = vadd.f32 %v334, %v4409
        %v4500 = vadd.f32 %v335, %v4484
        %v4501 = vadd.f32 %v336, %v4486
        %v4502 = vadd.f32 %v337, %v4259
        %v4503 = vadd.f32 %v338, %v4261
        %v4504 = vadd.f32 %v339, %v4336
        %v4505 = vadd.f32 %v340, %v4338
        %v4506 = vadd.f32 %v341, %v4413
        %v4507 = vadd.f32 %v342, %v4415
        %v4508 = vadd.f32 %v343, %v4490
        %v4509 = vadd.f32 %v344, %v4492
        %4510 = vst [vmem:[%s326] sm:$0xff] %v4494
        %4511 = vst [vmem:[%s326 + $0x8] sm:$0xff] %v4495
        %4512 = vst [vmem:[%s326 + $0x10] sm:$0xff] %v4496
        %4513 = vst [vmem:[%s326 + $0x18] sm:$0xff] %v4497
        %4514 = vst [vmem:[%s326 + $0x20] sm:$0xff] %v4498
        %4515 = vst [vmem:[%s326 + $0x28] sm:$0xff] %v4499
        %4516 = vst [vmem:[%s326 + $0x30] sm:$0xff] %v4500
        %4517 = vst [vmem:[%s326 + $0x38] sm:$0xff] %v4501
        %4518 = vst [vmem:[%s326 + $0x40] sm:$0xff] %v4502
        %4519 = vst [vmem:[%s326 + $0x48] sm:$0xff] %v4503
        %4520 = vst [vmem:[%s326 + $0x50] sm:$0xff] %v4504
        %4521 = vst [vmem:[%s326 + $0x58] sm:$0xff] %v4505
        %4522 = vst [vmem:[%s326 + $0x60] sm:$0xff] %v4506
        %4523 = vst [vmem:[%s326 + $0x68] sm:$0xff] %v4507
        %4524 = vst [vmem:[%s326 + $0x70] sm:$0xff] %v4508
        %4525 = vst [vmem:[%s326 + $0x78] sm:$0xff] %v4509
        %s4526 = sand.u32 %s181, 1
        %s4527 = scalar_lea.sflag [#allocation4], %s4526
        %s4528 = sand.u32 %s181, 1
        %s4529 = smul.addr %s4528, 128
        %s4530 = scalar_lea.vmem [#allocation3], %s4529
        // Predicated region
        $region72: #{tpu_custom_call.1} parent=66 // pred_check
          %p4531 = pneg %p191
        $region73: #{tpu_custom_call.1} parent=66 // pred_check_branch
          %4533 = sbr.rel (%p4531) target = $region75
        $region74: #{tpu_custom_call.1} parent=66 // pred_region
          %s4534 = smul.u32 8, %s21
          %s4536 = ssub.s32 2048, 2048
          %4537 = vsyncadd %s4527, %s4536
          %s4538 = smul.addr %s4534, 128
          %s4539 = scalar_lea.hbm %s7, %s4538
          %s4540 = sshll.u32 %s4530, 4
          %s4541 = int_to_ptr.vmem [resolvable:$true] %s4540
          %4546 = dma.vmem_to_hbm [thread:$0]  %s4541, 2048, %s4539, %s4527, 1024, 2048, 64
        $region75: #{tpu_custom_call.1} parent=66 // pred_fallthru
          _
      $region67: #{tpu_custom_call.1} parent=5 // pred_fallthru
        _
      %p4547 = scmp.le.s32.totalorder 2, %s16
      // Predicated region
      $region76: #{tpu_custom_call.1} parent=5 // pred_check
        %p4548 = pneg %p4547
      $region77: #{tpu_custom_call.1} parent=5 // pred_check_branch
        %4550 = sbr.rel (%p4548) target = $region79
      $region78: #{tpu_custom_call.1} parent=5 // pred_region
        %s4551 = ssub.s32 %s16, 2
        // Predicated region
        $region80: #{tpu_custom_call.1} parent=78 // pred_check
          %p4552 = pneg %p197
        $region81: #{tpu_custom_call.1} parent=78 // pred_check_branch
          %4554 = sbr.rel (%p4552) target = $region83
        $region82: #{tpu_custom_call.1} parent=78 // pred_region
          %s4555 = sand.u32 %s182, 1
          %s4556 = scalar_lea.sflag [#allocation4], %s4555
          %s4557 = sand.u32 %s182, 1
          %s4558 = smul.addr %s4557, 128
          %s4559 = scalar_lea.vmem [#allocation3], %s4558
          %4560 = dma.done %s4556, 2048
        $region83: #{tpu_custom_call.1} parent=78 // pred_fallthru
          _
      $region79: #{tpu_custom_call.1} parent=5 // pred_fallthru
        _
    $region6: #{tpu_custom_call.1} parent=1 // loop_footer
      %s20 = sadd.s32 1, %s16
    $region7: #{tpu_custom_call.1} parent=1 // loop_footer_branch
      %15 = sbr.rel target = $region3
    $region8: #{tpu_custom_call.1} parent=1 // loop_exit
      _
    %4561 = vsyncpa [#allocation4], 1
    %s4562 = scalar_lea.sflag [#allocation4], 1
    %4563 = vsyncpa %s4562, 1

</llo_original>
